<compile_context>
chip_gen: v7x
topology: tpu7x:2x2x1
jax: 0.10.0
libtpu: 0.0.40
codegen_flags: <defaults>
</compile_context>

<pallas_src>
import functools

import jax
import jax.numpy as jnp
from jax import lax
from jax.experimental import pallas as pl
from jax.experimental.pallas import tpu as pltpu

# ---- static config for the tsteps == 10 branch ------------------------------
TSTEPS = 10
CH = 10                       # channel_size
K1, S1 = 4, 2                 # conv1 kernel / stride
K2, S2 = 2, 1                 # conv2 kernel / stride
L1 = (TSTEPS - K1) // S1 + 1  # = 4
L2 = (L1 - K2) // S2 + 1      # = 3
CP3 = 32                      # 3*CH (=30) zero-padded to a 16/32-aligned row count
CP2 = 32                      # 2*CH (=20) zero-padded to a 16/32-aligned row count


def _elu(x):
    # nn.ELU(alpha=1.0): x for x > 0, exp(x) - 1 otherwise.
    # min(x, 0) keeps exp() finite for large positive x before the select.
    return jnp.where(x > 0, x, jnp.exp(jnp.minimum(x, 0.0)) - 1.0)


def _round_up(x, m):
    return (x + m - 1) // m * m


# ---- Pallas kernel -----------------------------------------------------------
def state_history_encoder_kernel(obs_ref, w_enc_ref, b_enc_ref,
                                 w_c1_ref, b_c1_ref,
                                 w_c2_ref, b_c2_ref,
                                 w_out_ref, b_out_ref,
                                 out_ref,
                                 enc_ref, h1_ref):
    # obs_ref: [nd_b, T*D] f32           out_ref: [out, nd_b] f32
    # enc_ref: [T*CP3, nd_b] bf16        h1_ref:  [L1*CP2, nd_b] bf16
    d = w_enc_ref.shape[1]

    # --- encoder: per timestep, W_enc @ obs_t^T (puts batch on lanes) --------
    for t in range(TSTEPS):
        slab = obs_ref[:, t * d:(t + 1) * d].astype(jnp.bfloat16)     # [nd_b, D]
        e = lax.dot_general(
            w_enc_ref[...], slab,
            dimension_numbers=(((1,), (1,)), ((), ())),                # contract D with D
            preferred_element_type=jnp.float32)                        # [CP3, nd_b]
        enc_ref[t * CP3:(t + 1) * CP3, :] = (
            _elu(e + b_enc_ref[...]).astype(jnp.bfloat16))

    # --- Conv1d(30->20, k=4, s=2) + ELU: one windowed matmul per position ----
    for l in range(L1):
        win = enc_ref[S1 * l * CP3: S1 * l * CP3 + K1 * CP3, :]        # [128, nd_b]
        h = jnp.dot(w_c1_ref[...], win, preferred_element_type=jnp.float32)
        h1_ref[l * CP2:(l + 1) * CP2, :] = (
            _elu(h + b_c1_ref[...]).astype(jnp.bfloat16))

    # --- Conv1d(20->10, k=2, s=1) + Flatten + Linear(30->out), fused ---------
    acc = b_out_ref[...]                                               # [out, 1]
    for l in range(L2):
        win = h1_ref[S2 * l * CP2: S2 * l * CP2 + K2 * CP2, :]         # [64, nd_b]
        h2 = _elu(jnp.dot(w_c2_ref[...], win,
                          preferred_element_type=jnp.float32)
                  + b_c2_ref[...])                                     # [CH, nd_b]
        acc = acc + jnp.dot(w_out_ref[l], h2.astype(jnp.bfloat16),
                            preferred_element_type=jnp.float32)
    out_ref[...] = _elu(acc)                                           # lane-dense store


# ---- wrapper (parameter layout glue + pallas_call) --------------------------
@functools.partial(jax.jit, static_argnames=("input_size", "output_size", "block_nd"))
def state_history_encoder(obs, params, input_size, output_size, *, block_nd=2048):
    nd = obs.shape[0]
    # batch tile: multiple of 128 (lane-dense), >=2 blocks when possible (v7x).
    nd_b = min(block_nd, _round_up(pl.cdiv(nd, 2), 128))
    nd_pad = _round_up(nd, nd_b)
    # only pad when nd is ragged (extra HBM pass avoided in the common case).
    obs_p = obs if nd_pad == nd else jnp.pad(obs, ((0, nd_pad - nd), (0, 0)))

    f32, bf16 = jnp.float32, jnp.bfloat16

    # encoder Linear: [3CH, D] -> zero-pad rows to CP3, bf16.
    w_enc = (jnp.zeros((CP3, input_size), f32)
             .at[:3 * CH].set(params["w_enc_pt"]).astype(bf16))
    b_enc = jnp.zeros((CP3, 1), f32).at[:3 * CH, 0].set(params["b_enc"])

    # Conv1d #1: [2CH, 3CH, K1] -> windowed [CP2, K1*CP3] (col = k*CP3 + cin).
    w1 = params["w_c1_pt"].transpose(0, 2, 1)                          # [2CH, K1, 3CH]
    w_c1 = (jnp.zeros((CP2, K1, CP3), f32)
            .at[:2 * CH, :, :3 * CH].set(w1)
            .reshape(CP2, K1 * CP3).astype(bf16))
    b_c1 = jnp.zeros((CP2, 1), f32).at[:2 * CH, 0].set(params["b_c1"])

    # Conv1d #2: [CH, 2CH, K2] -> windowed [CH, K2*CP2] (col = k*CP2 + cin).
    w2 = params["w_c2_pt"].transpose(0, 2, 1)                          # [CH, K2, 2CH]
    w_c2 = (jnp.zeros((CH, K2, CP2), f32)
            .at[:, :, :2 * CH].set(w2)
            .reshape(CH, K2 * CP2).astype(bf16))
    b_c2 = params["b_c2"].reshape(CH, 1).astype(f32)

    # output Linear: PyTorch flatten of NCW [nd, CH, L2] gives feature c*L2+l;
    # split per conv2 position l -> [L2, out, CH] so the kernel accumulates.
    w_out = (params["w_out_pt"].reshape(output_size, CH, L2)
             .transpose(2, 0, 1).astype(bf16))                         # [L2, out, CH]
    b_out = params["b_out"].reshape(output_size, 1).astype(f32)

    out = pl.pallas_call(
        state_history_encoder_kernel,
        out_shape=jax.ShapeDtypeStruct((output_size, nd_pad), jnp.float32),
        grid_spec=pltpu.PrefetchScalarGridSpec(
            num_scalar_prefetch=0,
            grid=(nd_pad // nd_b,),
            in_specs=[
                pl.BlockSpec((nd_b, TSTEPS * input_size), lambda i: (i, 0)),
                pl.BlockSpec((CP3, input_size), lambda i: (0, 0)),
                pl.BlockSpec((CP3, 1), lambda i: (0, 0)),
                pl.BlockSpec((CP2, K1 * CP3), lambda i: (0, 0)),
                pl.BlockSpec((CP2, 1), lambda i: (0, 0)),
                pl.BlockSpec((CH, K2 * CP2), lambda i: (0, 0)),
                pl.BlockSpec((CH, 1), lambda i: (0, 0)),
                pl.BlockSpec((L2, output_size, CH), lambda i: (0, 0, 0)),
                pl.BlockSpec((output_size, 1), lambda i: (0, 0)),
            ],
            out_specs=pl.BlockSpec((output_size, nd_b), lambda i: (0, i)),
            scratch_shapes=[
                pltpu.VMEM((TSTEPS * CP3, nd_b), jnp.bfloat16),   # enc (windowable)
                pltpu.VMEM((L1 * CP2, nd_b), jnp.bfloat16),       # conv1 output
            ],
        ),
        compiler_params=pltpu.CompilerParams(
            dimension_semantics=("parallel",)),
    )(obs_p, w_enc, b_enc, w_c1, b_c1, w_c2, b_c2, w_out, b_out)

    # kernel writes [output_size, nd_pad] (lane-dense); restore [nd, output_size].
    return out[:, :nd].T


# ---- pure-JAX reference (follows PyTorch NCW conventions exactly) -----------
def ref_forward(obs, params, input_size, output_size):
    nd = obs.shape[0]
    x = obs.reshape(nd * TSTEPS, input_size)
    proj = _elu(x @ params["w_enc_pt"].T + params["b_enc"])      # [nd*T, 3CH]
    x = proj.reshape(nd, TSTEPS, 3 * CH).transpose(0, 2, 1)      # [nd, 3CH, T]
    w1, b1 = params["w_c1_pt"], params["b_c1"]                   # [2CH, 3CH, K1]
    y1 = jnp.stack(
        [jnp.einsum("nck,ock->no", x[:, :, S1 * j:S1 * j + K1], w1)
         for j in range(L1)], axis=-1)
    y1 = _elu(y1 + b1[None, :, None])                            # [nd, 2CH, L1]
    w2, b2 = params["w_c2_pt"], params["b_c2"]                   # [CH, 2CH, K2]
    y2 = jnp.stack(
        [jnp.einsum("nck,ock->no", y1[:, :, S2 * j:S2 * j + K2], w2)
         for j in range(L2)], axis=-1)
    y2 = _elu(y2 + b2[None, :, None])                            # [nd, CH, L2]
    flat = y2.reshape(nd, CH * L2)                               # channel-major flatten
    return _elu(flat @ params["w_out_pt"].T + params["b_out"])


if __name__ == "__main__":
    input_size = 32
    output_size = 20

    key = jax.random.PRNGKey(0)
    ks = jax.random.split(key, 10)
    params = {
        # PyTorch parameter shapes from StateHistoryEncoder.__init__ (tsteps=10)
        "w_enc_pt": 0.1 * jax.random.normal(ks[0], (3 * CH, input_size), jnp.float32),
        "b_enc":    0.1 * jax.random.normal(ks[1], (3 * CH,), jnp.float32),
        "w_c1_pt":  0.1 * jax.random.normal(ks[2], (2 * CH, 3 * CH, K1), jnp.float32),
        "b_c1":     0.1 * jax.random.normal(ks[3], (2 * CH,), jnp.float32),
        "w_c2_pt":  0.1 * jax.random.normal(ks[4], (CH, 2 * CH, K2), jnp.float32),
        "b_c2":     0.1 * jax.random.normal(ks[5], (CH,), jnp.float32),
        "w_out_pt": 0.1 * jax.random.normal(ks[6], (output_size, 3 * CH), jnp.float32),
        "b_out":    0.1 * jax.random.normal(ks[7], (output_size,), jnp.float32),
    }

    # Test 1: two grid blocks (nd_b = 256), no padding path.
    nd = 512
    obs = jax.random.normal(ks[8], (nd, TSTEPS * input_size), jnp.float32)
    out = jax.block_until_ready(
        state_history_encoder(obs, params, input_size, output_size))
    ref = ref_forward(obs, params, input_size, output_size)
    assert out.shape == (nd, output_size)
    assert jnp.allclose(out, ref, rtol=2e-2, atol=2e-2), (
        f"max abs diff {jnp.max(jnp.abs(out - ref))}")

    # Test 2: ragged batch (exercises the pad + slice path, single 128 block).
    nd2 = 100
    obs2 = jax.random.normal(ks[9], (nd2, TSTEPS * input_size), jnp.float32)
    out2 = jax.block_until_ready(
        state_history_encoder(obs2, params, input_size, output_size))
    ref2 = ref_forward(obs2, params, input_size, output_size)
    assert out2.shape == (nd2, output_size)
    assert jnp.allclose(out2, ref2, rtol=2e-2, atol=2e-2), (
        f"max abs diff {jnp.max(jnp.abs(out2 - ref2))}")

    print("KERNEL_OK")
</pallas_src>

<mosaic_0001>
module attributes {stable_mosaic.version = 11 : i64} {
  func.func @state_history_encoder_kernel(%arg0: i32, %arg1: memref<256x320xf32, #tpu.memory_space<vmem>>, %arg2: memref<32x32xbf16, #tpu.memory_space<vmem>>, %arg3: memref<32x1xf32, #tpu.memory_space<vmem>>, %arg4: memref<32x128xbf16, #tpu.memory_space<vmem>>, %arg5: memref<32x1xf32, #tpu.memory_space<vmem>>, %arg6: memref<10x64xbf16, #tpu.memory_space<vmem>>, %arg7: memref<10x1xf32, #tpu.memory_space<vmem>>, %arg8: memref<3x20x10xbf16, #tpu.memory_space<vmem>>, %arg9: memref<20x1xf32, #tpu.memory_space<vmem>>, %arg10: memref<20x256xf32, #tpu.memory_space<vmem>>, %arg11: memref<320x256xbf16, #tpu.memory_space<vmem>>, %arg12: memref<128x256xbf16, #tpu.memory_space<vmem>>) attributes {dimension_semantics = [#tpu.dimension_semantics<parallel>], iteration_bounds = array<i64: 2>, scalar_prefetch = 0 : i64, scratch_operands = 2 : i64, tpu.core_type = #tpu.core_type<tc>, window_params = [{transform_indices = @transform_0, window_bounds = array<i64: 256, 320>}, {pipeline_mode = #tpu.pipeline_mode<synchronous>, transform_indices = @transform_1, window_bounds = array<i64: 32, 32>}, {pipeline_mode = #tpu.pipeline_mode<synchronous>, transform_indices = @transform_2, window_bounds = array<i64: 32, 1>}, {pipeline_mode = #tpu.pipeline_mode<synchronous>, transform_indices = @transform_3, window_bounds = array<i64: 32, 128>}, {pipeline_mode = #tpu.pipeline_mode<synchronous>, transform_indices = @transform_4, window_bounds = array<i64: 32, 1>}, {pipeline_mode = #tpu.pipeline_mode<synchronous>, transform_indices = @transform_5, window_bounds = array<i64: 10, 64>}, {pipeline_mode = #tpu.pipeline_mode<synchronous>, transform_indices = @transform_6, window_bounds = array<i64: 10, 1>}, {pipeline_mode = #tpu.pipeline_mode<synchronous>, transform_indices = @transform_7, window_bounds = array<i64: 3, 20, 10>}, {pipeline_mode = #tpu.pipeline_mode<synchronous>, transform_indices = @transform_8, window_bounds = array<i64: 20, 1>}, {transform_indices = @transform_9, window_bounds = array<i64: 20, 256>}]} {
    %c0 = arith.constant 0 : index
    %c0_0 = arith.constant 0 : index
    %0 = vector.load %arg1[%c0, %c0_0] : memref<256x320xf32, #tpu.memory_space<vmem>>, vector<256x32xf32>
    %1 = arith.truncf %0 : vector<256x32xf32> to vector<256x32xbf16>
    %c0_1 = arith.constant 0 : index
    %c0_2 = arith.constant 0 : index
    %2 = vector.load %arg2[%c0_1, %c0_2] : memref<32x32xbf16, #tpu.memory_space<vmem>>, vector<32x32xbf16>
    %cst = arith.constant dense<0.000000e+00> : vector<32x256xf32>
    %3 = tpu.matmul %2, %1, %cst {dimension_numbers = #tpu.dot_dimension_numbers<[1], [1], [0], [0], [0, 0, 1, 0], [], []>} : vector<32x32xbf16>, vector<256x32xbf16>, vector<32x256xf32> -> vector<32x256xf32>
    %c0_3 = arith.constant 0 : index
    %c0_4 = arith.constant 0 : index
    %4 = vector.load %arg3[%c0_3, %c0_4] : memref<32x1xf32, #tpu.memory_space<vmem>>, vector<32x1xf32>
    %5 = vector.broadcast %4 : vector<32x1xf32> to vector<32x256xf32>
    %6 = arith.addf %3, %5 : vector<32x256xf32>
    %cst_5 = arith.constant 0.000000e+00 : f32
    %7 = vector.broadcast %cst_5 : f32 to vector<32x256xf32>
    %8 = arith.cmpf ogt, %6, %7 : vector<32x256xf32>
    %cst_6 = arith.constant 0.000000e+00 : f32
    %9 = vector.broadcast %cst_6 : f32 to vector<32x256xf32>
    %10 = arith.minimumf %6, %9 : vector<32x256xf32>
    %11 = math.exp %10 : vector<32x256xf32>
    %cst_7 = arith.constant 1.000000e+00 : f32
    %12 = vector.broadcast %cst_7 : f32 to vector<32x256xf32>
    %13 = arith.subf %11, %12 : vector<32x256xf32>
    %14 = arith.select %8, %6, %13 : vector<32x256xi1>, vector<32x256xf32>
    %15 = arith.truncf %14 : vector<32x256xf32> to vector<32x256xbf16>
    %c0_8 = arith.constant 0 : index
    %c0_9 = arith.constant 0 : index
    %16 = vector.load %arg11[%c0_8, %c0_9] : memref<320x256xbf16, #tpu.memory_space<vmem>>, vector<32x256xbf16>
    tpu.vector_store %arg11[%c0_8, %c0_9], %15 {strides = array<i32>} : memref<320x256xbf16, #tpu.memory_space<vmem>>, vector<32x256xbf16>,
    %c0_10 = arith.constant 0 : index
    %c32 = arith.constant 32 : index
    %17 = vector.load %arg1[%c0_10, %c32] : memref<256x320xf32, #tpu.memory_space<vmem>>, vector<256x32xf32>
    %18 = arith.truncf %17 : vector<256x32xf32> to vector<256x32xbf16>
    %c0_11 = arith.constant 0 : index
    %c0_12 = arith.constant 0 : index
    %19 = vector.load %arg2[%c0_11, %c0_12] : memref<32x32xbf16, #tpu.memory_space<vmem>>, vector<32x32xbf16>
    %cst_13 = arith.constant dense<0.000000e+00> : vector<32x256xf32>
    %20 = tpu.matmul %19, %18, %cst_13 {dimension_numbers = #tpu.dot_dimension_numbers<[1], [1], [0], [0], [0, 0, 1, 0], [], []>} : vector<32x32xbf16>, vector<256x32xbf16>, vector<32x256xf32> -> vector<32x256xf32>
    %c0_14 = arith.constant 0 : index
    %c0_15 = arith.constant 0 : index
    %21 = vector.load %arg3[%c0_14, %c0_15] : memref<32x1xf32, #tpu.memory_space<vmem>>, vector<32x1xf32>
    %22 = vector.broadcast %21 : vector<32x1xf32> to vector<32x256xf32>
    %23 = arith.addf %20, %22 : vector<32x256xf32>
    %cst_16 = arith.constant 0.000000e+00 : f32
    %24 = vector.broadcast %cst_16 : f32 to vector<32x256xf32>
    %25 = arith.cmpf ogt, %23, %24 : vector<32x256xf32>
    %cst_17 = arith.constant 0.000000e+00 : f32
    %26 = vector.broadcast %cst_17 : f32 to vector<32x256xf32>
    %27 = arith.minimumf %23, %26 : vector<32x256xf32>
    %28 = math.exp %27 : vector<32x256xf32>
    %cst_18 = arith.constant 1.000000e+00 : f32
    %29 = vector.broadcast %cst_18 : f32 to vector<32x256xf32>
    %30 = arith.subf %28, %29 : vector<32x256xf32>
    %31 = arith.select %25, %23, %30 : vector<32x256xi1>, vector<32x256xf32>
    %32 = arith.truncf %31 : vector<32x256xf32> to vector<32x256xbf16>
    %c32_19 = arith.constant 32 : index
    %c0_20 = arith.constant 0 : index
    %33 = vector.load %arg11[%c32_19, %c0_20] : memref<320x256xbf16, #tpu.memory_space<vmem>>, vector<32x256xbf16>
    tpu.vector_store %arg11[%c32_19, %c0_20], %32 {strides = array<i32>} : memref<320x256xbf16, #tpu.memory_space<vmem>>, vector<32x256xbf16>,
    %c0_21 = arith.constant 0 : index
    %c64 = arith.constant 64 : index
    %34 = vector.load %arg1[%c0_21, %c64] : memref<256x320xf32, #tpu.memory_space<vmem>>, vector<256x32xf32>
    %35 = arith.truncf %34 : vector<256x32xf32> to vector<256x32xbf16>
    %c0_22 = arith.constant 0 : index
    %c0_23 = arith.constant 0 : index
    %36 = vector.load %arg2[%c0_22, %c0_23] : memref<32x32xbf16, #tpu.memory_space<vmem>>, vector<32x32xbf16>
    %cst_24 = arith.constant dense<0.000000e+00> : vector<32x256xf32>
    %37 = tpu.matmul %36, %35, %cst_24 {dimension_numbers = #tpu.dot_dimension_numbers<[1], [1], [0], [0], [0, 0, 1, 0], [], []>} : vector<32x32xbf16>, vector<256x32xbf16>, vector<32x256xf32> -> vector<32x256xf32>
    %c0_25 = arith.constant 0 : index
    %c0_26 = arith.constant 0 : index
    %38 = vector.load %arg3[%c0_25, %c0_26] : memref<32x1xf32, #tpu.memory_space<vmem>>, vector<32x1xf32>
    %39 = vector.broadcast %38 : vector<32x1xf32> to vector<32x256xf32>
    %40 = arith.addf %37, %39 : vector<32x256xf32>
    %cst_27 = arith.constant 0.000000e+00 : f32
    %41 = vector.broadcast %cst_27 : f32 to vector<32x256xf32>
    %42 = arith.cmpf ogt, %40, %41 : vector<32x256xf32>
    %cst_28 = arith.constant 0.000000e+00 : f32
    %43 = vector.broadcast %cst_28 : f32 to vector<32x256xf32>
    %44 = arith.minimumf %40, %43 : vector<32x256xf32>
    %45 = math.exp %44 : vector<32x256xf32>
    %cst_29 = arith.constant 1.000000e+00 : f32
    %46 = vector.broadcast %cst_29 : f32 to vector<32x256xf32>
    %47 = arith.subf %45, %46 : vector<32x256xf32>
    %48 = arith.select %42, %40, %47 : vector<32x256xi1>, vector<32x256xf32>
    %49 = arith.truncf %48 : vector<32x256xf32> to vector<32x256xbf16>
    %c64_30 = arith.constant 64 : index
    %c0_31 = arith.constant 0 : index
    %50 = vector.load %arg11[%c64_30, %c0_31] : memref<320x256xbf16, #tpu.memory_space<vmem>>, vector<32x256xbf16>
    tpu.vector_store %arg11[%c64_30, %c0_31], %49 {strides = array<i32>} : memref<320x256xbf16, #tpu.memory_space<vmem>>, vector<32x256xbf16>,
    %c0_32 = arith.constant 0 : index
    %c96 = arith.constant 96 : index
    %51 = vector.load %arg1[%c0_32, %c96] : memref<256x320xf32, #tpu.memory_space<vmem>>, vector<256x32xf32>
    %52 = arith.truncf %51 : vector<256x32xf32> to vector<256x32xbf16>
    %c0_33 = arith.constant 0 : index
    %c0_34 = arith.constant 0 : index
    %53 = vector.load %arg2[%c0_33, %c0_34] : memref<32x32xbf16, #tpu.memory_space<vmem>>, vector<32x32xbf16>
    %cst_35 = arith.constant dense<0.000000e+00> : vector<32x256xf32>
    %54 = tpu.matmul %53, %52, %cst_35 {dimension_numbers = #tpu.dot_dimension_numbers<[1], [1], [0], [0], [0, 0, 1, 0], [], []>} : vector<32x32xbf16>, vector<256x32xbf16>, vector<32x256xf32> -> vector<32x256xf32>
    %c0_36 = arith.constant 0 : index
    %c0_37 = arith.constant 0 : index
    %55 = vector.load %arg3[%c0_36, %c0_37] : memref<32x1xf32, #tpu.memory_space<vmem>>, vector<32x1xf32>
    %56 = vector.broadcast %55 : vector<32x1xf32> to vector<32x256xf32>
    %57 = arith.addf %54, %56 : vector<32x256xf32>
    %cst_38 = arith.constant 0.000000e+00 : f32
    %58 = vector.broadcast %cst_38 : f32 to vector<32x256xf32>
    %59 = arith.cmpf ogt, %57, %58 : vector<32x256xf32>
    %cst_39 = arith.constant 0.000000e+00 : f32
    %60 = vector.broadcast %cst_39 : f32 to vector<32x256xf32>
    %61 = arith.minimumf %57, %60 : vector<32x256xf32>
    %62 = math.exp %61 : vector<32x256xf32>
    %cst_40 = arith.constant 1.000000e+00 : f32
    %63 = vector.broadcast %cst_40 : f32 to vector<32x256xf32>
    %64 = arith.subf %62, %63 : vector<32x256xf32>
    %65 = arith.select %59, %57, %64 : vector<32x256xi1>, vector<32x256xf32>
    %66 = arith.truncf %65 : vector<32x256xf32> to vector<32x256xbf16>
    %c96_41 = arith.constant 96 : index
    %c0_42 = arith.constant 0 : index
    %67 = vector.load %arg11[%c96_41, %c0_42] : memref<320x256xbf16, #tpu.memory_space<vmem>>, vector<32x256xbf16>
    tpu.vector_store %arg11[%c96_41, %c0_42], %66 {strides = array<i32>} : memref<320x256xbf16, #tpu.memory_space<vmem>>, vector<32x256xbf16>,
    %c0_43 = arith.constant 0 : index
    %c128 = arith.constant 128 : index
    %68 = vector.load %arg1[%c0_43, %c128] : memref<256x320xf32, #tpu.memory_space<vmem>>, vector<256x32xf32>
    %69 = arith.truncf %68 : vector<256x32xf32> to vector<256x32xbf16>
    %c0_44 = arith.constant 0 : index
    %c0_45 = arith.constant 0 : index
    %70 = vector.load %arg2[%c0_44, %c0_45] : memref<32x32xbf16, #tpu.memory_space<vmem>>, vector<32x32xbf16>
    %cst_46 = arith.constant dense<0.000000e+00> : vector<32x256xf32>
    %71 = tpu.matmul %70, %69, %cst_46 {dimension_numbers = #tpu.dot_dimension_numbers<[1], [1], [0], [0], [0, 0, 1, 0], [], []>} : vector<32x32xbf16>, vector<256x32xbf16>, vector<32x256xf32> -> vector<32x256xf32>
    %c0_47 = arith.constant 0 : index
    %c0_48 = arith.constant 0 : index
    %72 = vector.load %arg3[%c0_47, %c0_48] : memref<32x1xf32, #tpu.memory_space<vmem>>, vector<32x1xf32>
    %73 = vector.broadcast %72 : vector<32x1xf32> to vector<32x256xf32>
    %74 = arith.addf %71, %73 : vector<32x256xf32>
    %cst_49 = arith.constant 0.000000e+00 : f32
    %75 = vector.broadcast %cst_49 : f32 to vector<32x256xf32>
    %76 = arith.cmpf ogt, %74, %75 : vector<32x256xf32>
    %cst_50 = arith.constant 0.000000e+00 : f32
    %77 = vector.broadcast %cst_50 : f32 to vector<32x256xf32>
    %78 = arith.minimumf %74, %77 : vector<32x256xf32>
    %79 = math.exp %78 : vector<32x256xf32>
    %cst_51 = arith.constant 1.000000e+00 : f32
    %80 = vector.broadcast %cst_51 : f32 to vector<32x256xf32>
    %81 = arith.subf %79, %80 : vector<32x256xf32>
    %82 = arith.select %76, %74, %81 : vector<32x256xi1>, vector<32x256xf32>
    %83 = arith.truncf %82 : vector<32x256xf32> to vector<32x256xbf16>
    %c128_52 = arith.constant 128 : index
    %c0_53 = arith.constant 0 : index
    %84 = vector.load %arg11[%c128_52, %c0_53] : memref<320x256xbf16, #tpu.memory_space<vmem>>, vector<32x256xbf16>
    tpu.vector_store %arg11[%c128_52, %c0_53], %83 {strides = array<i32>} : memref<320x256xbf16, #tpu.memory_space<vmem>>, vector<32x256xbf16>,
    %c0_54 = arith.constant 0 : index
    %c160 = arith.constant 160 : index
    %85 = vector.load %arg1[%c0_54, %c160] : memref<256x320xf32, #tpu.memory_space<vmem>>, vector<256x32xf32>
    %86 = arith.truncf %85 : vector<256x32xf32> to vector<256x32xbf16>
    %c0_55 = arith.constant 0 : index
    %c0_56 = arith.constant 0 : index
    %87 = vector.load %arg2[%c0_55, %c0_56] : memref<32x32xbf16, #tpu.memory_space<vmem>>, vector<32x32xbf16>
    %cst_57 = arith.constant dense<0.000000e+00> : vector<32x256xf32>
    %88 = tpu.matmul %87, %86, %cst_57 {dimension_numbers = #tpu.dot_dimension_numbers<[1], [1], [0], [0], [0, 0, 1, 0], [], []>} : vector<32x32xbf16>, vector<256x32xbf16>, vector<32x256xf32> -> vector<32x256xf32>
    %c0_58 = arith.constant 0 : index
    %c0_59 = arith.constant 0 : index
    %89 = vector.load %arg3[%c0_58, %c0_59] : memref<32x1xf32, #tpu.memory_space<vmem>>, vector<32x1xf32>
    %90 = vector.broadcast %89 : vector<32x1xf32> to vector<32x256xf32>
    %91 = arith.addf %88, %90 : vector<32x256xf32>
    %cst_60 = arith.constant 0.000000e+00 : f32
    %92 = vector.broadcast %cst_60 : f32 to vector<32x256xf32>
    %93 = arith.cmpf ogt, %91, %92 : vector<32x256xf32>
    %cst_61 = arith.constant 0.000000e+00 : f32
    %94 = vector.broadcast %cst_61 : f32 to vector<32x256xf32>
    %95 = arith.minimumf %91, %94 : vector<32x256xf32>
    %96 = math.exp %95 : vector<32x256xf32>
    %cst_62 = arith.constant 1.000000e+00 : f32
    %97 = vector.broadcast %cst_62 : f32 to vector<32x256xf32>
    %98 = arith.subf %96, %97 : vector<32x256xf32>
    %99 = arith.select %93, %91, %98 : vector<32x256xi1>, vector<32x256xf32>
    %100 = arith.truncf %99 : vector<32x256xf32> to vector<32x256xbf16>
    %c160_63 = arith.constant 160 : index
    %c0_64 = arith.constant 0 : index
    %101 = vector.load %arg11[%c160_63, %c0_64] : memref<320x256xbf16, #tpu.memory_space<vmem>>, vector<32x256xbf16>
    tpu.vector_store %arg11[%c160_63, %c0_64], %100 {strides = array<i32>} : memref<320x256xbf16, #tpu.memory_space<vmem>>, vector<32x256xbf16>,
    %c0_65 = arith.constant 0 : index
    %c192 = arith.constant 192 : index
    %102 = vector.load %arg1[%c0_65, %c192] : memref<256x320xf32, #tpu.memory_space<vmem>>, vector<256x32xf32>
    %103 = arith.truncf %102 : vector<256x32xf32> to vector<256x32xbf16>
    %c0_66 = arith.constant 0 : index
    %c0_67 = arith.constant 0 : index
    %104 = vector.load %arg2[%c0_66, %c0_67] : memref<32x32xbf16, #tpu.memory_space<vmem>>, vector<32x32xbf16>
    %cst_68 = arith.constant dense<0.000000e+00> : vector<32x256xf32>
    %105 = tpu.matmul %104, %103, %cst_68 {dimension_numbers = #tpu.dot_dimension_numbers<[1], [1], [0], [0], [0, 0, 1, 0], [], []>} : vector<32x32xbf16>, vector<256x32xbf16>, vector<32x256xf32> -> vector<32x256xf32>
    %c0_69 = arith.constant 0 : index
    %c0_70 = arith.constant 0 : index
    %106 = vector.load %arg3[%c0_69, %c0_70] : memref<32x1xf32, #tpu.memory_space<vmem>>, vector<32x1xf32>
    %107 = vector.broadcast %106 : vector<32x1xf32> to vector<32x256xf32>
    %108 = arith.addf %105, %107 : vector<32x256xf32>
    %cst_71 = arith.constant 0.000000e+00 : f32
    %109 = vector.broadcast %cst_71 : f32 to vector<32x256xf32>
    %110 = arith.cmpf ogt, %108, %109 : vector<32x256xf32>
    %cst_72 = arith.constant 0.000000e+00 : f32
    %111 = vector.broadcast %cst_72 : f32 to vector<32x256xf32>
    %112 = arith.minimumf %108, %111 : vector<32x256xf32>
    %113 = math.exp %112 : vector<32x256xf32>
    %cst_73 = arith.constant 1.000000e+00 : f32
    %114 = vector.broadcast %cst_73 : f32 to vector<32x256xf32>
    %115 = arith.subf %113, %114 : vector<32x256xf32>
    %116 = arith.select %110, %108, %115 : vector<32x256xi1>, vector<32x256xf32>
    %117 = arith.truncf %116 : vector<32x256xf32> to vector<32x256xbf16>
    %c192_74 = arith.constant 192 : index
    %c0_75 = arith.constant 0 : index
    %118 = vector.load %arg11[%c192_74, %c0_75] : memref<320x256xbf16, #tpu.memory_space<vmem>>, vector<32x256xbf16>
    tpu.vector_store %arg11[%c192_74, %c0_75], %117 {strides = array<i32>} : memref<320x256xbf16, #tpu.memory_space<vmem>>, vector<32x256xbf16>,
    %c0_76 = arith.constant 0 : index
    %c224 = arith.constant 224 : index
    %119 = vector.load %arg1[%c0_76, %c224] : memref<256x320xf32, #tpu.memory_space<vmem>>, vector<256x32xf32>
    %120 = arith.truncf %119 : vector<256x32xf32> to vector<256x32xbf16>
    %c0_77 = arith.constant 0 : index
    %c0_78 = arith.constant 0 : index
    %121 = vector.load %arg2[%c0_77, %c0_78] : memref<32x32xbf16, #tpu.memory_space<vmem>>, vector<32x32xbf16>
    %cst_79 = arith.constant dense<0.000000e+00> : vector<32x256xf32>
    %122 = tpu.matmul %121, %120, %cst_79 {dimension_numbers = #tpu.dot_dimension_numbers<[1], [1], [0], [0], [0, 0, 1, 0], [], []>} : vector<32x32xbf16>, vector<256x32xbf16>, vector<32x256xf32> -> vector<32x256xf32>
    %c0_80 = arith.constant 0 : index
    %c0_81 = arith.constant 0 : index
    %123 = vector.load %arg3[%c0_80, %c0_81] : memref<32x1xf32, #tpu.memory_space<vmem>>, vector<32x1xf32>
    %124 = vector.broadcast %123 : vector<32x1xf32> to vector<32x256xf32>
    %125 = arith.addf %122, %124 : vector<32x256xf32>
    %cst_82 = arith.constant 0.000000e+00 : f32
    %126 = vector.broadcast %cst_82 : f32 to vector<32x256xf32>
    %127 = arith.cmpf ogt, %125, %126 : vector<32x256xf32>
    %cst_83 = arith.constant 0.000000e+00 : f32
    %128 = vector.broadcast %cst_83 : f32 to vector<32x256xf32>
    %129 = arith.minimumf %125, %128 : vector<32x256xf32>
    %130 = math.exp %129 : vector<32x256xf32>
    %cst_84 = arith.constant 1.000000e+00 : f32
    %131 = vector.broadcast %cst_84 : f32 to vector<32x256xf32>
    %132 = arith.subf %130, %131 : vector<32x256xf32>
    %133 = arith.select %127, %125, %132 : vector<32x256xi1>, vector<32x256xf32>
    %134 = arith.truncf %133 : vector<32x256xf32> to vector<32x256xbf16>
    %c224_85 = arith.constant 224 : index
    %c0_86 = arith.constant 0 : index
    %135 = vector.load %arg11[%c224_85, %c0_86] : memref<320x256xbf16, #tpu.memory_space<vmem>>, vector<32x256xbf16>
    tpu.vector_store %arg11[%c224_85, %c0_86], %134 {strides = array<i32>} : memref<320x256xbf16, #tpu.memory_space<vmem>>, vector<32x256xbf16>,
    %c0_87 = arith.constant 0 : index
    %c256 = arith.constant 256 : index
    %136 = vector.load %arg1[%c0_87, %c256] : memref<256x320xf32, #tpu.memory_space<vmem>>, vector<256x32xf32>
    %137 = arith.truncf %136 : vector<256x32xf32> to vector<256x32xbf16>
    %c0_88 = arith.constant 0 : index
    %c0_89 = arith.constant 0 : index
    %138 = vector.load %arg2[%c0_88, %c0_89] : memref<32x32xbf16, #tpu.memory_space<vmem>>, vector<32x32xbf16>
    %cst_90 = arith.constant dense<0.000000e+00> : vector<32x256xf32>
    %139 = tpu.matmul %138, %137, %cst_90 {dimension_numbers = #tpu.dot_dimension_numbers<[1], [1], [0], [0], [0, 0, 1, 0], [], []>} : vector<32x32xbf16>, vector<256x32xbf16>, vector<32x256xf32> -> vector<32x256xf32>
    %c0_91 = arith.constant 0 : index
    %c0_92 = arith.constant 0 : index
    %140 = vector.load %arg3[%c0_91, %c0_92] : memref<32x1xf32, #tpu.memory_space<vmem>>, vector<32x1xf32>
    %141 = vector.broadcast %140 : vector<32x1xf32> to vector<32x256xf32>
    %142 = arith.addf %139, %141 : vector<32x256xf32>
    %cst_93 = arith.constant 0.000000e+00 : f32
    %143 = vector.broadcast %cst_93 : f32 to vector<32x256xf32>
    %144 = arith.cmpf ogt, %142, %143 : vector<32x256xf32>
    %cst_94 = arith.constant 0.000000e+00 : f32
    %145 = vector.broadcast %cst_94 : f32 to vector<32x256xf32>
    %146 = arith.minimumf %142, %145 : vector<32x256xf32>
    %147 = math.exp %146 : vector<32x256xf32>
    %cst_95 = arith.constant 1.000000e+00 : f32
    %148 = vector.broadcast %cst_95 : f32 to vector<32x256xf32>
    %149 = arith.subf %147, %148 : vector<32x256xf32>
    %150 = arith.select %144, %142, %149 : vector<32x256xi1>, vector<32x256xf32>
    %151 = arith.truncf %150 : vector<32x256xf32> to vector<32x256xbf16>
    %c256_96 = arith.constant 256 : index
    %c0_97 = arith.constant 0 : index
    %152 = vector.load %arg11[%c256_96, %c0_97] : memref<320x256xbf16, #tpu.memory_space<vmem>>, vector<32x256xbf16>
    tpu.vector_store %arg11[%c256_96, %c0_97], %151 {strides = array<i32>} : memref<320x256xbf16, #tpu.memory_space<vmem>>, vector<32x256xbf16>,
    %c0_98 = arith.constant 0 : index
    %c288 = arith.constant 288 : index
    %153 = vector.load %arg1[%c0_98, %c288] : memref<256x320xf32, #tpu.memory_space<vmem>>, vector<256x32xf32>
    %154 = arith.truncf %153 : vector<256x32xf32> to vector<256x32xbf16>
    %c0_99 = arith.constant 0 : index
    %c0_100 = arith.constant 0 : index
    %155 = vector.load %arg2[%c0_99, %c0_100] : memref<32x32xbf16, #tpu.memory_space<vmem>>, vector<32x32xbf16>
    %cst_101 = arith.constant dense<0.000000e+00> : vector<32x256xf32>
    %156 = tpu.matmul %155, %154, %cst_101 {dimension_numbers = #tpu.dot_dimension_numbers<[1], [1], [0], [0], [0, 0, 1, 0], [], []>} : vector<32x32xbf16>, vector<256x32xbf16>, vector<32x256xf32> -> vector<32x256xf32>
    %c0_102 = arith.constant 0 : index
    %c0_103 = arith.constant 0 : index
    %157 = vector.load %arg3[%c0_102, %c0_103] : memref<32x1xf32, #tpu.memory_space<vmem>>, vector<32x1xf32>
    %158 = vector.broadcast %157 : vector<32x1xf32> to vector<32x256xf32>
    %159 = arith.addf %156, %158 : vector<32x256xf32>
    %cst_104 = arith.constant 0.000000e+00 : f32
    %160 = vector.broadcast %cst_104 : f32 to vector<32x256xf32>
    %161 = arith.cmpf ogt, %159, %160 : vector<32x256xf32>
    %cst_105 = arith.constant 0.000000e+00 : f32
    %162 = vector.broadcast %cst_105 : f32 to vector<32x256xf32>
    %163 = arith.minimumf %159, %162 : vector<32x256xf32>
    %164 = math.exp %163 : vector<32x256xf32>
    %cst_106 = arith.constant 1.000000e+00 : f32
    %165 = vector.broadcast %cst_106 : f32 to vector<32x256xf32>
    %166 = arith.subf %164, %165 : vector<32x256xf32>
    %167 = arith.select %161, %159, %166 : vector<32x256xi1>, vector<32x256xf32>
    %168 = arith.truncf %167 : vector<32x256xf32> to vector<32x256xbf16>
    %c288_107 = arith.constant 288 : index
    %c0_108 = arith.constant 0 : index
    %169 = vector.load %arg11[%c288_107, %c0_108] : memref<320x256xbf16, #tpu.memory_space<vmem>>, vector<32x256xbf16>
    tpu.vector_store %arg11[%c288_107, %c0_108], %168 {strides = array<i32>} : memref<320x256xbf16, #tpu.memory_space<vmem>>, vector<32x256xbf16>,
    %c0_109 = arith.constant 0 : index
    %c0_110 = arith.constant 0 : index
    %170 = vector.load %arg11[%c0_109, %c0_110] : memref<320x256xbf16, #tpu.memory_space<vmem>>, vector<128x256xbf16>
    %c0_111 = arith.constant 0 : index
    %c0_112 = arith.constant 0 : index
    %171 = vector.load %arg4[%c0_111, %c0_112] : memref<32x128xbf16, #tpu.memory_space<vmem>>, vector<32x128xbf16>
    %cst_113 = arith.constant dense<0.000000e+00> : vector<32x256xf32>
    %172 = tpu.matmul %171, %170, %cst_113 {dimension_numbers = #tpu.dot_dimension_numbers<[1], [0], [0], [1], [0, 0, 1, 1], [], []>} : vector<32x128xbf16>, vector<128x256xbf16>, vector<32x256xf32> -> vector<32x256xf32>
    %c0_114 = arith.constant 0 : index
    %c0_115 = arith.constant 0 : index
    %173 = vector.load %arg5[%c0_114, %c0_115] : memref<32x1xf32, #tpu.memory_space<vmem>>, vector<32x1xf32>
    %174 = vector.broadcast %173 : vector<32x1xf32> to vector<32x256xf32>
    %175 = arith.addf %172, %174 : vector<32x256xf32>
    %cst_116 = arith.constant 0.000000e+00 : f32
    %176 = vector.broadcast %cst_116 : f32 to vector<32x256xf32>
    %177 = arith.cmpf ogt, %175, %176 : vector<32x256xf32>
    %cst_117 = arith.constant 0.000000e+00 : f32
    %178 = vector.broadcast %cst_117 : f32 to vector<32x256xf32>
    %179 = arith.minimumf %175, %178 : vector<32x256xf32>
    %180 = math.exp %179 : vector<32x256xf32>
    %cst_118 = arith.constant 1.000000e+00 : f32
    %181 = vector.broadcast %cst_118 : f32 to vector<32x256xf32>
    %182 = arith.subf %180, %181 : vector<32x256xf32>
    %183 = arith.select %177, %175, %182 : vector<32x256xi1>, vector<32x256xf32>
    %184 = arith.truncf %183 : vector<32x256xf32> to vector<32x256xbf16>
    %c0_119 = arith.constant 0 : index
    %c0_120 = arith.constant 0 : index
    %185 = vector.load %arg12[%c0_119, %c0_120] : memref<128x256xbf16, #tpu.memory_space<vmem>>, vector<32x256xbf16>
    tpu.vector_store %arg12[%c0_119, %c0_120], %184 {strides = array<i32>} : memref<128x256xbf16, #tpu.memory_space<vmem>>, vector<32x256xbf16>,
    %c64_121 = arith.constant 64 : index
    %c0_122 = arith.constant 0 : index
    %186 = vector.load %arg11[%c64_121, %c0_122] : memref<320x256xbf16, #tpu.memory_space<vmem>>, vector<128x256xbf16>
    %c0_123 = arith.constant 0 : index
    %c0_124 = arith.constant 0 : index
    %187 = vector.load %arg4[%c0_123, %c0_124] : memref<32x128xbf16, #tpu.memory_space<vmem>>, vector<32x128xbf16>
    %cst_125 = arith.constant dense<0.000000e+00> : vector<32x256xf32>
    %188 = tpu.matmul %187, %186, %cst_125 {dimension_numbers = #tpu.dot_dimension_numbers<[1], [0], [0], [1], [0, 0, 1, 1], [], []>} : vector<32x128xbf16>, vector<128x256xbf16>, vector<32x256xf32> -> vector<32x256xf32>
    %c0_126 = arith.constant 0 : index
    %c0_127 = arith.constant 0 : index
    %189 = vector.load %arg5[%c0_126, %c0_127] : memref<32x1xf32, #tpu.memory_space<vmem>>, vector<32x1xf32>
    %190 = vector.broadcast %189 : vector<32x1xf32> to vector<32x256xf32>
    %191 = arith.addf %188, %190 : vector<32x256xf32>
    %cst_128 = arith.constant 0.000000e+00 : f32
    %192 = vector.broadcast %cst_128 : f32 to vector<32x256xf32>
    %193 = arith.cmpf ogt, %191, %192 : vector<32x256xf32>
    %cst_129 = arith.constant 0.000000e+00 : f32
    %194 = vector.broadcast %cst_129 : f32 to vector<32x256xf32>
    %195 = arith.minimumf %191, %194 : vector<32x256xf32>
    %196 = math.exp %195 : vector<32x256xf32>
    %cst_130 = arith.constant 1.000000e+00 : f32
    %197 = vector.broadcast %cst_130 : f32 to vector<32x256xf32>
    %198 = arith.subf %196, %197 : vector<32x256xf32>
    %199 = arith.select %193, %191, %198 : vector<32x256xi1>, vector<32x256xf32>
    %200 = arith.truncf %199 : vector<32x256xf32> to vector<32x256xbf16>
    %c32_131 = arith.constant 32 : index
    %c0_132 = arith.constant 0 : index
    %201 = vector.load %arg12[%c32_131, %c0_132] : memref<128x256xbf16, #tpu.memory_space<vmem>>, vector<32x256xbf16>
    tpu.vector_store %arg12[%c32_131, %c0_132], %200 {strides = array<i32>} : memref<128x256xbf16, #tpu.memory_space<vmem>>, vector<32x256xbf16>,
    %c128_133 = arith.constant 128 : index
    %c0_134 = arith.constant 0 : index
    %202 = vector.load %arg11[%c128_133, %c0_134] : memref<320x256xbf16, #tpu.memory_space<vmem>>, vector<128x256xbf16>
    %c0_135 = arith.constant 0 : index
    %c0_136 = arith.constant 0 : index
    %203 = vector.load %arg4[%c0_135, %c0_136] : memref<32x128xbf16, #tpu.memory_space<vmem>>, vector<32x128xbf16>
    %cst_137 = arith.constant dense<0.000000e+00> : vector<32x256xf32>
    %204 = tpu.matmul %203, %202, %cst_137 {dimension_numbers = #tpu.dot_dimension_numbers<[1], [0], [0], [1], [0, 0, 1, 1], [], []>} : vector<32x128xbf16>, vector<128x256xbf16>, vector<32x256xf32> -> vector<32x256xf32>
    %c0_138 = arith.constant 0 : index
    %c0_139 = arith.constant 0 : index
    %205 = vector.load %arg5[%c0_138, %c0_139] : memref<32x1xf32, #tpu.memory_space<vmem>>, vector<32x1xf32>
    %206 = vector.broadcast %205 : vector<32x1xf32> to vector<32x256xf32>
    %207 = arith.addf %204, %206 : vector<32x256xf32>
    %cst_140 = arith.constant 0.000000e+00 : f32
    %208 = vector.broadcast %cst_140 : f32 to vector<32x256xf32>
    %209 = arith.cmpf ogt, %207, %208 : vector<32x256xf32>
    %cst_141 = arith.constant 0.000000e+00 : f32
    %210 = vector.broadcast %cst_141 : f32 to vector<32x256xf32>
    %211 = arith.minimumf %207, %210 : vector<32x256xf32>
    %212 = math.exp %211 : vector<32x256xf32>
    %cst_142 = arith.constant 1.000000e+00 : f32
    %213 = vector.broadcast %cst_142 : f32 to vector<32x256xf32>
    %214 = arith.subf %212, %213 : vector<32x256xf32>
    %215 = arith.select %209, %207, %214 : vector<32x256xi1>, vector<32x256xf32>
    %216 = arith.truncf %215 : vector<32x256xf32> to vector<32x256xbf16>
    %c64_143 = arith.constant 64 : index
    %c0_144 = arith.constant 0 : index
    %217 = vector.load %arg12[%c64_143, %c0_144] : memref<128x256xbf16, #tpu.memory_space<vmem>>, vector<32x256xbf16>
    tpu.vector_store %arg12[%c64_143, %c0_144], %216 {strides = array<i32>} : memref<128x256xbf16, #tpu.memory_space<vmem>>, vector<32x256xbf16>,
    %c192_145 = arith.constant 192 : index
    %c0_146 = arith.constant 0 : index
    %218 = vector.load %arg11[%c192_145, %c0_146] : memref<320x256xbf16, #tpu.memory_space<vmem>>, vector<128x256xbf16>
    %c0_147 = arith.constant 0 : index
    %c0_148 = arith.constant 0 : index
    %219 = vector.load %arg4[%c0_147, %c0_148] : memref<32x128xbf16, #tpu.memory_space<vmem>>, vector<32x128xbf16>
    %cst_149 = arith.constant dense<0.000000e+00> : vector<32x256xf32>
    %220 = tpu.matmul %219, %218, %cst_149 {dimension_numbers = #tpu.dot_dimension_numbers<[1], [0], [0], [1], [0, 0, 1, 1], [], []>} : vector<32x128xbf16>, vector<128x256xbf16>, vector<32x256xf32> -> vector<32x256xf32>
    %c0_150 = arith.constant 0 : index
    %c0_151 = arith.constant 0 : index
    %221 = vector.load %arg5[%c0_150, %c0_151] : memref<32x1xf32, #tpu.memory_space<vmem>>, vector<32x1xf32>
    %222 = vector.broadcast %221 : vector<32x1xf32> to vector<32x256xf32>
    %223 = arith.addf %220, %222 : vector<32x256xf32>
    %cst_152 = arith.constant 0.000000e+00 : f32
    %224 = vector.broadcast %cst_152 : f32 to vector<32x256xf32>
    %225 = arith.cmpf ogt, %223, %224 : vector<32x256xf32>
    %cst_153 = arith.constant 0.000000e+00 : f32
    %226 = vector.broadcast %cst_153 : f32 to vector<32x256xf32>
    %227 = arith.minimumf %223, %226 : vector<32x256xf32>
    %228 = math.exp %227 : vector<32x256xf32>
    %cst_154 = arith.constant 1.000000e+00 : f32
    %229 = vector.broadcast %cst_154 : f32 to vector<32x256xf32>
    %230 = arith.subf %228, %229 : vector<32x256xf32>
    %231 = arith.select %225, %223, %230 : vector<32x256xi1>, vector<32x256xf32>
    %232 = arith.truncf %231 : vector<32x256xf32> to vector<32x256xbf16>
    %c96_155 = arith.constant 96 : index
    %c0_156 = arith.constant 0 : index
    %233 = vector.load %arg12[%c96_155, %c0_156] : memref<128x256xbf16, #tpu.memory_space<vmem>>, vector<32x256xbf16>
    tpu.vector_store %arg12[%c96_155, %c0_156], %232 {strides = array<i32>} : memref<128x256xbf16, #tpu.memory_space<vmem>>, vector<32x256xbf16>,
    %c0_157 = arith.constant 0 : index
    %c0_158 = arith.constant 0 : index
    %234 = vector.load %arg9[%c0_157, %c0_158] : memref<20x1xf32, #tpu.memory_space<vmem>>, vector<20x1xf32>
    %c0_159 = arith.constant 0 : index
    %c0_160 = arith.constant 0 : index
    %235 = vector.load %arg12[%c0_159, %c0_160] : memref<128x256xbf16, #tpu.memory_space<vmem>>, vector<64x256xbf16>
    %c0_161 = arith.constant 0 : index
    %c0_162 = arith.constant 0 : index
    %236 = vector.load %arg6[%c0_161, %c0_162] : memref<10x64xbf16, #tpu.memory_space<vmem>>, vector<10x64xbf16>
    %cst_163 = arith.constant dense<0.000000e+00> : vector<10x256xf32>
    %237 = tpu.matmul %236, %235, %cst_163 {dimension_numbers = #tpu.dot_dimension_numbers<[1], [0], [0], [1], [0, 0, 1, 1], [], []>} : vector<10x64xbf16>, vector<64x256xbf16>, vector<10x256xf32> -> vector<10x256xf32>
    %c0_164 = arith.constant 0 : index
    %c0_165 = arith.constant 0 : index
    %238 = vector.load %arg7[%c0_164, %c0_165] : memref<10x1xf32, #tpu.memory_space<vmem>>, vector<10x1xf32>
    %239 = vector.broadcast %238 : vector<10x1xf32> to vector<10x256xf32>
    %240 = arith.addf %237, %239 : vector<10x256xf32>
    %cst_166 = arith.constant 0.000000e+00 : f32
    %241 = vector.broadcast %cst_166 : f32 to vector<10x256xf32>
    %242 = arith.cmpf ogt, %240, %241 : vector<10x256xf32>
    %cst_167 = arith.constant 0.000000e+00 : f32
    %243 = vector.broadcast %cst_167 : f32 to vector<10x256xf32>
    %244 = arith.minimumf %240, %243 : vector<10x256xf32>
    %245 = math.exp %244 : vector<10x256xf32>
    %cst_168 = arith.constant 1.000000e+00 : f32
    %246 = vector.broadcast %cst_168 : f32 to vector<10x256xf32>
    %247 = arith.subf %245, %246 : vector<10x256xf32>
    %248 = arith.select %242, %240, %247 : vector<10x256xi1>, vector<10x256xf32>
    %c0_169 = arith.constant 0 : index
    %c0_170 = arith.constant 0 : index
    %c0_171 = arith.constant 0 : index
    %249 = vector.load %arg8[%c0_169, %c0_170, %c0_171] : memref<3x20x10xbf16, #tpu.memory_space<vmem>>, vector<1x20x10xbf16>
    %250 = vector.shape_cast %249 : vector<1x20x10xbf16> to vector<20x10xbf16>
    %251 = arith.truncf %248 : vector<10x256xf32> to vector<10x256xbf16>
    %cst_172 = arith.constant dense<0.000000e+00> : vector<20x256xf32>
    %252 = tpu.matmul %250, %251, %cst_172 {dimension_numbers = #tpu.dot_dimension_numbers<[1], [0], [0], [1], [0, 0, 1, 1], [], []>} : vector<20x10xbf16>, vector<10x256xbf16>, vector<20x256xf32> -> vector<20x256xf32>
    %253 = vector.broadcast %234 : vector<20x1xf32> to vector<20x256xf32>
    %254 = arith.addf %253, %252 : vector<20x256xf32>
    %c32_173 = arith.constant 32 : index
    %c0_174 = arith.constant 0 : index
    %255 = vector.load %arg12[%c32_173, %c0_174] : memref<128x256xbf16, #tpu.memory_space<vmem>>, vector<64x256xbf16>
    %c0_175 = arith.constant 0 : index
    %c0_176 = arith.constant 0 : index
    %256 = vector.load %arg6[%c0_175, %c0_176] : memref<10x64xbf16, #tpu.memory_space<vmem>>, vector<10x64xbf16>
    %cst_177 = arith.constant dense<0.000000e+00> : vector<10x256xf32>
    %257 = tpu.matmul %256, %255, %cst_177 {dimension_numbers = #tpu.dot_dimension_numbers<[1], [0], [0], [1], [0, 0, 1, 1], [], []>} : vector<10x64xbf16>, vector<64x256xbf16>, vector<10x256xf32> -> vector<10x256xf32>
    %c0_178 = arith.constant 0 : index
    %c0_179 = arith.constant 0 : index
    %258 = vector.load %arg7[%c0_178, %c0_179] : memref<10x1xf32, #tpu.memory_space<vmem>>, vector<10x1xf32>
    %259 = vector.broadcast %258 : vector<10x1xf32> to vector<10x256xf32>
    %260 = arith.addf %257, %259 : vector<10x256xf32>
    %cst_180 = arith.constant 0.000000e+00 : f32
    %261 = vector.broadcast %cst_180 : f32 to vector<10x256xf32>
    %262 = arith.cmpf ogt, %260, %261 : vector<10x256xf32>
    %cst_181 = arith.constant 0.000000e+00 : f32
    %263 = vector.broadcast %cst_181 : f32 to vector<10x256xf32>
    %264 = arith.minimumf %260, %263 : vector<10x256xf32>
    %265 = math.exp %264 : vector<10x256xf32>
    %cst_182 = arith.constant 1.000000e+00 : f32
    %266 = vector.broadcast %cst_182 : f32 to vector<10x256xf32>
    %267 = arith.subf %265, %266 : vector<10x256xf32>
    %268 = arith.select %262, %260, %267 : vector<10x256xi1>, vector<10x256xf32>
    %c1 = arith.constant 1 : index
    %c0_183 = arith.constant 0 : index
    %c0_184 = arith.constant 0 : index
    %269 = vector.load %arg8[%c1, %c0_183, %c0_184] : memref<3x20x10xbf16, #tpu.memory_space<vmem>>, vector<1x20x10xbf16>
    %270 = vector.shape_cast %269 : vector<1x20x10xbf16> to vector<20x10xbf16>
    %271 = arith.truncf %268 : vector<10x256xf32> to vector<10x256xbf16>
    %cst_185 = arith.constant dense<0.000000e+00> : vector<20x256xf32>
    %272 = tpu.matmul %270, %271, %cst_185 {dimension_numbers = #tpu.dot_dimension_numbers<[1], [0], [0], [1], [0, 0, 1, 1], [], []>} : vector<20x10xbf16>, vector<10x256xbf16>, vector<20x256xf32> -> vector<20x256xf32>
    %273 = arith.addf %254, %272 : vector<20x256xf32>
    %c64_186 = arith.constant 64 : index
    %c0_187 = arith.constant 0 : index
    %274 = vector.load %arg12[%c64_186, %c0_187] : memref<128x256xbf16, #tpu.memory_space<vmem>>, vector<64x256xbf16>
    %c0_188 = arith.constant 0 : index
    %c0_189 = arith.constant 0 : index
    %275 = vector.load %arg6[%c0_188, %c0_189] : memref<10x64xbf16, #tpu.memory_space<vmem>>, vector<10x64xbf16>
    %cst_190 = arith.constant dense<0.000000e+00> : vector<10x256xf32>
    %276 = tpu.matmul %275, %274, %cst_190 {dimension_numbers = #tpu.dot_dimension_numbers<[1], [0], [0], [1], [0, 0, 1, 1], [], []>} : vector<10x64xbf16>, vector<64x256xbf16>, vector<10x256xf32> -> vector<10x256xf32>
    %c0_191 = arith.constant 0 : index
    %c0_192 = arith.constant 0 : index
    %277 = vector.load %arg7[%c0_191, %c0_192] : memref<10x1xf32, #tpu.memory_space<vmem>>, vector<10x1xf32>
    %278 = vector.broadcast %277 : vector<10x1xf32> to vector<10x256xf32>
    %279 = arith.addf %276, %278 : vector<10x256xf32>
    %cst_193 = arith.constant 0.000000e+00 : f32
    %280 = vector.broadcast %cst_193 : f32 to vector<10x256xf32>
    %281 = arith.cmpf ogt, %279, %280 : vector<10x256xf32>
    %cst_194 = arith.constant 0.000000e+00 : f32
    %282 = vector.broadcast %cst_194 : f32 to vector<10x256xf32>
    %283 = arith.minimumf %279, %282 : vector<10x256xf32>
    %284 = math.exp %283 : vector<10x256xf32>
    %cst_195 = arith.constant 1.000000e+00 : f32
    %285 = vector.broadcast %cst_195 : f32 to vector<10x256xf32>
    %286 = arith.subf %284, %285 : vector<10x256xf32>
    %287 = arith.select %281, %279, %286 : vector<10x256xi1>, vector<10x256xf32>
    %c2 = arith.constant 2 : index
    %c0_196 = arith.constant 0 : index
    %c0_197 = arith.constant 0 : index
    %288 = vector.load %arg8[%c2, %c0_196, %c0_197] : memref<3x20x10xbf16, #tpu.memory_space<vmem>>, vector<1x20x10xbf16>
    %289 = vector.shape_cast %288 : vector<1x20x10xbf16> to vector<20x10xbf16>
    %290 = arith.truncf %287 : vector<10x256xf32> to vector<10x256xbf16>
    %cst_198 = arith.constant dense<0.000000e+00> : vector<20x256xf32>
    %291 = tpu.matmul %289, %290, %cst_198 {dimension_numbers = #tpu.dot_dimension_numbers<[1], [0], [0], [1], [0, 0, 1, 1], [], []>} : vector<20x10xbf16>, vector<10x256xbf16>, vector<20x256xf32> -> vector<20x256xf32>
    %292 = arith.addf %273, %291 : vector<20x256xf32>
    %cst_199 = arith.constant 0.000000e+00 : f32
    %293 = vector.broadcast %cst_199 : f32 to vector<20x256xf32>
    %294 = arith.cmpf ogt, %292, %293 : vector<20x256xf32>
    %cst_200 = arith.constant 0.000000e+00 : f32
    %295 = vector.broadcast %cst_200 : f32 to vector<20x256xf32>
    %296 = arith.minimumf %292, %295 : vector<20x256xf32>
    %297 = math.exp %296 : vector<20x256xf32>
    %cst_201 = arith.constant 1.000000e+00 : f32
    %298 = vector.broadcast %cst_201 : f32 to vector<20x256xf32>
    %299 = arith.subf %297, %298 : vector<20x256xf32>
    %300 = arith.select %294, %292, %299 : vector<20x256xi1>, vector<20x256xf32>
    %c0_202 = arith.constant 0 : index
    %c0_203 = arith.constant 0 : index
    %301 = vector.load %arg10[%c0_202, %c0_203] : memref<20x256xf32, #tpu.memory_space<vmem>>, vector<20x256xf32>
    tpu.vector_store %arg10[%c0_202, %c0_203], %300 {strides = array<i32>} : memref<20x256xf32, #tpu.memory_space<vmem>>, vector<20x256xf32>,
    return
  }
  func.func @transform_0(%arg0: i32) -> (i32, i32) {
    %c0_i32 = arith.constant 0 : i32
    %c0_i32_0 = arith.constant 0 : i32
    return %arg0, %c0_i32 : i32, i32
  }
  func.func @transform_1(%arg0: i32) -> (i32, i32) {
    %c0_i32 = arith.constant 0 : i32
    %c0_i32_0 = arith.constant 0 : i32
    %c0_i32_1 = arith.constant 0 : i32
    return %c0_i32, %c0_i32_0 : i32, i32
  }
  func.func @transform_2(%arg0: i32) -> (i32, i32) {
    %c0_i32 = arith.constant 0 : i32
    %c0_i32_0 = arith.constant 0 : i32
    %c0_i32_1 = arith.constant 0 : i32
    return %c0_i32, %c0_i32_0 : i32, i32
  }
  func.func @transform_3(%arg0: i32) -> (i32, i32) {
    %c0_i32 = arith.constant 0 : i32
    %c0_i32_0 = arith.constant 0 : i32
    %c0_i32_1 = arith.constant 0 : i32
    return %c0_i32, %c0_i32_0 : i32, i32
  }
  func.func @transform_4(%arg0: i32) -> (i32, i32) {
    %c0_i32 = arith.constant 0 : i32
    %c0_i32_0 = arith.constant 0 : i32
    %c0_i32_1 = arith.constant 0 : i32
    return %c0_i32, %c0_i32_0 : i32, i32
  }
  func.func @transform_5(%arg0: i32) -> (i32, i32) {
    %c0_i32 = arith.constant 0 : i32
    %c0_i32_0 = arith.constant 0 : i32
    %c0_i32_1 = arith.constant 0 : i32
    return %c0_i32, %c0_i32_0 : i32, i32
  }
  func.func @transform_6(%arg0: i32) -> (i32, i32) {
    %c0_i32 = arith.constant 0 : i32
    %c0_i32_0 = arith.constant 0 : i32
    %c0_i32_1 = arith.constant 0 : i32
    return %c0_i32, %c0_i32_0 : i32, i32
  }
  func.func @transform_7(%arg0: i32) -> (i32, i32, i32) {
    %c0_i32 = arith.constant 0 : i32
    %c0_i32_0 = arith.constant 0 : i32
    %c0_i32_1 = arith.constant 0 : i32
    %c0_i32_2 = arith.constant 0 : i32
    return %c0_i32, %c0_i32_0, %c0_i32_1 : i32, i32, i32
  }
  func.func @transform_8(%arg0: i32) -> (i32, i32) {
    %c0_i32 = arith.constant 0 : i32
    %c0_i32_0 = arith.constant 0 : i32
    %c0_i32_1 = arith.constant 0 : i32
    return %c0_i32, %c0_i32_0 : i32, i32
  }
  func.func @transform_9(%arg0: i32) -> (i32, i32) {
    %c0_i32 = arith.constant 0 : i32
    %c0_i32_0 = arith.constant 0 : i32
    return %c0_i32, %arg0 : i32, i32
  }
}

</mosaic_0001>

<llo_original>
// kernel: state_history_encoder.1
$region0: #{state_history_encoder.1}
  #allocation0 [shape = 'u32[]', space=smem, size = 0x4, offset = 0x4, fixed_abs, tag = 'smem constant byte address 0x4 - core index']
  #allocation1 [shape = 'u32[144,128]{1,0:T(1,128)}', space=vmem, size = 0x12000, scoped, tag = 'internal scratch']
  #allocation2 [shape = 'bf16[320,256]{1,0:T(16,128)(2,1)}', space=vmem, size = 0x28000, scoped, tag = 'scratch operand']
  #allocation3 [shape = 'bf16[128,256]{1,0:T(16,128)(2,1)}', space=vmem, size = 0x10000, scoped, tag = 'scratch operand']
  %s0 = inlined_call_operand.vmem [shape: f32[512,320], index: 0, kind: input, shape index: {}]
  %s1 = inlined_call_operand.vmem [shape: bf16[32,32], index: 1, kind: input, shape index: {}]
  %s2 = inlined_call_operand.vmem [shape: f32[32,1], index: 2, kind: input, shape index: {}]
  %s3 = inlined_call_operand.vmem [shape: bf16[32,128], index: 3, kind: input, shape index: {}]
  %s4 = inlined_call_operand.vmem [shape: f32[32,1], index: 4, kind: input, shape index: {}]
  %s5 = inlined_call_operand.vmem [shape: bf16[10,64], index: 5, kind: input, shape index: {}]
  %s6 = inlined_call_operand.vmem [shape: f32[10,1], index: 6, kind: input, shape index: {}]
  %s7 = inlined_call_operand.vmem [shape: bf16[3,20,10], index: 7, kind: input, shape index: {}]
  %s8 = inlined_call_operand.vmem [shape: f32[20,1], index: 8, kind: input, shape index: {}]
  %s9 = inlined_call_operand.hbm [shape: f32[20,512], index: 9, kind: output, shape index: {}]
  %s10 = sld [smem:[#allocation0]]
  $region69: #{state_history_encoder.1} parent=0
    _
  %s12 = ssub.s32 1, %s10
  %s13 = scalar_select 0, %s12, %s10
  $region1: #{state_history_encoder.1} parent=0
    #allocation4 [shape = 'u8[49152]{0}', space=vmem, size = 0xc000, scoped, tag = 'output window, operand 0']
    #allocation5 [shape = 's32[2]{0}', space=sflag, size = 0x8, scoped, tag = 'scoped memory for state_history_encoder.1']
    %14 = vsyncpa [#allocation5], 0
    %s15 = scalar_lea.sflag [#allocation5], 1
    %16 = vsyncpa %s15, 0
    loop: start=0, step=1, limit=4
    $region2: #{state_history_encoder.1} parent=1 // loop_pre_header
      _
    $region3: #{state_history_encoder.1} parent=1 // loop_header
      %s18 = sphi 0, %s22
      %p19 = scmp.ge.s32.totalorder %s18, 4
      %s28 = sphi 0, %s30
      %s31 = sphi 0, %s28
      %s32 = sphi 0, %s31
      %s48 = sphi 0, %s32
      %s52 = sphi 0, %s52
      %s54 = sphi 0, %s52
      %s55 = sphi 0, %s54
      %s69 = sphi 0, %s55
      %s73 = sphi 0, %s73
      %s75 = sphi 0, %s73
      %s76 = sphi 0, %s75
      %s90 = sphi 0, %s76
      %s94 = sphi 0, %s94
      %s96 = sphi 0, %s94
      %s97 = sphi 0, %s96
      %s111 = sphi 0, %s97
      %s115 = sphi 0, %s115
      %s117 = sphi 0, %s115
      %s118 = sphi 0, %s117
      %s132 = sphi 0, %s118
      %s136 = sphi 0, %s136
      %s138 = sphi 0, %s136
      %s139 = sphi 0, %s138
      %s153 = sphi 0, %s139
      %s157 = sphi 0, %s157
      %s159 = sphi 0, %s157
      %s160 = sphi 0, %s159
      %s174 = sphi 0, %s160
      %s178 = sphi 0, %s178
      %s180 = sphi 0, %s178
      %s181 = sphi 0, %s180
      %s195 = sphi 0, %s181
      %s199 = sphi 0, %s199
      %s201 = sphi 0, %s199
      %s202 = sphi 0, %s201
      %s216 = sphi 0, %s202
      %s222 = sphi 0, %s224
      %s225 = sphi 0, %s222
      %s226 = sphi 0, %s225
      %s242 = sphi 0, %s226
    $region4: #{state_history_encoder.1} parent=1 // loop_header_branch
      %21 = sbr.rel (%p19) target = $region8
    $region5: #{state_history_encoder.1} parent=1 // loop_body
      %s23 = ssub.s32 %s18, 1
      %s24 = ssub.s32 %s18, 2
      %s25 = sadd.s32 %s18, 1
      %s26 = ssub.s32 %s18, %s25
      %p27 = scmp.eq.s32.totalorder %s26, 0
      %s29 = sadd.s32 %s28, 1
      %s30 = scalar_select %p27, %s28, %s29
      %p33 = pneg %p27
      %p34 = scmp.eq.s32.totalorder %s18, 1
      %p35 = por %p33, %p34
      %p36 = scmp.ne.s32.totalorder %s28, %s31
      %p37 = scmp.eq.s32.totalorder %s18, 0
      %p38 = por %p36, %p37
      %p39 = scmp.ne.s32.totalorder %s28, %s31
      %p40 = scmp.eq.s32.totalorder %s23, 1
      %p41 = por %p39, %p40
      %p42 = scmp.ne.s32.totalorder %s31, %s32
      %p43 = scmp.eq.s32.totalorder %s23, 0
      %p44 = por %p42, %p43
      %p45 = scmp.ne.s32.totalorder %s31, %s32
      %p46 = scmp.eq.s32.totalorder %s24, 1
      %p47 = por %p45, %p46
      %p49 = scmp.ne.s32.totalorder %s32, %s48
      %p50 = scmp.eq.s32.totalorder %s24, 0
      %p51 = por %p49, %p50
      %s53 = sadd.s32 %s52, 1
      %p56 = scmp.eq.s32.totalorder %s18, 1
      %p57 = scmp.ne.s32.totalorder %s52, %s54
      %p58 = scmp.eq.s32.totalorder %s18, 0
      %p59 = por %p57, %p58
      %p60 = scmp.ne.s32.totalorder %s52, %s54
      %p61 = scmp.eq.s32.totalorder %s23, 1
      %p62 = por %p60, %p61
      %p63 = scmp.ne.s32.totalorder %s54, %s55
      %p64 = scmp.eq.s32.totalorder %s23, 0
      %p65 = por %p63, %p64
      %p66 = scmp.ne.s32.totalorder %s54, %s55
      %p67 = scmp.eq.s32.totalorder %s24, 1
      %p68 = por %p66, %p67
      %p70 = scmp.ne.s32.totalorder %s55, %s69
      %p71 = scmp.eq.s32.totalorder %s24, 0
      %p72 = por %p70, %p71
      %s74 = sadd.s32 %s73, 1
      %p77 = scmp.eq.s32.totalorder %s18, 1
      %p78 = scmp.ne.s32.totalorder %s73, %s75
      %p79 = scmp.eq.s32.totalorder %s18, 0
      %p80 = por %p78, %p79
      %p81 = scmp.ne.s32.totalorder %s73, %s75
      %p82 = scmp.eq.s32.totalorder %s23, 1
      %p83 = por %p81, %p82
      %p84 = scmp.ne.s32.totalorder %s75, %s76
      %p85 = scmp.eq.s32.totalorder %s23, 0
      %p86 = por %p84, %p85
      %p87 = scmp.ne.s32.totalorder %s75, %s76
      %p88 = scmp.eq.s32.totalorder %s24, 1
      %p89 = por %p87, %p88
      %p91 = scmp.ne.s32.totalorder %s76, %s90
      %p92 = scmp.eq.s32.totalorder %s24, 0
      %p93 = por %p91, %p92
      %s95 = sadd.s32 %s94, 1
      %p98 = scmp.eq.s32.totalorder %s18, 1
      %p99 = scmp.ne.s32.totalorder %s94, %s96
      %p100 = scmp.eq.s32.totalorder %s18, 0
      %p101 = por %p99, %p100
      %p102 = scmp.ne.s32.totalorder %s94, %s96
      %p103 = scmp.eq.s32.totalorder %s23, 1
      %p104 = por %p102, %p103
      %p105 = scmp.ne.s32.totalorder %s96, %s97
      %p106 = scmp.eq.s32.totalorder %s23, 0
      %p107 = por %p105, %p106
      %p108 = scmp.ne.s32.totalorder %s96, %s97
      %p109 = scmp.eq.s32.totalorder %s24, 1
      %p110 = por %p108, %p109
      %p112 = scmp.ne.s32.totalorder %s97, %s111
      %p113 = scmp.eq.s32.totalorder %s24, 0
      %p114 = por %p112, %p113
      %s116 = sadd.s32 %s115, 1
      %p119 = scmp.eq.s32.totalorder %s18, 1
      %p120 = scmp.ne.s32.totalorder %s115, %s117
      %p121 = scmp.eq.s32.totalorder %s18, 0
      %p122 = por %p120, %p121
      %p123 = scmp.ne.s32.totalorder %s115, %s117
      %p124 = scmp.eq.s32.totalorder %s23, 1
      %p125 = por %p123, %p124
      %p126 = scmp.ne.s32.totalorder %s117, %s118
      %p127 = scmp.eq.s32.totalorder %s23, 0
      %p128 = por %p126, %p127
      %p129 = scmp.ne.s32.totalorder %s117, %s118
      %p130 = scmp.eq.s32.totalorder %s24, 1
      %p131 = por %p129, %p130
      %p133 = scmp.ne.s32.totalorder %s118, %s132
      %p134 = scmp.eq.s32.totalorder %s24, 0
      %p135 = por %p133, %p134
      %s137 = sadd.s32 %s136, 1
      %p140 = scmp.eq.s32.totalorder %s18, 1
      %p141 = scmp.ne.s32.totalorder %s136, %s138
      %p142 = scmp.eq.s32.totalorder %s18, 0
      %p143 = por %p141, %p142
      %p144 = scmp.ne.s32.totalorder %s136, %s138
      %p145 = scmp.eq.s32.totalorder %s23, 1
      %p146 = por %p144, %p145
      %p147 = scmp.ne.s32.totalorder %s138, %s139
      %p148 = scmp.eq.s32.totalorder %s23, 0
      %p149 = por %p147, %p148
      %p150 = scmp.ne.s32.totalorder %s138, %s139
      %p151 = scmp.eq.s32.totalorder %s24, 1
      %p152 = por %p150, %p151
      %p154 = scmp.ne.s32.totalorder %s139, %s153
      %p155 = scmp.eq.s32.totalorder %s24, 0
      %p156 = por %p154, %p155
      %s158 = sadd.s32 %s157, 1
      %p161 = scmp.eq.s32.totalorder %s18, 1
      %p162 = scmp.ne.s32.totalorder %s157, %s159
      %p163 = scmp.eq.s32.totalorder %s18, 0
      %p164 = por %p162, %p163
      %p165 = scmp.ne.s32.totalorder %s157, %s159
      %p166 = scmp.eq.s32.totalorder %s23, 1
      %p167 = por %p165, %p166
      %p168 = scmp.ne.s32.totalorder %s159, %s160
      %p169 = scmp.eq.s32.totalorder %s23, 0
      %p170 = por %p168, %p169
      %p171 = scmp.ne.s32.totalorder %s159, %s160
      %p172 = scmp.eq.s32.totalorder %s24, 1
      %p173 = por %p171, %p172
      %p175 = scmp.ne.s32.totalorder %s160, %s174
      %p176 = scmp.eq.s32.totalorder %s24, 0
      %p177 = por %p175, %p176
      %s179 = sadd.s32 %s178, 1
      %p182 = scmp.eq.s32.totalorder %s18, 1
      %p183 = scmp.ne.s32.totalorder %s178, %s180
      %p184 = scmp.eq.s32.totalorder %s18, 0
      %p185 = por %p183, %p184
      %p186 = scmp.ne.s32.totalorder %s178, %s180
      %p187 = scmp.eq.s32.totalorder %s23, 1
      %p188 = por %p186, %p187
      %p189 = scmp.ne.s32.totalorder %s180, %s181
      %p190 = scmp.eq.s32.totalorder %s23, 0
      %p191 = por %p189, %p190
      %p192 = scmp.ne.s32.totalorder %s180, %s181
      %p193 = scmp.eq.s32.totalorder %s24, 1
      %p194 = por %p192, %p193
      %p196 = scmp.ne.s32.totalorder %s181, %s195
      %p197 = scmp.eq.s32.totalorder %s24, 0
      %p198 = por %p196, %p197
      %s200 = sadd.s32 %s199, 1
      %p203 = scmp.eq.s32.totalorder %s18, 1
      %p204 = scmp.ne.s32.totalorder %s199, %s201
      %p205 = scmp.eq.s32.totalorder %s18, 0
      %p206 = por %p204, %p205
      %p207 = scmp.ne.s32.totalorder %s199, %s201
      %p208 = scmp.eq.s32.totalorder %s23, 1
      %p209 = por %p207, %p208
      %p210 = scmp.ne.s32.totalorder %s201, %s202
      %p211 = scmp.eq.s32.totalorder %s23, 0
      %p212 = por %p210, %p211
      %p213 = scmp.ne.s32.totalorder %s201, %s202
      %p214 = scmp.eq.s32.totalorder %s24, 1
      %p215 = por %p213, %p214
      %p217 = scmp.ne.s32.totalorder %s202, %s216
      %p218 = scmp.eq.s32.totalorder %s24, 0
      %p219 = por %p217, %p218
      %s220 = ssub.s32 %s18, %s25
      %p221 = scmp.eq.s32.totalorder %s220, 0
      %s223 = sadd.s32 %s222, 1
      %s224 = scalar_select %p221, %s222, %s223
      %p227 = pneg %p221
      %p228 = scmp.eq.s32.totalorder %s18, 1
      %p229 = por %p227, %p228
      %p230 = scmp.ne.s32.totalorder %s222, %s225
      %p231 = scmp.eq.s32.totalorder %s18, 0
      %p232 = por %p230, %p231
      %p233 = scmp.ne.s32.totalorder %s222, %s225
      %p234 = scmp.eq.s32.totalorder %s23, 1
      %p235 = por %p233, %p234
      %p236 = scmp.ne.s32.totalorder %s225, %s226
      %p237 = scmp.eq.s32.totalorder %s23, 0
      %p238 = por %p236, %p237
      %p239 = scmp.ne.s32.totalorder %s225, %s226
      %p240 = scmp.eq.s32.totalorder %s24, 1
      %p241 = por %p239, %p240
      %p243 = scmp.ne.s32.totalorder %s226, %s242
      %p244 = scmp.eq.s32.totalorder %s24, 0
      %p245 = por %p243, %p244
      %p246 = scmp.le.s32.totalorder 1, %s18
      %p247 = scmp.lt.s32.totalorder %s18, 3
      %p248 = pnand %p246, %p247
      %p249 = pneg %p248
      // Predicated region
      $region9: #{state_history_encoder.1} parent=5 // pred_check
        _
      $region10: #{state_history_encoder.1} parent=5 // pred_check_branch
        %251 = sbr.rel (%p248) target = $region12
      $region11: #{state_history_encoder.1} parent=5 // pred_region
        %s252 = ssub.s32 %s18, 1
        // Predicated region
        $region13: #{state_history_encoder.1} parent=11 // pred_check
          %p253 = pneg %p65
        $region14: #{state_history_encoder.1} parent=11 // pred_check_branch
          %255 = sbr.rel (%p253) target = $region16
        $region15: #{state_history_encoder.1} parent=11 // pred_region
          _
        $region16: #{state_history_encoder.1} parent=11 // pred_fallthru
          _
        // Predicated region
        $region17: #{state_history_encoder.1} parent=11 // pred_check
          %p256 = pneg %p86
        $region18: #{state_history_encoder.1} parent=11 // pred_check_branch
          %258 = sbr.rel (%p256) target = $region20
        $region19: #{state_history_encoder.1} parent=11 // pred_region
          _
        $region20: #{state_history_encoder.1} parent=11 // pred_fallthru
          _
        // Predicated region
        $region21: #{state_history_encoder.1} parent=11 // pred_check
          %p259 = pneg %p107
        $region22: #{state_history_encoder.1} parent=11 // pred_check_branch
          %261 = sbr.rel (%p259) target = $region24
        $region23: #{state_history_encoder.1} parent=11 // pred_region
          _
        $region24: #{state_history_encoder.1} parent=11 // pred_fallthru
          _
        // Predicated region
        $region25: #{state_history_encoder.1} parent=11 // pred_check
          %p262 = pneg %p128
        $region26: #{state_history_encoder.1} parent=11 // pred_check_branch
          %264 = sbr.rel (%p262) target = $region28
        $region27: #{state_history_encoder.1} parent=11 // pred_region
          _
        $region28: #{state_history_encoder.1} parent=11 // pred_fallthru
          _
        // Predicated region
        $region29: #{state_history_encoder.1} parent=11 // pred_check
          %p265 = pneg %p149
        $region30: #{state_history_encoder.1} parent=11 // pred_check_branch
          %267 = sbr.rel (%p265) target = $region32
        $region31: #{state_history_encoder.1} parent=11 // pred_region
          _
        $region32: #{state_history_encoder.1} parent=11 // pred_fallthru
          _
        // Predicated region
        $region33: #{state_history_encoder.1} parent=11 // pred_check
          %p268 = pneg %p170
        $region34: #{state_history_encoder.1} parent=11 // pred_check_branch
          %270 = sbr.rel (%p268) target = $region36
        $region35: #{state_history_encoder.1} parent=11 // pred_region
          _
        $region36: #{state_history_encoder.1} parent=11 // pred_fallthru
          _
        // Predicated region
        $region37: #{state_history_encoder.1} parent=11 // pred_check
          %p271 = pneg %p191
        $region38: #{state_history_encoder.1} parent=11 // pred_check_branch
          %273 = sbr.rel (%p271) target = $region40
        $region39: #{state_history_encoder.1} parent=11 // pred_region
          _
        $region40: #{state_history_encoder.1} parent=11 // pred_fallthru
          _
        // Predicated region
        $region41: #{state_history_encoder.1} parent=11 // pred_check
          %p274 = pneg %p212
        $region42: #{state_history_encoder.1} parent=11 // pred_check_branch
          %276 = sbr.rel (%p274) target = $region44
        $region43: #{state_history_encoder.1} parent=11 // pred_region
          _
        $region44: #{state_history_encoder.1} parent=11 // pred_fallthru
          _
      $region12: #{state_history_encoder.1} parent=5 // pred_fallthru
        _
      %p277 = scmp.lt.s32.totalorder %s18, 2
      // Predicated region
      $region45: #{state_history_encoder.1} parent=5 // pred_check
        %p278 = pneg %p277
      $region46: #{state_history_encoder.1} parent=5 // pred_check_branch
        %280 = sbr.rel (%p278) target = $region48
      $region47: #{state_history_encoder.1} parent=5 // pred_region
        // Predicated region
        $region49: #{state_history_encoder.1} parent=47 // pred_check
          %p281 = pneg %p38
        $region50: #{state_history_encoder.1} parent=47 // pred_check_branch
          %283 = sbr.rel (%p281) target = $region52
        $region51: #{state_history_encoder.1} parent=47 // pred_region
          %s284 = smul.u32 32, %s18
          %p285 = scmp.lt.s32.totalorder %s284, 63
          %s286 = scalar_select %p285, %s284, 63
          %s287 = smul.addr %s286, 3
          %s288 = smul.addr %s287, 8
          %s289 = scalar_lea.vmem %s0, %s288
          %s290 = smul.u32 32, %s18
        $region52: #{state_history_encoder.1} parent=47 // pred_fallthru
          _
      $region48: #{state_history_encoder.1} parent=5 // pred_fallthru
        _
      %p291 = scmp.le.s32.totalorder 1, %s18
      %p292 = scmp.lt.s32.totalorder %s18, 3
      %p293 = pnand %p291, %p292
      %p294 = pneg %p293
      // Predicated region
      $region53: #{state_history_encoder.1} parent=5 // pred_check
        _
      $region54: #{state_history_encoder.1} parent=5 // pred_check_branch
        %296 = sbr.rel (%p293) target = $region56
      $region55: #{state_history_encoder.1} parent=5 // pred_region
        %s297 = ssub.s32 %s18, 1
        %s298 = smul.u32 32, %s23
        %p299 = scmp.lt.s32.totalorder %s298, 63
        %s300 = scalar_select %p299, %s298, 63
        %s301 = smul.addr %s300, 3
        %s302 = smul.addr %s301, 8
        %s303 = scalar_lea.vmem %s0, %s302
        %p304 = pneg %p44
        %p305 = pneg %p41
        %p306 = pneg %p65
        %p307 = pneg %p62
        %p308 = pneg %p86
        %p309 = pneg %p83
        %p310 = pneg %p107
        %p311 = pneg %p104
        %p312 = pneg %p128
        %p313 = pneg %p125
        %p314 = pneg %p149
        %p315 = pneg %p146
        %p316 = pneg %p170
        %p317 = pneg %p167
        %p318 = pneg %p191
        %p319 = pneg %p188
        %p320 = pneg %p212
        %p321 = pneg %p209
        %p322 = pneg %p238
        %p323 = pneg %p235
        %s324 = sand.u32 %s225, 1
        %s325 = scalar_lea.sflag [#allocation5], %s324
        %s326 = sand.u32 %s225, 1
        %s327 = smul.addr %s326, 48
        %s328 = scalar_lea.vmem [#allocation4], %s327
        %s329 = smul.u32 32, %s23
        %p330 = scmp.lt.s32.totalorder %s329, 63
        %s331 = scalar_select %p330, %s329, 63
        %s332 = smul.addr %s331, 3
        %s333 = smul.addr %s332, 8
        %s334 = scalar_lea.vmem %s0, %s333
        %s335 = smul.u32 32, %s23
        %s336 = smul.u32 2, %s23
        %v338 = vld [vmem:[%s334] sm:$0xff]
        %v339 = vld [vmem:[%s334 + $0x18] sm:$0xff]
        %v340 = vld [vmem:[%s334 + $0x30] sm:$0xff]
        %v341 = vld [vmem:[%s334 + $0x48] sm:$0xff]
        %v342 = vld [vmem:[%s334 + $0x60] sm:$0xff]
        %v343 = vld [vmem:[%s334 + $0x78] sm:$0xff]
        %v344 = vld [vmem:[%s334 + $0x90] sm:$0xff]
        %v345 = vld [vmem:[%s334 + $0xa8] sm:$0xff]
        %v346 = vld [vmem:[%s334 + $0xc0] sm:$0xff]
        %v347 = vld [vmem:[%s334 + $0xd8] sm:$0xff]
        %v348 = vld [vmem:[%s334 + $0xf0] sm:$0xff]
        %v349 = vld [vmem:[%s334 + $0x108] sm:$0xff]
        %v350 = vld [vmem:[%s334 + $0x120] sm:$0xff]
        %v351 = vld [vmem:[%s334 + $0x138] sm:$0xff]
        %v352 = vld [vmem:[%s334 + $0x150] sm:$0xff]
        %v353 = vld [vmem:[%s334 + $0x168] sm:$0xff]
        %v354 = vld [vmem:[%s334 + $0x180] sm:$0xff]
        %v355 = vld [vmem:[%s334 + $0x198] sm:$0xff]
        %v356 = vld [vmem:[%s334 + $0x1b0] sm:$0xff]
        %v357 = vld [vmem:[%s334 + $0x1c8] sm:$0xff]
        %v358 = vld [vmem:[%s334 + $0x1e0] sm:$0xff]
        %v359 = vld [vmem:[%s334 + $0x1f8] sm:$0xff]
        %v360 = vld [vmem:[%s334 + $0x210] sm:$0xff]
        %v361 = vld [vmem:[%s334 + $0x228] sm:$0xff]
        %v362 = vld [vmem:[%s334 + $0x240] sm:$0xff]
        %v363 = vld [vmem:[%s334 + $0x258] sm:$0xff]
        %v364 = vld [vmem:[%s334 + $0x270] sm:$0xff]
        %v365 = vld [vmem:[%s334 + $0x288] sm:$0xff]
        %v366 = vld [vmem:[%s334 + $0x2a0] sm:$0xff]
        %v367 = vld [vmem:[%s334 + $0x2b8] sm:$0xff]
        %v368 = vld [vmem:[%s334 + $0x2d0] sm:$0xff]
        %v369 = vld [vmem:[%s334 + $0x2e8] sm:$0xff]
        %v370 = vpack.c.bf16 %v339, %v338
        %v371 = vpack.c.bf16 %v341, %v340
        %v372 = vpack.c.bf16 %v343, %v342
        %v373 = vpack.c.bf16 %v345, %v344
        %v374 = vpack.c.bf16 %v347, %v346
        %v375 = vpack.c.bf16 %v349, %v348
        %v376 = vpack.c.bf16 %v351, %v350
        %v377 = vpack.c.bf16 %v353, %v352
        %v378 = vpack.c.bf16 %v355, %v354
        %v379 = vpack.c.bf16 %v357, %v356
        %v380 = vpack.c.bf16 %v359, %v358
        %v381 = vpack.c.bf16 %v361, %v360
        %v382 = vpack.c.bf16 %v363, %v362
        %v383 = vpack.c.bf16 %v365, %v364
        %v384 = vpack.c.bf16 %v367, %v366
        %v385 = vpack.c.bf16 %v369, %v368
        %v386 = vld [vmem:[%s1] sm:$0xf]
        %v387 = vld [vmem:[%s1 + $0x4] sm:$0xf]
        %v388 = vld [vmem:[%s1 + $0x8] sm:$0xf]
        %v389 = vld [vmem:[%s1 + $0xc] sm:$0xf]
        %v390 = vld [vmem:[%s2] sm:$0xff]
        %v391 = vld [vmem:[%s2 + $0x8] sm:$0xff]
        %v392 = vld [vmem:[%s2 + $0x10] sm:$0xff]
        %v393 = vld [vmem:[%s2 + $0x18] sm:$0xff]
        %395 = vset.pattern.permute.xlu0 0
        %396 = vperm.xlu0 %395, %v390
        %v397 = vpop.permute.xlu0 %396
        %400 = vset.pattern.permute.xlu0 0
        %401 = vperm.xlu0 %400, %v391
        %v402 = vpop.permute.xlu0 %401
        %405 = vset.pattern.permute.xlu0 0
        %406 = vperm.xlu0 %405, %v392
        %v407 = vpop.permute.xlu0 %406
        %410 = vset.pattern.permute.xlu0 0
        %411 = vperm.xlu0 %410, %v393
        %v412 = vpop.permute.xlu0 %411
        %v418 = vunpack.c.l.b16 %v386
        %v419 = vunpack.c.l.b16 %v387
        %v420 = vunpack.c.l.b16 %v388
        %v421 = vunpack.c.l.b16 %v389
        %v422 = vpack.c.b16 %v419, %v418
        %v423 = vpack.c.b16 %v421, %v420
        %vm424 = vcmask 261120
        %v426 = vsel %vm424, %v422, 0
        %v429 = vsel %vm424, %v423, 0
        %v432 = vsel %vm424, %v370, 0
        %v435 = vsel %vm424, %v371, 0
        %v438 = vsel %vm424, %v372, 0
        %v441 = vsel %vm424, %v373, 0
        %v444 = vsel %vm424, %v374, 0
        %v447 = vsel %vm424, %v375, 0
        %v450 = vsel %vm424, %v376, 0
        %v453 = vsel %vm424, %v377, 0
        %v456 = vsel %vm424, %v378, 0
        %v459 = vsel %vm424, %v379, 0
        %v462 = vsel %vm424, %v380, 0
        %v465 = vsel %vm424, %v381, 0
        %v468 = vsel %vm424, %v382, 0
        %v471 = vsel %vm424, %v383, 0
        %v474 = vsel %vm424, %v384, 0
        %v477 = vsel %vm424, %v385, 0
        %479 = vmatprep.subr.bf16.mxu0 0
        %480 = vmatpush1.bf16.xpose.msra.mxu0 %v432
        %481 = vmatprep.subr.bf16.mxu0 0
        %482 = vmatpush1.bf16.xpose.msra.mxu0 %v435
        %483 = vmatprep.subr.bf16.mxu0 0
        %484 = vmatpush1.bf16.xpose.msra.mxu0 %v438
        %485 = vmatprep.subr.bf16.mxu0 0
        %486 = vmatpush1.bf16.xpose.msra.mxu0 %v441
        %487 = vmatprep.subr.bf16.mxu0 0
        %488 = vmatpush1.bf16.xpose.msra.mxu0 %v444
        %489 = vmatprep.subr.bf16.mxu0 0
        %490 = vmatpush1.bf16.xpose.msra.mxu0 %v447
        %491 = vmatprep.subr.bf16.mxu0 0
        %492 = vmatpush1.bf16.xpose.msra.mxu0 %v450
        %493 = vmatprep.subr.bf16.mxu0 0
        %494 = vmatpush1.bf16.xpose.msra.mxu0 %v453
        %495 = vmatprep.subr.bf16.mxu0 0
        %496 = vmatpush1.bf16.xpose.msra.mxu0 %v456
        %497 = vmatprep.subr.bf16.mxu0 0
        %498 = vmatpush1.bf16.xpose.msra.mxu0 %v459
        %499 = vmatprep.subr.bf16.mxu0 0
        %500 = vmatpush1.bf16.xpose.msra.mxu0 %v462
        %501 = vmatprep.subr.bf16.mxu0 0
        %502 = vmatpush1.bf16.xpose.msra.mxu0 %v465
        %503 = vmatprep.subr.bf16.mxu0 0
        %504 = vmatpush1.bf16.xpose.msra.mxu0 %v468
        %505 = vmatprep.subr.bf16.mxu0 0
        %506 = vmatpush1.bf16.xpose.msra.mxu0 %v471
        %507 = vmatprep.subr.bf16.mxu0 0
        %508 = vmatpush1.bf16.xpose.msra.mxu0 %v474
        %509 = vmatprep.subr.bf16.mxu0 0
        %510 = vmatpush1.bf16.xpose.msra.mxu0 %v477
        %511 = vmatprep.mubr.bf16.mxu0 0
        %512 = vmatmul.mubr.bf16.gmra.mrb[0].mxu0 %v426
        %v513 = vpop.f32.mrb[0].mxu0
        %v514 = vadd.f32 %v397, %v513
        %v515 = vpop.f32.mrb[0].mxu0
        %v516 = vadd.f32 %v397, %v515
        %v517 = vpop.f32.mrb[0].mxu0
        %v518 = vadd.f32 %v402, %v517
        %v519 = vpop.f32.mrb[0].mxu0
        %v520 = vadd.f32 %v402, %v519
        %521 = vmatprep.mubr.bf16.mxu0 0
        %522 = vmatmul.mubr.bf16.gmra.mrb[0].mxu0 %v429
        %v523 = vpop.f32.mrb[0].mxu0
        %v524 = vadd.f32 %v407, %v523
        %v525 = vpop.f32.mrb[0].mxu0
        %v526 = vadd.f32 %v407, %v525
        %v527 = vpop.f32.mrb[0].mxu0
        %v528 = vadd.f32 %v412, %v527
        %v529 = vpop.f32.mrb[0].mxu0
        %v530 = vadd.f32 %v412, %v529
        %531 = vdwg.mxu0
        %vm532 = vcmp.gt.f32.partialorder %v514, 0.0
        %vm533 = vcmp.gt.f32.partialorder %v516, 0.0
        %vm534 = vcmp.gt.f32.partialorder %v518, 0.0
        %vm535 = vcmp.gt.f32.partialorder %v520, 0.0
        %vm536 = vcmp.gt.f32.partialorder %v524, 0.0
        %vm537 = vcmp.gt.f32.partialorder %v526, 0.0
        %vm538 = vcmp.gt.f32.partialorder %v528, 0.0
        %vm539 = vcmp.gt.f32.partialorder %v530, 0.0
        %v540 = vmin.f32 %v514, 0.0
        %v541 = vmin.f32 %v516, 0.0
        %v542 = vmin.f32 %v518, 0.0
        %v543 = vmin.f32 %v520, 0.0
        %v544 = vmin.f32 %v524, 0.0
        %v545 = vmin.f32 %v526, 0.0
        %v546 = vmin.f32 %v528, 0.0
        %v547 = vmin.f32 %v530, 0.0
        %v548 = vmul.f32 %v540, 1.442695
        %v549 = vpow.pop %v548
        %v550 = vmul.f32 %v541, 1.442695
        %v551 = vpow.pop %v550
        %v552 = vmul.f32 %v542, 1.442695
        %v553 = vpow.pop %v552
        %v554 = vmul.f32 %v543, 1.442695
        %v555 = vpow.pop %v554
        %v556 = vmul.f32 %v544, 1.442695
        %v557 = vpow.pop %v556
        %v558 = vmul.f32 %v545, 1.442695
        %v559 = vpow.pop %v558
        %v560 = vmul.f32 %v546, 1.442695
        %v561 = vpow.pop %v560
        %v562 = vmul.f32 %v547, 1.442695
        %v563 = vpow.pop %v562
        %v564 = vsub.f32 %v549, 1.0
        %v565 = vsub.f32 %v551, 1.0
        %v566 = vsub.f32 %v553, 1.0
        %v567 = vsub.f32 %v555, 1.0
        %v568 = vsub.f32 %v557, 1.0
        %v569 = vsub.f32 %v559, 1.0
        %v570 = vsub.f32 %v561, 1.0
        %v571 = vsub.f32 %v563, 1.0
        %v572 = vsel %vm532, %v514, %v564
        %v573 = vsel %vm533, %v516, %v565
        %v574 = vsel %vm534, %v518, %v566
        %v575 = vsel %vm535, %v520, %v567
        %v576 = vsel %vm536, %v524, %v568
        %v577 = vsel %vm537, %v526, %v569
        %v578 = vsel %vm538, %v528, %v570
        %v579 = vsel %vm539, %v530, %v571
        %v580 = vpack.c.bf16 %v574, %v572
        %v581 = vpack.c.bf16 %v575, %v573
        %v582 = vpack.c.bf16 %v578, %v576
        %v583 = vpack.c.bf16 %v579, %v577
        %584 = vst [vmem:[#allocation2] sm:$0xff] %v580
        %585 = vst [vmem:[#allocation2 + $0x8] sm:$0xff] %v581
        %586 = vst [vmem:[#allocation2 + $0x10] sm:$0xff] %v582
        %587 = vst [vmem:[#allocation2 + $0x18] sm:$0xff] %v583
        %v588 = vld [vmem:[%s334] sm:$0xff]
        %v589 = vld [vmem:[%s334 + $0x18] sm:$0xff]
        %v590 = vld [vmem:[%s334 + $0x30] sm:$0xff]
        %v591 = vld [vmem:[%s334 + $0x48] sm:$0xff]
        %v592 = vld [vmem:[%s334 + $0x60] sm:$0xff]
        %v593 = vld [vmem:[%s334 + $0x78] sm:$0xff]
        %v594 = vld [vmem:[%s334 + $0x90] sm:$0xff]
        %v595 = vld [vmem:[%s334 + $0xa8] sm:$0xff]
        %v596 = vld [vmem:[%s334 + $0xc0] sm:$0xff]
        %v597 = vld [vmem:[%s334 + $0xd8] sm:$0xff]
        %v598 = vld [vmem:[%s334 + $0xf0] sm:$0xff]
        %v599 = vld [vmem:[%s334 + $0x108] sm:$0xff]
        %v600 = vld [vmem:[%s334 + $0x120] sm:$0xff]
        %v601 = vld [vmem:[%s334 + $0x138] sm:$0xff]
        %v602 = vld [vmem:[%s334 + $0x150] sm:$0xff]
        %v603 = vld [vmem:[%s334 + $0x168] sm:$0xff]
        %v604 = vld [vmem:[%s334 + $0x180] sm:$0xff]
        %v605 = vld [vmem:[%s334 + $0x198] sm:$0xff]
        %v606 = vld [vmem:[%s334 + $0x1b0] sm:$0xff]
        %v607 = vld [vmem:[%s334 + $0x1c8] sm:$0xff]
        %v608 = vld [vmem:[%s334 + $0x1e0] sm:$0xff]
        %v609 = vld [vmem:[%s334 + $0x1f8] sm:$0xff]
        %v610 = vld [vmem:[%s334 + $0x210] sm:$0xff]
        %v611 = vld [vmem:[%s334 + $0x228] sm:$0xff]
        %v612 = vld [vmem:[%s334 + $0x240] sm:$0xff]
        %v613 = vld [vmem:[%s334 + $0x258] sm:$0xff]
        %v614 = vld [vmem:[%s334 + $0x270] sm:$0xff]
        %v615 = vld [vmem:[%s334 + $0x288] sm:$0xff]
        %v616 = vld [vmem:[%s334 + $0x2a0] sm:$0xff]
        %v617 = vld [vmem:[%s334 + $0x2b8] sm:$0xff]
        %v618 = vld [vmem:[%s334 + $0x2d0] sm:$0xff]
        %v619 = vld [vmem:[%s334 + $0x2e8] sm:$0xff]
        %v620 = vpack.c.bf16 %v589, %v588
        %v621 = vpack.c.bf16 %v591, %v590
        %v622 = vpack.c.bf16 %v593, %v592
        %v623 = vpack.c.bf16 %v595, %v594
        %v624 = vpack.c.bf16 %v597, %v596
        %v625 = vpack.c.bf16 %v599, %v598
        %v626 = vpack.c.bf16 %v601, %v600
        %v627 = vpack.c.bf16 %v603, %v602
        %v628 = vpack.c.bf16 %v605, %v604
        %v629 = vpack.c.bf16 %v607, %v606
        %v630 = vpack.c.bf16 %v609, %v608
        %v631 = vpack.c.bf16 %v611, %v610
        %v632 = vpack.c.bf16 %v613, %v612
        %v633 = vpack.c.bf16 %v615, %v614
        %v634 = vpack.c.bf16 %v617, %v616
        %v635 = vpack.c.bf16 %v619, %v618
        %v636 = vld [vmem:[%s1] sm:$0xf]
        %v637 = vld [vmem:[%s1 + $0x4] sm:$0xf]
        %v638 = vld [vmem:[%s1 + $0x8] sm:$0xf]
        %v639 = vld [vmem:[%s1 + $0xc] sm:$0xf]
        %v640 = vld [vmem:[%s2] sm:$0xff]
        %v641 = vld [vmem:[%s2 + $0x8] sm:$0xff]
        %v642 = vld [vmem:[%s2 + $0x10] sm:$0xff]
        %v643 = vld [vmem:[%s2 + $0x18] sm:$0xff]
        %645 = vset.pattern.permute.xlu0 0
        %646 = vperm.xlu0 %645, %v640
        %v647 = vpop.permute.xlu0 %646
        %650 = vset.pattern.permute.xlu0 0
        %651 = vperm.xlu0 %650, %v641
        %v652 = vpop.permute.xlu0 %651
        %655 = vset.pattern.permute.xlu0 0
        %656 = vperm.xlu0 %655, %v642
        %v657 = vpop.permute.xlu0 %656
        %660 = vset.pattern.permute.xlu0 0
        %661 = vperm.xlu0 %660, %v643
        %v662 = vpop.permute.xlu0 %661
        %v668 = vunpack.c.l.b16 %v636
        %v669 = vunpack.c.l.b16 %v637
        %v670 = vunpack.c.l.b16 %v638
        %v671 = vunpack.c.l.b16 %v639
        %v672 = vpack.c.b16 %v669, %v668
        %v673 = vpack.c.b16 %v671, %v670
        %690 = vrot.lane.b32.xlu0 %v620, 96
        %v691 = vpop.permute.xlu0 %690
        %692 = vrot.lane.b32.xlu0 %v621, 96
        %v693 = vpop.permute.xlu0 %692
        %694 = vrot.lane.b32.xlu0 %v622, 96
        %v695 = vpop.permute.xlu0 %694
        %696 = vrot.lane.b32.xlu0 %v623, 96
        %v697 = vpop.permute.xlu0 %696
        %698 = vrot.lane.b32.xlu0 %v624, 96
        %v699 = vpop.permute.xlu0 %698
        %700 = vrot.lane.b32.xlu0 %v625, 96
        %v701 = vpop.permute.xlu0 %700
        %702 = vrot.lane.b32.xlu0 %v626, 96
        %v703 = vpop.permute.xlu0 %702
        %704 = vrot.lane.b32.xlu0 %v627, 96
        %v705 = vpop.permute.xlu0 %704
        %706 = vrot.lane.b32.xlu0 %v628, 96
        %v707 = vpop.permute.xlu0 %706
        %708 = vrot.lane.b32.xlu0 %v629, 96
        %v709 = vpop.permute.xlu0 %708
        %710 = vrot.lane.b32.xlu0 %v630, 96
        %v711 = vpop.permute.xlu0 %710
        %712 = vrot.lane.b32.xlu0 %v631, 96
        %v713 = vpop.permute.xlu0 %712
        %714 = vrot.lane.b32.xlu0 %v632, 96
        %v715 = vpop.permute.xlu0 %714
        %716 = vrot.lane.b32.xlu0 %v633, 96
        %v717 = vpop.permute.xlu0 %716
        %718 = vrot.lane.b32.xlu0 %v634, 96
        %v719 = vpop.permute.xlu0 %718
        %720 = vrot.lane.b32.xlu0 %v635, 96
        %v721 = vpop.permute.xlu0 %720
        %v723 = vsel %vm424, %v672, 0
        %v726 = vsel %vm424, %v673, 0
        %v729 = vsel %vm424, %v691, 0
        %v732 = vsel %vm424, %v693, 0
        %v735 = vsel %vm424, %v695, 0
        %v738 = vsel %vm424, %v697, 0
        %v741 = vsel %vm424, %v699, 0
        %v744 = vsel %vm424, %v701, 0
        %v747 = vsel %vm424, %v703, 0
        %v750 = vsel %vm424, %v705, 0
        %v753 = vsel %vm424, %v707, 0
        %v756 = vsel %vm424, %v709, 0
        %v759 = vsel %vm424, %v711, 0
        %v762 = vsel %vm424, %v713, 0
        %v765 = vsel %vm424, %v715, 0
        %v768 = vsel %vm424, %v717, 0
        %v771 = vsel %vm424, %v719, 0
        %v774 = vsel %vm424, %v721, 0
        %776 = vmatprep.subr.bf16.mxu0 0
        %777 = vmatpush1.bf16.xpose.msra.mxu0 %v729
        %778 = vmatprep.subr.bf16.mxu0 0
        %779 = vmatpush1.bf16.xpose.msra.mxu0 %v732
        %780 = vmatprep.subr.bf16.mxu0 0
        %781 = vmatpush1.bf16.xpose.msra.mxu0 %v735
        %782 = vmatprep.subr.bf16.mxu0 0
        %783 = vmatpush1.bf16.xpose.msra.mxu0 %v738
        %784 = vmatprep.subr.bf16.mxu0 0
        %785 = vmatpush1.bf16.xpose.msra.mxu0 %v741
        %786 = vmatprep.subr.bf16.mxu0 0
        %787 = vmatpush1.bf16.xpose.msra.mxu0 %v744
        %788 = vmatprep.subr.bf16.mxu0 0
        %789 = vmatpush1.bf16.xpose.msra.mxu0 %v747
        %790 = vmatprep.subr.bf16.mxu0 0
        %791 = vmatpush1.bf16.xpose.msra.mxu0 %v750
        %792 = vmatprep.subr.bf16.mxu0 0
        %793 = vmatpush1.bf16.xpose.msra.mxu0 %v753
        %794 = vmatprep.subr.bf16.mxu0 0
        %795 = vmatpush1.bf16.xpose.msra.mxu0 %v756
        %796 = vmatprep.subr.bf16.mxu0 0
        %797 = vmatpush1.bf16.xpose.msra.mxu0 %v759
        %798 = vmatprep.subr.bf16.mxu0 0
        %799 = vmatpush1.bf16.xpose.msra.mxu0 %v762
        %800 = vmatprep.subr.bf16.mxu0 0
        %801 = vmatpush1.bf16.xpose.msra.mxu0 %v765
        %802 = vmatprep.subr.bf16.mxu0 0
        %803 = vmatpush1.bf16.xpose.msra.mxu0 %v768
        %804 = vmatprep.subr.bf16.mxu0 0
        %805 = vmatpush1.bf16.xpose.msra.mxu0 %v771
        %806 = vmatprep.subr.bf16.mxu0 0
        %807 = vmatpush1.bf16.xpose.msra.mxu0 %v774
        %808 = vmatprep.mubr.bf16.mxu0 0
        %809 = vmatmul.mubr.bf16.gmra.mrb[0].mxu0 %v723
        %v810 = vpop.f32.mrb[0].mxu0
        %v811 = vadd.f32 %v647, %v810
        %v812 = vpop.f32.mrb[0].mxu0
        %v813 = vadd.f32 %v647, %v812
        %v814 = vpop.f32.mrb[0].mxu0
        %v815 = vadd.f32 %v652, %v814
        %v816 = vpop.f32.mrb[0].mxu0
        %v817 = vadd.f32 %v652, %v816
        %818 = vmatprep.mubr.bf16.mxu0 0
        %819 = vmatmul.mubr.bf16.gmra.mrb[0].mxu0 %v726
        %v820 = vpop.f32.mrb[0].mxu0
        %v821 = vadd.f32 %v657, %v820
        %v822 = vpop.f32.mrb[0].mxu0
        %v823 = vadd.f32 %v657, %v822
        %v824 = vpop.f32.mrb[0].mxu0
        %v825 = vadd.f32 %v662, %v824
        %v826 = vpop.f32.mrb[0].mxu0
        %v827 = vadd.f32 %v662, %v826
        %828 = vdwg.mxu0
        %vm829 = vcmp.gt.f32.partialorder %v811, 0.0
        %vm830 = vcmp.gt.f32.partialorder %v813, 0.0
        %vm831 = vcmp.gt.f32.partialorder %v815, 0.0
        %vm832 = vcmp.gt.f32.partialorder %v817, 0.0
        %vm833 = vcmp.gt.f32.partialorder %v821, 0.0
        %vm834 = vcmp.gt.f32.partialorder %v823, 0.0
        %vm835 = vcmp.gt.f32.partialorder %v825, 0.0
        %vm836 = vcmp.gt.f32.partialorder %v827, 0.0
        %v837 = vmin.f32 %v811, 0.0
        %v838 = vmin.f32 %v813, 0.0
        %v839 = vmin.f32 %v815, 0.0
        %v840 = vmin.f32 %v817, 0.0
        %v841 = vmin.f32 %v821, 0.0
        %v842 = vmin.f32 %v823, 0.0
        %v843 = vmin.f32 %v825, 0.0
        %v844 = vmin.f32 %v827, 0.0
        %v845 = vmul.f32 %v837, 1.442695
        %v846 = vpow.pop %v845
        %v847 = vmul.f32 %v838, 1.442695
        %v848 = vpow.pop %v847
        %v849 = vmul.f32 %v839, 1.442695
        %v850 = vpow.pop %v849
        %v851 = vmul.f32 %v840, 1.442695
        %v852 = vpow.pop %v851
        %v853 = vmul.f32 %v841, 1.442695
        %v854 = vpow.pop %v853
        %v855 = vmul.f32 %v842, 1.442695
        %v856 = vpow.pop %v855
        %v857 = vmul.f32 %v843, 1.442695
        %v858 = vpow.pop %v857
        %v859 = vmul.f32 %v844, 1.442695
        %v860 = vpow.pop %v859
        %v861 = vsub.f32 %v846, 1.0
        %v862 = vsub.f32 %v848, 1.0
        %v863 = vsub.f32 %v850, 1.0
        %v864 = vsub.f32 %v852, 1.0
        %v865 = vsub.f32 %v854, 1.0
        %v866 = vsub.f32 %v856, 1.0
        %v867 = vsub.f32 %v858, 1.0
        %v868 = vsub.f32 %v860, 1.0
        %v869 = vsel %vm829, %v811, %v861
        %v870 = vsel %vm830, %v813, %v862
        %v871 = vsel %vm831, %v815, %v863
        %v872 = vsel %vm832, %v817, %v864
        %v873 = vsel %vm833, %v821, %v865
        %v874 = vsel %vm834, %v823, %v866
        %v875 = vsel %vm835, %v825, %v867
        %v876 = vsel %vm836, %v827, %v868
        %v877 = vpack.c.bf16 %v871, %v869
        %v878 = vpack.c.bf16 %v872, %v870
        %v879 = vpack.c.bf16 %v875, %v873
        %v880 = vpack.c.bf16 %v876, %v874
        %881 = vst [vmem:[#allocation2 + $0x20] sm:$0xff] %v877
        %882 = vst [vmem:[#allocation2 + $0x28] sm:$0xff] %v878
        %883 = vst [vmem:[#allocation2 + $0x30] sm:$0xff] %v879
        %884 = vst [vmem:[#allocation2 + $0x38] sm:$0xff] %v880
        %v885 = vld [vmem:[%s334] sm:$0xff]
        %v886 = vld [vmem:[%s334 + $0x18] sm:$0xff]
        %v887 = vld [vmem:[%s334 + $0x30] sm:$0xff]
        %v888 = vld [vmem:[%s334 + $0x48] sm:$0xff]
        %v889 = vld [vmem:[%s334 + $0x60] sm:$0xff]
        %v890 = vld [vmem:[%s334 + $0x78] sm:$0xff]
        %v891 = vld [vmem:[%s334 + $0x90] sm:$0xff]
        %v892 = vld [vmem:[%s334 + $0xa8] sm:$0xff]
        %v893 = vld [vmem:[%s334 + $0xc0] sm:$0xff]
        %v894 = vld [vmem:[%s334 + $0xd8] sm:$0xff]
        %v895 = vld [vmem:[%s334 + $0xf0] sm:$0xff]
        %v896 = vld [vmem:[%s334 + $0x108] sm:$0xff]
        %v897 = vld [vmem:[%s334 + $0x120] sm:$0xff]
        %v898 = vld [vmem:[%s334 + $0x138] sm:$0xff]
        %v899 = vld [vmem:[%s334 + $0x150] sm:$0xff]
        %v900 = vld [vmem:[%s334 + $0x168] sm:$0xff]
        %v901 = vld [vmem:[%s334 + $0x180] sm:$0xff]
        %v902 = vld [vmem:[%s334 + $0x198] sm:$0xff]
        %v903 = vld [vmem:[%s334 + $0x1b0] sm:$0xff]
        %v904 = vld [vmem:[%s334 + $0x1c8] sm:$0xff]
        %v905 = vld [vmem:[%s334 + $0x1e0] sm:$0xff]
        %v906 = vld [vmem:[%s334 + $0x1f8] sm:$0xff]
        %v907 = vld [vmem:[%s334 + $0x210] sm:$0xff]
        %v908 = vld [vmem:[%s334 + $0x228] sm:$0xff]
        %v909 = vld [vmem:[%s334 + $0x240] sm:$0xff]
        %v910 = vld [vmem:[%s334 + $0x258] sm:$0xff]
        %v911 = vld [vmem:[%s334 + $0x270] sm:$0xff]
        %v912 = vld [vmem:[%s334 + $0x288] sm:$0xff]
        %v913 = vld [vmem:[%s334 + $0x2a0] sm:$0xff]
        %v914 = vld [vmem:[%s334 + $0x2b8] sm:$0xff]
        %v915 = vld [vmem:[%s334 + $0x2d0] sm:$0xff]
        %v916 = vld [vmem:[%s334 + $0x2e8] sm:$0xff]
        %v917 = vpack.c.bf16 %v886, %v885
        %v918 = vpack.c.bf16 %v888, %v887
        %v919 = vpack.c.bf16 %v890, %v889
        %v920 = vpack.c.bf16 %v892, %v891
        %v921 = vpack.c.bf16 %v894, %v893
        %v922 = vpack.c.bf16 %v896, %v895
        %v923 = vpack.c.bf16 %v898, %v897
        %v924 = vpack.c.bf16 %v900, %v899
        %v925 = vpack.c.bf16 %v902, %v901
        %v926 = vpack.c.bf16 %v904, %v903
        %v927 = vpack.c.bf16 %v906, %v905
        %v928 = vpack.c.bf16 %v908, %v907
        %v929 = vpack.c.bf16 %v910, %v909
        %v930 = vpack.c.bf16 %v912, %v911
        %v931 = vpack.c.bf16 %v914, %v913
        %v932 = vpack.c.bf16 %v916, %v915
        %v933 = vld [vmem:[%s1] sm:$0xf]
        %v934 = vld [vmem:[%s1 + $0x4] sm:$0xf]
        %v935 = vld [vmem:[%s1 + $0x8] sm:$0xf]
        %v936 = vld [vmem:[%s1 + $0xc] sm:$0xf]
        %v937 = vld [vmem:[%s2] sm:$0xff]
        %v938 = vld [vmem:[%s2 + $0x8] sm:$0xff]
        %v939 = vld [vmem:[%s2 + $0x10] sm:$0xff]
        %v940 = vld [vmem:[%s2 + $0x18] sm:$0xff]
        %942 = vset.pattern.permute.xlu0 0
        %943 = vperm.xlu0 %942, %v937
        %v944 = vpop.permute.xlu0 %943
        %947 = vset.pattern.permute.xlu0 0
        %948 = vperm.xlu0 %947, %v938
        %v949 = vpop.permute.xlu0 %948
        %952 = vset.pattern.permute.xlu0 0
        %953 = vperm.xlu0 %952, %v939
        %v954 = vpop.permute.xlu0 %953
        %957 = vset.pattern.permute.xlu0 0
        %958 = vperm.xlu0 %957, %v940
        %v959 = vpop.permute.xlu0 %958
        %v965 = vunpack.c.l.b16 %v933
        %v966 = vunpack.c.l.b16 %v934
        %v967 = vunpack.c.l.b16 %v935
        %v968 = vunpack.c.l.b16 %v936
        %v969 = vpack.c.b16 %v966, %v965
        %v970 = vpack.c.b16 %v968, %v967
        %987 = vrot.lane.b32.xlu0 %v917, 64
        %v988 = vpop.permute.xlu0 %987
        %989 = vrot.lane.b32.xlu0 %v918, 64
        %v990 = vpop.permute.xlu0 %989
        %991 = vrot.lane.b32.xlu0 %v919, 64
        %v992 = vpop.permute.xlu0 %991
        %993 = vrot.lane.b32.xlu0 %v920, 64
        %v994 = vpop.permute.xlu0 %993
        %995 = vrot.lane.b32.xlu0 %v921, 64
        %v996 = vpop.permute.xlu0 %995
        %997 = vrot.lane.b32.xlu0 %v922, 64
        %v998 = vpop.permute.xlu0 %997
        %999 = vrot.lane.b32.xlu0 %v923, 64
        %v1000 = vpop.permute.xlu0 %999
        %1001 = vrot.lane.b32.xlu0 %v924, 64
        %v1002 = vpop.permute.xlu0 %1001
        %1003 = vrot.lane.b32.xlu0 %v925, 64
        %v1004 = vpop.permute.xlu0 %1003
        %1005 = vrot.lane.b32.xlu0 %v926, 64
        %v1006 = vpop.permute.xlu0 %1005
        %1007 = vrot.lane.b32.xlu0 %v927, 64
        %v1008 = vpop.permute.xlu0 %1007
        %1009 = vrot.lane.b32.xlu0 %v928, 64
        %v1010 = vpop.permute.xlu0 %1009
        %1011 = vrot.lane.b32.xlu0 %v929, 64
        %v1012 = vpop.permute.xlu0 %1011
        %1013 = vrot.lane.b32.xlu0 %v930, 64
        %v1014 = vpop.permute.xlu0 %1013
        %1015 = vrot.lane.b32.xlu0 %v931, 64
        %v1016 = vpop.permute.xlu0 %1015
        %1017 = vrot.lane.b32.xlu0 %v932, 64
        %v1018 = vpop.permute.xlu0 %1017
        %v1020 = vsel %vm424, %v969, 0
        %v1023 = vsel %vm424, %v970, 0
        %v1026 = vsel %vm424, %v988, 0
        %v1029 = vsel %vm424, %v990, 0
        %v1032 = vsel %vm424, %v992, 0
        %v1035 = vsel %vm424, %v994, 0
        %v1038 = vsel %vm424, %v996, 0
        %v1041 = vsel %vm424, %v998, 0
        %v1044 = vsel %vm424, %v1000, 0
        %v1047 = vsel %vm424, %v1002, 0
        %v1050 = vsel %vm424, %v1004, 0
        %v1053 = vsel %vm424, %v1006, 0
        %v1056 = vsel %vm424, %v1008, 0
        %v1059 = vsel %vm424, %v1010, 0
        %v1062 = vsel %vm424, %v1012, 0
        %v1065 = vsel %vm424, %v1014, 0
        %v1068 = vsel %vm424, %v1016, 0
        %v1071 = vsel %vm424, %v1018, 0
        %1073 = vmatprep.subr.bf16.mxu0 0
        %1074 = vmatpush1.bf16.xpose.msra.mxu0 %v1026
        %1075 = vmatprep.subr.bf16.mxu0 0
        %1076 = vmatpush1.bf16.xpose.msra.mxu0 %v1029
        %1077 = vmatprep.subr.bf16.mxu0 0
        %1078 = vmatpush1.bf16.xpose.msra.mxu0 %v1032
        %1079 = vmatprep.subr.bf16.mxu0 0
        %1080 = vmatpush1.bf16.xpose.msra.mxu0 %v1035
        %1081 = vmatprep.subr.bf16.mxu0 0
        %1082 = vmatpush1.bf16.xpose.msra.mxu0 %v1038
        %1083 = vmatprep.subr.bf16.mxu0 0
        %1084 = vmatpush1.bf16.xpose.msra.mxu0 %v1041
        %1085 = vmatprep.subr.bf16.mxu0 0
        %1086 = vmatpush1.bf16.xpose.msra.mxu0 %v1044
        %1087 = vmatprep.subr.bf16.mxu0 0
        %1088 = vmatpush1.bf16.xpose.msra.mxu0 %v1047
        %1089 = vmatprep.subr.bf16.mxu0 0
        %1090 = vmatpush1.bf16.xpose.msra.mxu0 %v1050
        %1091 = vmatprep.subr.bf16.mxu0 0
        %1092 = vmatpush1.bf16.xpose.msra.mxu0 %v1053
        %1093 = vmatprep.subr.bf16.mxu0 0
        %1094 = vmatpush1.bf16.xpose.msra.mxu0 %v1056
        %1095 = vmatprep.subr.bf16.mxu0 0
        %1096 = vmatpush1.bf16.xpose.msra.mxu0 %v1059
        %1097 = vmatprep.subr.bf16.mxu0 0
        %1098 = vmatpush1.bf16.xpose.msra.mxu0 %v1062
        %1099 = vmatprep.subr.bf16.mxu0 0
        %1100 = vmatpush1.bf16.xpose.msra.mxu0 %v1065
        %1101 = vmatprep.subr.bf16.mxu0 0
        %1102 = vmatpush1.bf16.xpose.msra.mxu0 %v1068
        %1103 = vmatprep.subr.bf16.mxu0 0
        %1104 = vmatpush1.bf16.xpose.msra.mxu0 %v1071
        %1105 = vmatprep.mubr.bf16.mxu0 0
        %1106 = vmatmul.mubr.bf16.gmra.mrb[0].mxu0 %v1020
        %v1107 = vpop.f32.mrb[0].mxu0
        %v1108 = vadd.f32 %v944, %v1107
        %v1109 = vpop.f32.mrb[0].mxu0
        %v1110 = vadd.f32 %v944, %v1109
        %v1111 = vpop.f32.mrb[0].mxu0
        %v1112 = vadd.f32 %v949, %v1111
        %v1113 = vpop.f32.mrb[0].mxu0
        %v1114 = vadd.f32 %v949, %v1113
        %1115 = vmatprep.mubr.bf16.mxu0 0
        %1116 = vmatmul.mubr.bf16.gmra.mrb[0].mxu0 %v1023
        %v1117 = vpop.f32.mrb[0].mxu0
        %v1118 = vadd.f32 %v954, %v1117
        %v1119 = vpop.f32.mrb[0].mxu0
        %v1120 = vadd.f32 %v954, %v1119
        %v1121 = vpop.f32.mrb[0].mxu0
        %v1122 = vadd.f32 %v959, %v1121
        %v1123 = vpop.f32.mrb[0].mxu0
        %v1124 = vadd.f32 %v959, %v1123
        %1125 = vdwg.mxu0
        %vm1126 = vcmp.gt.f32.partialorder %v1108, 0.0
        %vm1127 = vcmp.gt.f32.partialorder %v1110, 0.0
        %vm1128 = vcmp.gt.f32.partialorder %v1112, 0.0
        %vm1129 = vcmp.gt.f32.partialorder %v1114, 0.0
        %vm1130 = vcmp.gt.f32.partialorder %v1118, 0.0
        %vm1131 = vcmp.gt.f32.partialorder %v1120, 0.0
        %vm1132 = vcmp.gt.f32.partialorder %v1122, 0.0
        %vm1133 = vcmp.gt.f32.partialorder %v1124, 0.0
        %v1134 = vmin.f32 %v1108, 0.0
        %v1135 = vmin.f32 %v1110, 0.0
        %v1136 = vmin.f32 %v1112, 0.0
        %v1137 = vmin.f32 %v1114, 0.0
        %v1138 = vmin.f32 %v1118, 0.0
        %v1139 = vmin.f32 %v1120, 0.0
        %v1140 = vmin.f32 %v1122, 0.0
        %v1141 = vmin.f32 %v1124, 0.0
        %v1142 = vmul.f32 %v1134, 1.442695
        %v1143 = vpow.pop %v1142
        %v1144 = vmul.f32 %v1135, 1.442695
        %v1145 = vpow.pop %v1144
        %v1146 = vmul.f32 %v1136, 1.442695
        %v1147 = vpow.pop %v1146
        %v1148 = vmul.f32 %v1137, 1.442695
        %v1149 = vpow.pop %v1148
        %v1150 = vmul.f32 %v1138, 1.442695
        %v1151 = vpow.pop %v1150
        %v1152 = vmul.f32 %v1139, 1.442695
        %v1153 = vpow.pop %v1152
        %v1154 = vmul.f32 %v1140, 1.442695
        %v1155 = vpow.pop %v1154
        %v1156 = vmul.f32 %v1141, 1.442695
        %v1157 = vpow.pop %v1156
        %v1158 = vsub.f32 %v1143, 1.0
        %v1159 = vsub.f32 %v1145, 1.0
        %v1160 = vsub.f32 %v1147, 1.0
        %v1161 = vsub.f32 %v1149, 1.0
        %v1162 = vsub.f32 %v1151, 1.0
        %v1163 = vsub.f32 %v1153, 1.0
        %v1164 = vsub.f32 %v1155, 1.0
        %v1165 = vsub.f32 %v1157, 1.0
        %v1166 = vsel %vm1126, %v1108, %v1158
        %v1167 = vsel %vm1127, %v1110, %v1159
        %v1168 = vsel %vm1128, %v1112, %v1160
        %v1169 = vsel %vm1129, %v1114, %v1161
        %v1170 = vsel %vm1130, %v1118, %v1162
        %v1171 = vsel %vm1131, %v1120, %v1163
        %v1172 = vsel %vm1132, %v1122, %v1164
        %v1173 = vsel %vm1133, %v1124, %v1165
        %v1174 = vpack.c.bf16 %v1168, %v1166
        %v1175 = vpack.c.bf16 %v1169, %v1167
        %v1176 = vpack.c.bf16 %v1172, %v1170
        %v1177 = vpack.c.bf16 %v1173, %v1171
        %1178 = vst [vmem:[#allocation2 + $0x40] sm:$0xff] %v1174
        %1179 = vst [vmem:[#allocation2 + $0x48] sm:$0xff] %v1175
        %1180 = vst [vmem:[#allocation2 + $0x50] sm:$0xff] %v1176
        %1181 = vst [vmem:[#allocation2 + $0x58] sm:$0xff] %v1177
        %v1182 = vld [vmem:[%s334] sm:$0xff]
        %v1183 = vld [vmem:[%s334 + $0x18] sm:$0xff]
        %v1184 = vld [vmem:[%s334 + $0x30] sm:$0xff]
        %v1185 = vld [vmem:[%s334 + $0x48] sm:$0xff]
        %v1186 = vld [vmem:[%s334 + $0x60] sm:$0xff]
        %v1187 = vld [vmem:[%s334 + $0x78] sm:$0xff]
        %v1188 = vld [vmem:[%s334 + $0x90] sm:$0xff]
        %v1189 = vld [vmem:[%s334 + $0xa8] sm:$0xff]
        %v1190 = vld [vmem:[%s334 + $0xc0] sm:$0xff]
        %v1191 = vld [vmem:[%s334 + $0xd8] sm:$0xff]
        %v1192 = vld [vmem:[%s334 + $0xf0] sm:$0xff]
        %v1193 = vld [vmem:[%s334 + $0x108] sm:$0xff]
        %v1194 = vld [vmem:[%s334 + $0x120] sm:$0xff]
        %v1195 = vld [vmem:[%s334 + $0x138] sm:$0xff]
        %v1196 = vld [vmem:[%s334 + $0x150] sm:$0xff]
        %v1197 = vld [vmem:[%s334 + $0x168] sm:$0xff]
        %v1198 = vld [vmem:[%s334 + $0x180] sm:$0xff]
        %v1199 = vld [vmem:[%s334 + $0x198] sm:$0xff]
        %v1200 = vld [vmem:[%s334 + $0x1b0] sm:$0xff]
        %v1201 = vld [vmem:[%s334 + $0x1c8] sm:$0xff]
        %v1202 = vld [vmem:[%s334 + $0x1e0] sm:$0xff]
        %v1203 = vld [vmem:[%s334 + $0x1f8] sm:$0xff]
        %v1204 = vld [vmem:[%s334 + $0x210] sm:$0xff]
        %v1205 = vld [vmem:[%s334 + $0x228] sm:$0xff]
        %v1206 = vld [vmem:[%s334 + $0x240] sm:$0xff]
        %v1207 = vld [vmem:[%s334 + $0x258] sm:$0xff]
        %v1208 = vld [vmem:[%s334 + $0x270] sm:$0xff]
        %v1209 = vld [vmem:[%s334 + $0x288] sm:$0xff]
        %v1210 = vld [vmem:[%s334 + $0x2a0] sm:$0xff]
        %v1211 = vld [vmem:[%s334 + $0x2b8] sm:$0xff]
        %v1212 = vld [vmem:[%s334 + $0x2d0] sm:$0xff]
        %v1213 = vld [vmem:[%s334 + $0x2e8] sm:$0xff]
        %v1214 = vpack.c.bf16 %v1183, %v1182
        %v1215 = vpack.c.bf16 %v1185, %v1184
        %v1216 = vpack.c.bf16 %v1187, %v1186
        %v1217 = vpack.c.bf16 %v1189, %v1188
        %v1218 = vpack.c.bf16 %v1191, %v1190
        %v1219 = vpack.c.bf16 %v1193, %v1192
        %v1220 = vpack.c.bf16 %v1195, %v1194
        %v1221 = vpack.c.bf16 %v1197, %v1196
        %v1222 = vpack.c.bf16 %v1199, %v1198
        %v1223 = vpack.c.bf16 %v1201, %v1200
        %v1224 = vpack.c.bf16 %v1203, %v1202
        %v1225 = vpack.c.bf16 %v1205, %v1204
        %v1226 = vpack.c.bf16 %v1207, %v1206
        %v1227 = vpack.c.bf16 %v1209, %v1208
        %v1228 = vpack.c.bf16 %v1211, %v1210
        %v1229 = vpack.c.bf16 %v1213, %v1212
        %v1230 = vld [vmem:[%s1] sm:$0xf]
        %v1231 = vld [vmem:[%s1 + $0x4] sm:$0xf]
        %v1232 = vld [vmem:[%s1 + $0x8] sm:$0xf]
        %v1233 = vld [vmem:[%s1 + $0xc] sm:$0xf]
        %v1234 = vld [vmem:[%s2] sm:$0xff]
        %v1235 = vld [vmem:[%s2 + $0x8] sm:$0xff]
        %v1236 = vld [vmem:[%s2 + $0x10] sm:$0xff]
        %v1237 = vld [vmem:[%s2 + $0x18] sm:$0xff]
        %1239 = vset.pattern.permute.xlu0 0
        %1240 = vperm.xlu0 %1239, %v1234
        %v1241 = vpop.permute.xlu0 %1240
        %1244 = vset.pattern.permute.xlu0 0
        %1245 = vperm.xlu0 %1244, %v1235
        %v1246 = vpop.permute.xlu0 %1245
        %1249 = vset.pattern.permute.xlu0 0
        %1250 = vperm.xlu0 %1249, %v1236
        %v1251 = vpop.permute.xlu0 %1250
        %1254 = vset.pattern.permute.xlu0 0
        %1255 = vperm.xlu0 %1254, %v1237
        %v1256 = vpop.permute.xlu0 %1255
        %v1262 = vunpack.c.l.b16 %v1230
        %v1263 = vunpack.c.l.b16 %v1231
        %v1264 = vunpack.c.l.b16 %v1232
        %v1265 = vunpack.c.l.b16 %v1233
        %v1266 = vpack.c.b16 %v1263, %v1262
        %v1267 = vpack.c.b16 %v1265, %v1264
        %1284 = vrot.lane.b32.xlu0 %v1214, 32
        %v1285 = vpop.permute.xlu0 %1284
        %1286 = vrot.lane.b32.xlu0 %v1215, 32
        %v1287 = vpop.permute.xlu0 %1286
        %1288 = vrot.lane.b32.xlu0 %v1216, 32
        %v1289 = vpop.permute.xlu0 %1288
        %1290 = vrot.lane.b32.xlu0 %v1217, 32
        %v1291 = vpop.permute.xlu0 %1290
        %1292 = vrot.lane.b32.xlu0 %v1218, 32
        %v1293 = vpop.permute.xlu0 %1292
        %1294 = vrot.lane.b32.xlu0 %v1219, 32
        %v1295 = vpop.permute.xlu0 %1294
        %1296 = vrot.lane.b32.xlu0 %v1220, 32
        %v1297 = vpop.permute.xlu0 %1296
        %1298 = vrot.lane.b32.xlu0 %v1221, 32
        %v1299 = vpop.permute.xlu0 %1298
        %1300 = vrot.lane.b32.xlu0 %v1222, 32
        %v1301 = vpop.permute.xlu0 %1300
        %1302 = vrot.lane.b32.xlu0 %v1223, 32
        %v1303 = vpop.permute.xlu0 %1302
        %1304 = vrot.lane.b32.xlu0 %v1224, 32
        %v1305 = vpop.permute.xlu0 %1304
        %1306 = vrot.lane.b32.xlu0 %v1225, 32
        %v1307 = vpop.permute.xlu0 %1306
        %1308 = vrot.lane.b32.xlu0 %v1226, 32
        %v1309 = vpop.permute.xlu0 %1308
        %1310 = vrot.lane.b32.xlu0 %v1227, 32
        %v1311 = vpop.permute.xlu0 %1310
        %1312 = vrot.lane.b32.xlu0 %v1228, 32
        %v1313 = vpop.permute.xlu0 %1312
        %1314 = vrot.lane.b32.xlu0 %v1229, 32
        %v1315 = vpop.permute.xlu0 %1314
        %v1317 = vsel %vm424, %v1266, 0
        %v1320 = vsel %vm424, %v1267, 0
        %v1323 = vsel %vm424, %v1285, 0
        %v1326 = vsel %vm424, %v1287, 0
        %v1329 = vsel %vm424, %v1289, 0
        %v1332 = vsel %vm424, %v1291, 0
        %v1335 = vsel %vm424, %v1293, 0
        %v1338 = vsel %vm424, %v1295, 0
        %v1341 = vsel %vm424, %v1297, 0
        %v1344 = vsel %vm424, %v1299, 0
        %v1347 = vsel %vm424, %v1301, 0
        %v1350 = vsel %vm424, %v1303, 0
        %v1353 = vsel %vm424, %v1305, 0
        %v1356 = vsel %vm424, %v1307, 0
        %v1359 = vsel %vm424, %v1309, 0
        %v1362 = vsel %vm424, %v1311, 0
        %v1365 = vsel %vm424, %v1313, 0
        %v1368 = vsel %vm424, %v1315, 0
        %1370 = vmatprep.subr.bf16.mxu0 0
        %1371 = vmatpush1.bf16.xpose.msra.mxu0 %v1323
        %1372 = vmatprep.subr.bf16.mxu0 0
        %1373 = vmatpush1.bf16.xpose.msra.mxu0 %v1326
        %1374 = vmatprep.subr.bf16.mxu0 0
        %1375 = vmatpush1.bf16.xpose.msra.mxu0 %v1329
        %1376 = vmatprep.subr.bf16.mxu0 0
        %1377 = vmatpush1.bf16.xpose.msra.mxu0 %v1332
        %1378 = vmatprep.subr.bf16.mxu0 0
        %1379 = vmatpush1.bf16.xpose.msra.mxu0 %v1335
        %1380 = vmatprep.subr.bf16.mxu0 0
        %1381 = vmatpush1.bf16.xpose.msra.mxu0 %v1338
        %1382 = vmatprep.subr.bf16.mxu0 0
        %1383 = vmatpush1.bf16.xpose.msra.mxu0 %v1341
        %1384 = vmatprep.subr.bf16.mxu0 0
        %1385 = vmatpush1.bf16.xpose.msra.mxu0 %v1344
        %1386 = vmatprep.subr.bf16.mxu0 0
        %1387 = vmatpush1.bf16.xpose.msra.mxu0 %v1347
        %1388 = vmatprep.subr.bf16.mxu0 0
        %1389 = vmatpush1.bf16.xpose.msra.mxu0 %v1350
        %1390 = vmatprep.subr.bf16.mxu0 0
        %1391 = vmatpush1.bf16.xpose.msra.mxu0 %v1353
        %1392 = vmatprep.subr.bf16.mxu0 0
        %1393 = vmatpush1.bf16.xpose.msra.mxu0 %v1356
        %1394 = vmatprep.subr.bf16.mxu0 0
        %1395 = vmatpush1.bf16.xpose.msra.mxu0 %v1359
        %1396 = vmatprep.subr.bf16.mxu0 0
        %1397 = vmatpush1.bf16.xpose.msra.mxu0 %v1362
        %1398 = vmatprep.subr.bf16.mxu0 0
        %1399 = vmatpush1.bf16.xpose.msra.mxu0 %v1365
        %1400 = vmatprep.subr.bf16.mxu0 0
        %1401 = vmatpush1.bf16.xpose.msra.mxu0 %v1368
        %1402 = vmatprep.mubr.bf16.mxu0 0
        %1403 = vmatmul.mubr.bf16.gmra.mrb[0].mxu0 %v1317
        %v1404 = vpop.f32.mrb[0].mxu0
        %v1405 = vadd.f32 %v1241, %v1404
        %v1406 = vpop.f32.mrb[0].mxu0
        %v1407 = vadd.f32 %v1241, %v1406
        %v1408 = vpop.f32.mrb[0].mxu0
        %v1409 = vadd.f32 %v1246, %v1408
        %v1410 = vpop.f32.mrb[0].mxu0
        %v1411 = vadd.f32 %v1246, %v1410
        %1412 = vmatprep.mubr.bf16.mxu0 0
        %1413 = vmatmul.mubr.bf16.gmra.mrb[0].mxu0 %v1320
        %v1414 = vpop.f32.mrb[0].mxu0
        %v1415 = vadd.f32 %v1251, %v1414
        %v1416 = vpop.f32.mrb[0].mxu0
        %v1417 = vadd.f32 %v1251, %v1416
        %v1418 = vpop.f32.mrb[0].mxu0
        %v1419 = vadd.f32 %v1256, %v1418
        %v1420 = vpop.f32.mrb[0].mxu0
        %v1421 = vadd.f32 %v1256, %v1420
        %1422 = vdwg.mxu0
        %vm1423 = vcmp.gt.f32.partialorder %v1405, 0.0
        %vm1424 = vcmp.gt.f32.partialorder %v1407, 0.0
        %vm1425 = vcmp.gt.f32.partialorder %v1409, 0.0
        %vm1426 = vcmp.gt.f32.partialorder %v1411, 0.0
        %vm1427 = vcmp.gt.f32.partialorder %v1415, 0.0
        %vm1428 = vcmp.gt.f32.partialorder %v1417, 0.0
        %vm1429 = vcmp.gt.f32.partialorder %v1419, 0.0
        %vm1430 = vcmp.gt.f32.partialorder %v1421, 0.0
        %v1431 = vmin.f32 %v1405, 0.0
        %v1432 = vmin.f32 %v1407, 0.0
        %v1433 = vmin.f32 %v1409, 0.0
        %v1434 = vmin.f32 %v1411, 0.0
        %v1435 = vmin.f32 %v1415, 0.0
        %v1436 = vmin.f32 %v1417, 0.0
        %v1437 = vmin.f32 %v1419, 0.0
        %v1438 = vmin.f32 %v1421, 0.0
        %v1439 = vmul.f32 %v1431, 1.442695
        %v1440 = vpow.pop %v1439
        %v1441 = vmul.f32 %v1432, 1.442695
        %v1442 = vpow.pop %v1441
        %v1443 = vmul.f32 %v1433, 1.442695
        %v1444 = vpow.pop %v1443
        %v1445 = vmul.f32 %v1434, 1.442695
        %v1446 = vpow.pop %v1445
        %v1447 = vmul.f32 %v1435, 1.442695
        %v1448 = vpow.pop %v1447
        %v1449 = vmul.f32 %v1436, 1.442695
        %v1450 = vpow.pop %v1449
        %v1451 = vmul.f32 %v1437, 1.442695
        %v1452 = vpow.pop %v1451
        %v1453 = vmul.f32 %v1438, 1.442695
        %v1454 = vpow.pop %v1453
        %v1455 = vsub.f32 %v1440, 1.0
        %v1456 = vsub.f32 %v1442, 1.0
        %v1457 = vsub.f32 %v1444, 1.0
        %v1458 = vsub.f32 %v1446, 1.0
        %v1459 = vsub.f32 %v1448, 1.0
        %v1460 = vsub.f32 %v1450, 1.0
        %v1461 = vsub.f32 %v1452, 1.0
        %v1462 = vsub.f32 %v1454, 1.0
        %v1463 = vsel %vm1423, %v1405, %v1455
        %v1464 = vsel %vm1424, %v1407, %v1456
        %v1465 = vsel %vm1425, %v1409, %v1457
        %v1466 = vsel %vm1426, %v1411, %v1458
        %v1467 = vsel %vm1427, %v1415, %v1459
        %v1468 = vsel %vm1428, %v1417, %v1460
        %v1469 = vsel %vm1429, %v1419, %v1461
        %v1470 = vsel %vm1430, %v1421, %v1462
        %v1471 = vpack.c.bf16 %v1465, %v1463
        %v1472 = vpack.c.bf16 %v1466, %v1464
        %v1473 = vpack.c.bf16 %v1469, %v1467
        %v1474 = vpack.c.bf16 %v1470, %v1468
        %1475 = vst [vmem:[#allocation2 + $0x60] sm:$0xff] %v1471
        %1476 = vst [vmem:[#allocation2 + $0x68] sm:$0xff] %v1472
        %1477 = vst [vmem:[#allocation2 + $0x70] sm:$0xff] %v1473
        %1478 = vst [vmem:[#allocation2 + $0x78] sm:$0xff] %v1474
        %v1479 = vld [vmem:[%s334 + $0x8] sm:$0xff]
        %v1480 = vld [vmem:[%s334 + $0x20] sm:$0xff]
        %v1481 = vld [vmem:[%s334 + $0x38] sm:$0xff]
        %v1482 = vld [vmem:[%s334 + $0x50] sm:$0xff]
        %v1483 = vld [vmem:[%s334 + $0x68] sm:$0xff]
        %v1484 = vld [vmem:[%s334 + $0x80] sm:$0xff]
        %v1485 = vld [vmem:[%s334 + $0x98] sm:$0xff]
        %v1486 = vld [vmem:[%s334 + $0xb0] sm:$0xff]
        %v1487 = vld [vmem:[%s334 + $0xc8] sm:$0xff]
        %v1488 = vld [vmem:[%s334 + $0xe0] sm:$0xff]
        %v1489 = vld [vmem:[%s334 + $0xf8] sm:$0xff]
        %v1490 = vld [vmem:[%s334 + $0x110] sm:$0xff]
        %v1491 = vld [vmem:[%s334 + $0x128] sm:$0xff]
        %v1492 = vld [vmem:[%s334 + $0x140] sm:$0xff]
        %v1493 = vld [vmem:[%s334 + $0x158] sm:$0xff]
        %v1494 = vld [vmem:[%s334 + $0x170] sm:$0xff]
        %v1495 = vld [vmem:[%s334 + $0x188] sm:$0xff]
        %v1496 = vld [vmem:[%s334 + $0x1a0] sm:$0xff]
        %v1497 = vld [vmem:[%s334 + $0x1b8] sm:$0xff]
        %v1498 = vld [vmem:[%s334 + $0x1d0] sm:$0xff]
        %v1499 = vld [vmem:[%s334 + $0x1e8] sm:$0xff]
        %v1500 = vld [vmem:[%s334 + $0x200] sm:$0xff]
        %v1501 = vld [vmem:[%s334 + $0x218] sm:$0xff]
        %v1502 = vld [vmem:[%s334 + $0x230] sm:$0xff]
        %v1503 = vld [vmem:[%s334 + $0x248] sm:$0xff]
        %v1504 = vld [vmem:[%s334 + $0x260] sm:$0xff]
        %v1505 = vld [vmem:[%s334 + $0x278] sm:$0xff]
        %v1506 = vld [vmem:[%s334 + $0x290] sm:$0xff]
        %v1507 = vld [vmem:[%s334 + $0x2a8] sm:$0xff]
        %v1508 = vld [vmem:[%s334 + $0x2c0] sm:$0xff]
        %v1509 = vld [vmem:[%s334 + $0x2d8] sm:$0xff]
        %v1510 = vld [vmem:[%s334 + $0x2f0] sm:$0xff]
        %v1511 = vpack.c.bf16 %v1480, %v1479
        %v1512 = vpack.c.bf16 %v1482, %v1481
        %v1513 = vpack.c.bf16 %v1484, %v1483
        %v1514 = vpack.c.bf16 %v1486, %v1485
        %v1515 = vpack.c.bf16 %v1488, %v1487
        %v1516 = vpack.c.bf16 %v1490, %v1489
        %v1517 = vpack.c.bf16 %v1492, %v1491
        %v1518 = vpack.c.bf16 %v1494, %v1493
        %v1519 = vpack.c.bf16 %v1496, %v1495
        %v1520 = vpack.c.bf16 %v1498, %v1497
        %v1521 = vpack.c.bf16 %v1500, %v1499
        %v1522 = vpack.c.bf16 %v1502, %v1501
        %v1523 = vpack.c.bf16 %v1504, %v1503
        %v1524 = vpack.c.bf16 %v1506, %v1505
        %v1525 = vpack.c.bf16 %v1508, %v1507
        %v1526 = vpack.c.bf16 %v1510, %v1509
        %v1527 = vld [vmem:[%s1] sm:$0xf]
        %v1528 = vld [vmem:[%s1 + $0x4] sm:$0xf]
        %v1529 = vld [vmem:[%s1 + $0x8] sm:$0xf]
        %v1530 = vld [vmem:[%s1 + $0xc] sm:$0xf]
        %v1531 = vld [vmem:[%s2] sm:$0xff]
        %v1532 = vld [vmem:[%s2 + $0x8] sm:$0xff]
        %v1533 = vld [vmem:[%s2 + $0x10] sm:$0xff]
        %v1534 = vld [vmem:[%s2 + $0x18] sm:$0xff]
        %1536 = vset.pattern.permute.xlu0 0
        %1537 = vperm.xlu0 %1536, %v1531
        %v1538 = vpop.permute.xlu0 %1537
        %1541 = vset.pattern.permute.xlu0 0
        %1542 = vperm.xlu0 %1541, %v1532
        %v1543 = vpop.permute.xlu0 %1542
        %1546 = vset.pattern.permute.xlu0 0
        %1547 = vperm.xlu0 %1546, %v1533
        %v1548 = vpop.permute.xlu0 %1547
        %1551 = vset.pattern.permute.xlu0 0
        %1552 = vperm.xlu0 %1551, %v1534
        %v1553 = vpop.permute.xlu0 %1552
        %v1559 = vunpack.c.l.b16 %v1527
        %v1560 = vunpack.c.l.b16 %v1528
        %v1561 = vunpack.c.l.b16 %v1529
        %v1562 = vunpack.c.l.b16 %v1530
        %v1563 = vpack.c.b16 %v1560, %v1559
        %v1564 = vpack.c.b16 %v1562, %v1561
        %v1566 = vsel %vm424, %v1563, 0
        %v1569 = vsel %vm424, %v1564, 0
        %v1572 = vsel %vm424, %v1511, 0
        %v1575 = vsel %vm424, %v1512, 0
        %v1578 = vsel %vm424, %v1513, 0
        %v1581 = vsel %vm424, %v1514, 0
        %v1584 = vsel %vm424, %v1515, 0
        %v1587 = vsel %vm424, %v1516, 0
        %v1590 = vsel %vm424, %v1517, 0
        %v1593 = vsel %vm424, %v1518, 0
        %v1596 = vsel %vm424, %v1519, 0
        %v1599 = vsel %vm424, %v1520, 0
        %v1602 = vsel %vm424, %v1521, 0
        %v1605 = vsel %vm424, %v1522, 0
        %v1608 = vsel %vm424, %v1523, 0
        %v1611 = vsel %vm424, %v1524, 0
        %v1614 = vsel %vm424, %v1525, 0
        %v1617 = vsel %vm424, %v1526, 0
        %1619 = vmatprep.subr.bf16.mxu0 0
        %1620 = vmatpush1.bf16.xpose.msra.mxu0 %v1572
        %1621 = vmatprep.subr.bf16.mxu0 0
        %1622 = vmatpush1.bf16.xpose.msra.mxu0 %v1575
        %1623 = vmatprep.subr.bf16.mxu0 0
        %1624 = vmatpush1.bf16.xpose.msra.mxu0 %v1578
        %1625 = vmatprep.subr.bf16.mxu0 0
        %1626 = vmatpush1.bf16.xpose.msra.mxu0 %v1581
        %1627 = vmatprep.subr.bf16.mxu0 0
        %1628 = vmatpush1.bf16.xpose.msra.mxu0 %v1584
        %1629 = vmatprep.subr.bf16.mxu0 0
        %1630 = vmatpush1.bf16.xpose.msra.mxu0 %v1587
        %1631 = vmatprep.subr.bf16.mxu0 0
        %1632 = vmatpush1.bf16.xpose.msra.mxu0 %v1590
        %1633 = vmatprep.subr.bf16.mxu0 0
        %1634 = vmatpush1.bf16.xpose.msra.mxu0 %v1593
        %1635 = vmatprep.subr.bf16.mxu0 0
        %1636 = vmatpush1.bf16.xpose.msra.mxu0 %v1596
        %1637 = vmatprep.subr.bf16.mxu0 0
        %1638 = vmatpush1.bf16.xpose.msra.mxu0 %v1599
        %1639 = vmatprep.subr.bf16.mxu0 0
        %1640 = vmatpush1.bf16.xpose.msra.mxu0 %v1602
        %1641 = vmatprep.subr.bf16.mxu0 0
        %1642 = vmatpush1.bf16.xpose.msra.mxu0 %v1605
        %1643 = vmatprep.subr.bf16.mxu0 0
        %1644 = vmatpush1.bf16.xpose.msra.mxu0 %v1608
        %1645 = vmatprep.subr.bf16.mxu0 0
        %1646 = vmatpush1.bf16.xpose.msra.mxu0 %v1611
        %1647 = vmatprep.subr.bf16.mxu0 0
        %1648 = vmatpush1.bf16.xpose.msra.mxu0 %v1614
        %1649 = vmatprep.subr.bf16.mxu0 0
        %1650 = vmatpush1.bf16.xpose.msra.mxu0 %v1617
        %1651 = vmatprep.mubr.bf16.mxu0 0
        %1652 = vmatmul.mubr.bf16.gmra.mrb[0].mxu0 %v1566
        %v1653 = vpop.f32.mrb[0].mxu0
        %v1654 = vadd.f32 %v1538, %v1653
        %v1655 = vpop.f32.mrb[0].mxu0
        %v1656 = vadd.f32 %v1538, %v1655
        %v1657 = vpop.f32.mrb[0].mxu0
        %v1658 = vadd.f32 %v1543, %v1657
        %v1659 = vpop.f32.mrb[0].mxu0
        %v1660 = vadd.f32 %v1543, %v1659
        %1661 = vmatprep.mubr.bf16.mxu0 0
        %1662 = vmatmul.mubr.bf16.gmra.mrb[0].mxu0 %v1569
        %v1663 = vpop.f32.mrb[0].mxu0
        %v1664 = vadd.f32 %v1548, %v1663
        %v1665 = vpop.f32.mrb[0].mxu0
        %v1666 = vadd.f32 %v1548, %v1665
        %v1667 = vpop.f32.mrb[0].mxu0
        %v1668 = vadd.f32 %v1553, %v1667
        %v1669 = vpop.f32.mrb[0].mxu0
        %v1670 = vadd.f32 %v1553, %v1669
        %1671 = vdwg.mxu0
        %vm1672 = vcmp.gt.f32.partialorder %v1654, 0.0
        %vm1673 = vcmp.gt.f32.partialorder %v1656, 0.0
        %vm1674 = vcmp.gt.f32.partialorder %v1658, 0.0
        %vm1675 = vcmp.gt.f32.partialorder %v1660, 0.0
        %vm1676 = vcmp.gt.f32.partialorder %v1664, 0.0
        %vm1677 = vcmp.gt.f32.partialorder %v1666, 0.0
        %vm1678 = vcmp.gt.f32.partialorder %v1668, 0.0
        %vm1679 = vcmp.gt.f32.partialorder %v1670, 0.0
        %v1680 = vmin.f32 %v1654, 0.0
        %v1681 = vmin.f32 %v1656, 0.0
        %v1682 = vmin.f32 %v1658, 0.0
        %v1683 = vmin.f32 %v1660, 0.0
        %v1684 = vmin.f32 %v1664, 0.0
        %v1685 = vmin.f32 %v1666, 0.0
        %v1686 = vmin.f32 %v1668, 0.0
        %v1687 = vmin.f32 %v1670, 0.0
        %v1688 = vmul.f32 %v1680, 1.442695
        %v1689 = vpow.pop %v1688
        %v1690 = vmul.f32 %v1681, 1.442695
        %v1691 = vpow.pop %v1690
        %v1692 = vmul.f32 %v1682, 1.442695
        %v1693 = vpow.pop %v1692
        %v1694 = vmul.f32 %v1683, 1.442695
        %v1695 = vpow.pop %v1694
        %v1696 = vmul.f32 %v1684, 1.442695
        %v1697 = vpow.pop %v1696
        %v1698 = vmul.f32 %v1685, 1.442695
        %v1699 = vpow.pop %v1698
        %v1700 = vmul.f32 %v1686, 1.442695
        %v1701 = vpow.pop %v1700
        %v1702 = vmul.f32 %v1687, 1.442695
        %v1703 = vpow.pop %v1702
        %v1704 = vsub.f32 %v1689, 1.0
        %v1705 = vsub.f32 %v1691, 1.0
        %v1706 = vsub.f32 %v1693, 1.0
        %v1707 = vsub.f32 %v1695, 1.0
        %v1708 = vsub.f32 %v1697, 1.0
        %v1709 = vsub.f32 %v1699, 1.0
        %v1710 = vsub.f32 %v1701, 1.0
        %v1711 = vsub.f32 %v1703, 1.0
        %v1712 = vsel %vm1672, %v1654, %v1704
        %v1713 = vsel %vm1673, %v1656, %v1705
        %v1714 = vsel %vm1674, %v1658, %v1706
        %v1715 = vsel %vm1675, %v1660, %v1707
        %v1716 = vsel %vm1676, %v1664, %v1708
        %v1717 = vsel %vm1677, %v1666, %v1709
        %v1718 = vsel %vm1678, %v1668, %v1710
        %v1719 = vsel %vm1679, %v1670, %v1711
        %v1720 = vpack.c.bf16 %v1714, %v1712
        %v1721 = vpack.c.bf16 %v1715, %v1713
        %v1722 = vpack.c.bf16 %v1718, %v1716
        %v1723 = vpack.c.bf16 %v1719, %v1717
        %1724 = vst [vmem:[#allocation2 + $0x80] sm:$0xff] %v1720
        %1725 = vst [vmem:[#allocation2 + $0x88] sm:$0xff] %v1721
        %1726 = vst [vmem:[#allocation2 + $0x90] sm:$0xff] %v1722
        %1727 = vst [vmem:[#allocation2 + $0x98] sm:$0xff] %v1723
        %v1728 = vld [vmem:[%s334 + $0x8] sm:$0xff]
        %v1729 = vld [vmem:[%s334 + $0x20] sm:$0xff]
        %v1730 = vld [vmem:[%s334 + $0x38] sm:$0xff]
        %v1731 = vld [vmem:[%s334 + $0x50] sm:$0xff]
        %v1732 = vld [vmem:[%s334 + $0x68] sm:$0xff]
        %v1733 = vld [vmem:[%s334 + $0x80] sm:$0xff]
        %v1734 = vld [vmem:[%s334 + $0x98] sm:$0xff]
        %v1735 = vld [vmem:[%s334 + $0xb0] sm:$0xff]
        %v1736 = vld [vmem:[%s334 + $0xc8] sm:$0xff]
        %v1737 = vld [vmem:[%s334 + $0xe0] sm:$0xff]
        %v1738 = vld [vmem:[%s334 + $0xf8] sm:$0xff]
        %v1739 = vld [vmem:[%s334 + $0x110] sm:$0xff]
        %v1740 = vld [vmem:[%s334 + $0x128] sm:$0xff]
        %v1741 = vld [vmem:[%s334 + $0x140] sm:$0xff]
        %v1742 = vld [vmem:[%s334 + $0x158] sm:$0xff]
        %v1743 = vld [vmem:[%s334 + $0x170] sm:$0xff]
        %v1744 = vld [vmem:[%s334 + $0x188] sm:$0xff]
        %v1745 = vld [vmem:[%s334 + $0x1a0] sm:$0xff]
        %v1746 = vld [vmem:[%s334 + $0x1b8] sm:$0xff]
        %v1747 = vld [vmem:[%s334 + $0x1d0] sm:$0xff]
        %v1748 = vld [vmem:[%s334 + $0x1e8] sm:$0xff]
        %v1749 = vld [vmem:[%s334 + $0x200] sm:$0xff]
        %v1750 = vld [vmem:[%s334 + $0x218] sm:$0xff]
        %v1751 = vld [vmem:[%s334 + $0x230] sm:$0xff]
        %v1752 = vld [vmem:[%s334 + $0x248] sm:$0xff]
        %v1753 = vld [vmem:[%s334 + $0x260] sm:$0xff]
        %v1754 = vld [vmem:[%s334 + $0x278] sm:$0xff]
        %v1755 = vld [vmem:[%s334 + $0x290] sm:$0xff]
        %v1756 = vld [vmem:[%s334 + $0x2a8] sm:$0xff]
        %v1757 = vld [vmem:[%s334 + $0x2c0] sm:$0xff]
        %v1758 = vld [vmem:[%s334 + $0x2d8] sm:$0xff]
        %v1759 = vld [vmem:[%s334 + $0x2f0] sm:$0xff]
        %v1760 = vpack.c.bf16 %v1729, %v1728
        %v1761 = vpack.c.bf16 %v1731, %v1730
        %v1762 = vpack.c.bf16 %v1733, %v1732
        %v1763 = vpack.c.bf16 %v1735, %v1734
        %v1764 = vpack.c.bf16 %v1737, %v1736
        %v1765 = vpack.c.bf16 %v1739, %v1738
        %v1766 = vpack.c.bf16 %v1741, %v1740
        %v1767 = vpack.c.bf16 %v1743, %v1742
        %v1768 = vpack.c.bf16 %v1745, %v1744
        %v1769 = vpack.c.bf16 %v1747, %v1746
        %v1770 = vpack.c.bf16 %v1749, %v1748
        %v1771 = vpack.c.bf16 %v1751, %v1750
        %v1772 = vpack.c.bf16 %v1753, %v1752
        %v1773 = vpack.c.bf16 %v1755, %v1754
        %v1774 = vpack.c.bf16 %v1757, %v1756
        %v1775 = vpack.c.bf16 %v1759, %v1758
        %v1776 = vld [vmem:[%s1] sm:$0xf]
        %v1777 = vld [vmem:[%s1 + $0x4] sm:$0xf]
        %v1778 = vld [vmem:[%s1 + $0x8] sm:$0xf]
        %v1779 = vld [vmem:[%s1 + $0xc] sm:$0xf]
        %v1780 = vld [vmem:[%s2] sm:$0xff]
        %v1781 = vld [vmem:[%s2 + $0x8] sm:$0xff]
        %v1782 = vld [vmem:[%s2 + $0x10] sm:$0xff]
        %v1783 = vld [vmem:[%s2 + $0x18] sm:$0xff]
        %1785 = vset.pattern.permute.xlu0 0
        %1786 = vperm.xlu0 %1785, %v1780
        %v1787 = vpop.permute.xlu0 %1786
        %1790 = vset.pattern.permute.xlu0 0
        %1791 = vperm.xlu0 %1790, %v1781
        %v1792 = vpop.permute.xlu0 %1791
        %1795 = vset.pattern.permute.xlu0 0
        %1796 = vperm.xlu0 %1795, %v1782
        %v1797 = vpop.permute.xlu0 %1796
        %1800 = vset.pattern.permute.xlu0 0
        %1801 = vperm.xlu0 %1800, %v1783
        %v1802 = vpop.permute.xlu0 %1801
        %v1808 = vunpack.c.l.b16 %v1776
        %v1809 = vunpack.c.l.b16 %v1777
        %v1810 = vunpack.c.l.b16 %v1778
        %v1811 = vunpack.c.l.b16 %v1779
        %v1812 = vpack.c.b16 %v1809, %v1808
        %v1813 = vpack.c.b16 %v1811, %v1810
        %1830 = vrot.lane.b32.xlu0 %v1760, 96
        %v1831 = vpop.permute.xlu0 %1830
        %1832 = vrot.lane.b32.xlu0 %v1761, 96
        %v1833 = vpop.permute.xlu0 %1832
        %1834 = vrot.lane.b32.xlu0 %v1762, 96
        %v1835 = vpop.permute.xlu0 %1834
        %1836 = vrot.lane.b32.xlu0 %v1763, 96
        %v1837 = vpop.permute.xlu0 %1836
        %1838 = vrot.lane.b32.xlu0 %v1764, 96
        %v1839 = vpop.permute.xlu0 %1838
        %1840 = vrot.lane.b32.xlu0 %v1765, 96
        %v1841 = vpop.permute.xlu0 %1840
        %1842 = vrot.lane.b32.xlu0 %v1766, 96
        %v1843 = vpop.permute.xlu0 %1842
        %1844 = vrot.lane.b32.xlu0 %v1767, 96
        %v1845 = vpop.permute.xlu0 %1844
        %1846 = vrot.lane.b32.xlu0 %v1768, 96
        %v1847 = vpop.permute.xlu0 %1846
        %1848 = vrot.lane.b32.xlu0 %v1769, 96
        %v1849 = vpop.permute.xlu0 %1848
        %1850 = vrot.lane.b32.xlu0 %v1770, 96
        %v1851 = vpop.permute.xlu0 %1850
        %1852 = vrot.lane.b32.xlu0 %v1771, 96
        %v1853 = vpop.permute.xlu0 %1852
        %1854 = vrot.lane.b32.xlu0 %v1772, 96
        %v1855 = vpop.permute.xlu0 %1854
        %1856 = vrot.lane.b32.xlu0 %v1773, 96
        %v1857 = vpop.permute.xlu0 %1856
        %1858 = vrot.lane.b32.xlu0 %v1774, 96
        %v1859 = vpop.permute.xlu0 %1858
        %1860 = vrot.lane.b32.xlu0 %v1775, 96
        %v1861 = vpop.permute.xlu0 %1860
        %v1863 = vsel %vm424, %v1812, 0
        %v1866 = vsel %vm424, %v1813, 0
        %v1869 = vsel %vm424, %v1831, 0
        %v1872 = vsel %vm424, %v1833, 0
        %v1875 = vsel %vm424, %v1835, 0
        %v1878 = vsel %vm424, %v1837, 0
        %v1881 = vsel %vm424, %v1839, 0
        %v1884 = vsel %vm424, %v1841, 0
        %v1887 = vsel %vm424, %v1843, 0
        %v1890 = vsel %vm424, %v1845, 0
        %v1893 = vsel %vm424, %v1847, 0
        %v1896 = vsel %vm424, %v1849, 0
        %v1899 = vsel %vm424, %v1851, 0
        %v1902 = vsel %vm424, %v1853, 0
        %v1905 = vsel %vm424, %v1855, 0
        %v1908 = vsel %vm424, %v1857, 0
        %v1911 = vsel %vm424, %v1859, 0
        %v1914 = vsel %vm424, %v1861, 0
        %1916 = vmatprep.subr.bf16.mxu0 0
        %1917 = vmatpush1.bf16.xpose.msra.mxu0 %v1869
        %1918 = vmatprep.subr.bf16.mxu0 0
        %1919 = vmatpush1.bf16.xpose.msra.mxu0 %v1872
        %1920 = vmatprep.subr.bf16.mxu0 0
        %1921 = vmatpush1.bf16.xpose.msra.mxu0 %v1875
        %1922 = vmatprep.subr.bf16.mxu0 0
        %1923 = vmatpush1.bf16.xpose.msra.mxu0 %v1878
        %1924 = vmatprep.subr.bf16.mxu0 0
        %1925 = vmatpush1.bf16.xpose.msra.mxu0 %v1881
        %1926 = vmatprep.subr.bf16.mxu0 0
        %1927 = vmatpush1.bf16.xpose.msra.mxu0 %v1884
        %1928 = vmatprep.subr.bf16.mxu0 0
        %1929 = vmatpush1.bf16.xpose.msra.mxu0 %v1887
        %1930 = vmatprep.subr.bf16.mxu0 0
        %1931 = vmatpush1.bf16.xpose.msra.mxu0 %v1890
        %1932 = vmatprep.subr.bf16.mxu0 0
        %1933 = vmatpush1.bf16.xpose.msra.mxu0 %v1893
        %1934 = vmatprep.subr.bf16.mxu0 0
        %1935 = vmatpush1.bf16.xpose.msra.mxu0 %v1896
        %1936 = vmatprep.subr.bf16.mxu0 0
        %1937 = vmatpush1.bf16.xpose.msra.mxu0 %v1899
        %1938 = vmatprep.subr.bf16.mxu0 0
        %1939 = vmatpush1.bf16.xpose.msra.mxu0 %v1902
        %1940 = vmatprep.subr.bf16.mxu0 0
        %1941 = vmatpush1.bf16.xpose.msra.mxu0 %v1905
        %1942 = vmatprep.subr.bf16.mxu0 0
        %1943 = vmatpush1.bf16.xpose.msra.mxu0 %v1908
        %1944 = vmatprep.subr.bf16.mxu0 0
        %1945 = vmatpush1.bf16.xpose.msra.mxu0 %v1911
        %1946 = vmatprep.subr.bf16.mxu0 0
        %1947 = vmatpush1.bf16.xpose.msra.mxu0 %v1914
        %1948 = vmatprep.mubr.bf16.mxu0 0
        %1949 = vmatmul.mubr.bf16.gmra.mrb[0].mxu0 %v1863
        %v1950 = vpop.f32.mrb[0].mxu0
        %v1951 = vadd.f32 %v1787, %v1950
        %v1952 = vpop.f32.mrb[0].mxu0
        %v1953 = vadd.f32 %v1787, %v1952
        %v1954 = vpop.f32.mrb[0].mxu0
        %v1955 = vadd.f32 %v1792, %v1954
        %v1956 = vpop.f32.mrb[0].mxu0
        %v1957 = vadd.f32 %v1792, %v1956
        %1958 = vmatprep.mubr.bf16.mxu0 0
        %1959 = vmatmul.mubr.bf16.gmra.mrb[0].mxu0 %v1866
        %v1960 = vpop.f32.mrb[0].mxu0
        %v1961 = vadd.f32 %v1797, %v1960
        %v1962 = vpop.f32.mrb[0].mxu0
        %v1963 = vadd.f32 %v1797, %v1962
        %v1964 = vpop.f32.mrb[0].mxu0
        %v1965 = vadd.f32 %v1802, %v1964
        %v1966 = vpop.f32.mrb[0].mxu0
        %v1967 = vadd.f32 %v1802, %v1966
        %1968 = vdwg.mxu0
        %vm1969 = vcmp.gt.f32.partialorder %v1951, 0.0
        %vm1970 = vcmp.gt.f32.partialorder %v1953, 0.0
        %vm1971 = vcmp.gt.f32.partialorder %v1955, 0.0
        %vm1972 = vcmp.gt.f32.partialorder %v1957, 0.0
        %vm1973 = vcmp.gt.f32.partialorder %v1961, 0.0
        %vm1974 = vcmp.gt.f32.partialorder %v1963, 0.0
        %vm1975 = vcmp.gt.f32.partialorder %v1965, 0.0
        %vm1976 = vcmp.gt.f32.partialorder %v1967, 0.0
        %v1977 = vmin.f32 %v1951, 0.0
        %v1978 = vmin.f32 %v1953, 0.0
        %v1979 = vmin.f32 %v1955, 0.0
        %v1980 = vmin.f32 %v1957, 0.0
        %v1981 = vmin.f32 %v1961, 0.0
        %v1982 = vmin.f32 %v1963, 0.0
        %v1983 = vmin.f32 %v1965, 0.0
        %v1984 = vmin.f32 %v1967, 0.0
        %v1985 = vmul.f32 %v1977, 1.442695
        %v1986 = vpow.pop %v1985
        %v1987 = vmul.f32 %v1978, 1.442695
        %v1988 = vpow.pop %v1987
        %v1989 = vmul.f32 %v1979, 1.442695
        %v1990 = vpow.pop %v1989
        %v1991 = vmul.f32 %v1980, 1.442695
        %v1992 = vpow.pop %v1991
        %v1993 = vmul.f32 %v1981, 1.442695
        %v1994 = vpow.pop %v1993
        %v1995 = vmul.f32 %v1982, 1.442695
        %v1996 = vpow.pop %v1995
        %v1997 = vmul.f32 %v1983, 1.442695
        %v1998 = vpow.pop %v1997
        %v1999 = vmul.f32 %v1984, 1.442695
        %v2000 = vpow.pop %v1999
        %v2001 = vsub.f32 %v1986, 1.0
        %v2002 = vsub.f32 %v1988, 1.0
        %v2003 = vsub.f32 %v1990, 1.0
        %v2004 = vsub.f32 %v1992, 1.0
        %v2005 = vsub.f32 %v1994, 1.0
        %v2006 = vsub.f32 %v1996, 1.0
        %v2007 = vsub.f32 %v1998, 1.0
        %v2008 = vsub.f32 %v2000, 1.0
        %v2009 = vsel %vm1969, %v1951, %v2001
        %v2010 = vsel %vm1970, %v1953, %v2002
        %v2011 = vsel %vm1971, %v1955, %v2003
        %v2012 = vsel %vm1972, %v1957, %v2004
        %v2013 = vsel %vm1973, %v1961, %v2005
        %v2014 = vsel %vm1974, %v1963, %v2006
        %v2015 = vsel %vm1975, %v1965, %v2007
        %v2016 = vsel %vm1976, %v1967, %v2008
        %v2017 = vpack.c.bf16 %v2011, %v2009
        %v2018 = vpack.c.bf16 %v2012, %v2010
        %v2019 = vpack.c.bf16 %v2015, %v2013
        %v2020 = vpack.c.bf16 %v2016, %v2014
        %2021 = vst [vmem:[#allocation2 + $0xa0] sm:$0xff] %v2017
        %2022 = vst [vmem:[#allocation2 + $0xa8] sm:$0xff] %v2018
        %2023 = vst [vmem:[#allocation2 + $0xb0] sm:$0xff] %v2019
        %2024 = vst [vmem:[#allocation2 + $0xb8] sm:$0xff] %v2020
        %v2025 = vld [vmem:[%s334 + $0x8] sm:$0xff]
        %v2026 = vld [vmem:[%s334 + $0x20] sm:$0xff]
        %v2027 = vld [vmem:[%s334 + $0x38] sm:$0xff]
        %v2028 = vld [vmem:[%s334 + $0x50] sm:$0xff]
        %v2029 = vld [vmem:[%s334 + $0x68] sm:$0xff]
        %v2030 = vld [vmem:[%s334 + $0x80] sm:$0xff]
        %v2031 = vld [vmem:[%s334 + $0x98] sm:$0xff]
        %v2032 = vld [vmem:[%s334 + $0xb0] sm:$0xff]
        %v2033 = vld [vmem:[%s334 + $0xc8] sm:$0xff]
        %v2034 = vld [vmem:[%s334 + $0xe0] sm:$0xff]
        %v2035 = vld [vmem:[%s334 + $0xf8] sm:$0xff]
        %v2036 = vld [vmem:[%s334 + $0x110] sm:$0xff]
        %v2037 = vld [vmem:[%s334 + $0x128] sm:$0xff]
        %v2038 = vld [vmem:[%s334 + $0x140] sm:$0xff]
        %v2039 = vld [vmem:[%s334 + $0x158] sm:$0xff]
        %v2040 = vld [vmem:[%s334 + $0x170] sm:$0xff]
        %v2041 = vld [vmem:[%s334 + $0x188] sm:$0xff]
        %v2042 = vld [vmem:[%s334 + $0x1a0] sm:$0xff]
        %v2043 = vld [vmem:[%s334 + $0x1b8] sm:$0xff]
        %v2044 = vld [vmem:[%s334 + $0x1d0] sm:$0xff]
        %v2045 = vld [vmem:[%s334 + $0x1e8] sm:$0xff]
        %v2046 = vld [vmem:[%s334 + $0x200] sm:$0xff]
        %v2047 = vld [vmem:[%s334 + $0x218] sm:$0xff]
        %v2048 = vld [vmem:[%s334 + $0x230] sm:$0xff]
        %v2049 = vld [vmem:[%s334 + $0x248] sm:$0xff]
        %v2050 = vld [vmem:[%s334 + $0x260] sm:$0xff]
        %v2051 = vld [vmem:[%s334 + $0x278] sm:$0xff]
        %v2052 = vld [vmem:[%s334 + $0x290] sm:$0xff]
        %v2053 = vld [vmem:[%s334 + $0x2a8] sm:$0xff]
        %v2054 = vld [vmem:[%s334 + $0x2c0] sm:$0xff]
        %v2055 = vld [vmem:[%s334 + $0x2d8] sm:$0xff]
        %v2056 = vld [vmem:[%s334 + $0x2f0] sm:$0xff]
        %v2057 = vpack.c.bf16 %v2026, %v2025
        %v2058 = vpack.c.bf16 %v2028, %v2027
        %v2059 = vpack.c.bf16 %v2030, %v2029
        %v2060 = vpack.c.bf16 %v2032, %v2031
        %v2061 = vpack.c.bf16 %v2034, %v2033
        %v2062 = vpack.c.bf16 %v2036, %v2035
        %v2063 = vpack.c.bf16 %v2038, %v2037
        %v2064 = vpack.c.bf16 %v2040, %v2039
        %v2065 = vpack.c.bf16 %v2042, %v2041
        %v2066 = vpack.c.bf16 %v2044, %v2043
        %v2067 = vpack.c.bf16 %v2046, %v2045
        %v2068 = vpack.c.bf16 %v2048, %v2047
        %v2069 = vpack.c.bf16 %v2050, %v2049
        %v2070 = vpack.c.bf16 %v2052, %v2051
        %v2071 = vpack.c.bf16 %v2054, %v2053
        %v2072 = vpack.c.bf16 %v2056, %v2055
        %v2073 = vld [vmem:[%s1] sm:$0xf]
        %v2074 = vld [vmem:[%s1 + $0x4] sm:$0xf]
        %v2075 = vld [vmem:[%s1 + $0x8] sm:$0xf]
        %v2076 = vld [vmem:[%s1 + $0xc] sm:$0xf]
        %v2077 = vld [vmem:[%s2] sm:$0xff]
        %v2078 = vld [vmem:[%s2 + $0x8] sm:$0xff]
        %v2079 = vld [vmem:[%s2 + $0x10] sm:$0xff]
        %v2080 = vld [vmem:[%s2 + $0x18] sm:$0xff]
        %2082 = vset.pattern.permute.xlu0 0
        %2083 = vperm.xlu0 %2082, %v2077
        %v2084 = vpop.permute.xlu0 %2083
        %2087 = vset.pattern.permute.xlu0 0
        %2088 = vperm.xlu0 %2087, %v2078
        %v2089 = vpop.permute.xlu0 %2088
        %2092 = vset.pattern.permute.xlu0 0
        %2093 = vperm.xlu0 %2092, %v2079
        %v2094 = vpop.permute.xlu0 %2093
        %2097 = vset.pattern.permute.xlu0 0
        %2098 = vperm.xlu0 %2097, %v2080
        %v2099 = vpop.permute.xlu0 %2098
        %v2105 = vunpack.c.l.b16 %v2073
        %v2106 = vunpack.c.l.b16 %v2074
        %v2107 = vunpack.c.l.b16 %v2075
        %v2108 = vunpack.c.l.b16 %v2076
        %v2109 = vpack.c.b16 %v2106, %v2105
        %v2110 = vpack.c.b16 %v2108, %v2107
        %2127 = vrot.lane.b32.xlu0 %v2057, 64
        %v2128 = vpop.permute.xlu0 %2127
        %2129 = vrot.lane.b32.xlu0 %v2058, 64
        %v2130 = vpop.permute.xlu0 %2129
        %2131 = vrot.lane.b32.xlu0 %v2059, 64
        %v2132 = vpop.permute.xlu0 %2131
        %2133 = vrot.lane.b32.xlu0 %v2060, 64
        %v2134 = vpop.permute.xlu0 %2133
        %2135 = vrot.lane.b32.xlu0 %v2061, 64
        %v2136 = vpop.permute.xlu0 %2135
        %2137 = vrot.lane.b32.xlu0 %v2062, 64
        %v2138 = vpop.permute.xlu0 %2137
        %2139 = vrot.lane.b32.xlu0 %v2063, 64
        %v2140 = vpop.permute.xlu0 %2139
        %2141 = vrot.lane.b32.xlu0 %v2064, 64
        %v2142 = vpop.permute.xlu0 %2141
        %2143 = vrot.lane.b32.xlu0 %v2065, 64
        %v2144 = vpop.permute.xlu0 %2143
        %2145 = vrot.lane.b32.xlu0 %v2066, 64
        %v2146 = vpop.permute.xlu0 %2145
        %2147 = vrot.lane.b32.xlu0 %v2067, 64
        %v2148 = vpop.permute.xlu0 %2147
        %2149 = vrot.lane.b32.xlu0 %v2068, 64
        %v2150 = vpop.permute.xlu0 %2149
        %2151 = vrot.lane.b32.xlu0 %v2069, 64
        %v2152 = vpop.permute.xlu0 %2151
        %2153 = vrot.lane.b32.xlu0 %v2070, 64
        %v2154 = vpop.permute.xlu0 %2153
        %2155 = vrot.lane.b32.xlu0 %v2071, 64
        %v2156 = vpop.permute.xlu0 %2155
        %2157 = vrot.lane.b32.xlu0 %v2072, 64
        %v2158 = vpop.permute.xlu0 %2157
        %v2160 = vsel %vm424, %v2109, 0
        %v2163 = vsel %vm424, %v2110, 0
        %v2166 = vsel %vm424, %v2128, 0
        %v2169 = vsel %vm424, %v2130, 0
        %v2172 = vsel %vm424, %v2132, 0
        %v2175 = vsel %vm424, %v2134, 0
        %v2178 = vsel %vm424, %v2136, 0
        %v2181 = vsel %vm424, %v2138, 0
        %v2184 = vsel %vm424, %v2140, 0
        %v2187 = vsel %vm424, %v2142, 0
        %v2190 = vsel %vm424, %v2144, 0
        %v2193 = vsel %vm424, %v2146, 0
        %v2196 = vsel %vm424, %v2148, 0
        %v2199 = vsel %vm424, %v2150, 0
        %v2202 = vsel %vm424, %v2152, 0
        %v2205 = vsel %vm424, %v2154, 0
        %v2208 = vsel %vm424, %v2156, 0
        %v2211 = vsel %vm424, %v2158, 0
        %2213 = vmatprep.subr.bf16.mxu0 0
        %2214 = vmatpush1.bf16.xpose.msra.mxu0 %v2166
        %2215 = vmatprep.subr.bf16.mxu0 0
        %2216 = vmatpush1.bf16.xpose.msra.mxu0 %v2169
        %2217 = vmatprep.subr.bf16.mxu0 0
        %2218 = vmatpush1.bf16.xpose.msra.mxu0 %v2172
        %2219 = vmatprep.subr.bf16.mxu0 0
        %2220 = vmatpush1.bf16.xpose.msra.mxu0 %v2175
        %2221 = vmatprep.subr.bf16.mxu0 0
        %2222 = vmatpush1.bf16.xpose.msra.mxu0 %v2178
        %2223 = vmatprep.subr.bf16.mxu0 0
        %2224 = vmatpush1.bf16.xpose.msra.mxu0 %v2181
        %2225 = vmatprep.subr.bf16.mxu0 0
        %2226 = vmatpush1.bf16.xpose.msra.mxu0 %v2184
        %2227 = vmatprep.subr.bf16.mxu0 0
        %2228 = vmatpush1.bf16.xpose.msra.mxu0 %v2187
        %2229 = vmatprep.subr.bf16.mxu0 0
        %2230 = vmatpush1.bf16.xpose.msra.mxu0 %v2190
        %2231 = vmatprep.subr.bf16.mxu0 0
        %2232 = vmatpush1.bf16.xpose.msra.mxu0 %v2193
        %2233 = vmatprep.subr.bf16.mxu0 0
        %2234 = vmatpush1.bf16.xpose.msra.mxu0 %v2196
        %2235 = vmatprep.subr.bf16.mxu0 0
        %2236 = vmatpush1.bf16.xpose.msra.mxu0 %v2199
        %2237 = vmatprep.subr.bf16.mxu0 0
        %2238 = vmatpush1.bf16.xpose.msra.mxu0 %v2202
        %2239 = vmatprep.subr.bf16.mxu0 0
        %2240 = vmatpush1.bf16.xpose.msra.mxu0 %v2205
        %2241 = vmatprep.subr.bf16.mxu0 0
        %2242 = vmatpush1.bf16.xpose.msra.mxu0 %v2208
        %2243 = vmatprep.subr.bf16.mxu0 0
        %2244 = vmatpush1.bf16.xpose.msra.mxu0 %v2211
        %2245 = vmatprep.mubr.bf16.mxu0 0
        %2246 = vmatmul.mubr.bf16.gmra.mrb[0].mxu0 %v2160
        %v2247 = vpop.f32.mrb[0].mxu0
        %v2248 = vadd.f32 %v2084, %v2247
        %v2249 = vpop.f32.mrb[0].mxu0
        %v2250 = vadd.f32 %v2084, %v2249
        %v2251 = vpop.f32.mrb[0].mxu0
        %v2252 = vadd.f32 %v2089, %v2251
        %v2253 = vpop.f32.mrb[0].mxu0
        %v2254 = vadd.f32 %v2089, %v2253
        %2255 = vmatprep.mubr.bf16.mxu0 0
        %2256 = vmatmul.mubr.bf16.gmra.mrb[0].mxu0 %v2163
        %v2257 = vpop.f32.mrb[0].mxu0
        %v2258 = vadd.f32 %v2094, %v2257
        %v2259 = vpop.f32.mrb[0].mxu0
        %v2260 = vadd.f32 %v2094, %v2259
        %v2261 = vpop.f32.mrb[0].mxu0
        %v2262 = vadd.f32 %v2099, %v2261
        %v2263 = vpop.f32.mrb[0].mxu0
        %v2264 = vadd.f32 %v2099, %v2263
        %2265 = vdwg.mxu0
        %vm2266 = vcmp.gt.f32.partialorder %v2248, 0.0
        %vm2267 = vcmp.gt.f32.partialorder %v2250, 0.0
        %vm2268 = vcmp.gt.f32.partialorder %v2252, 0.0
        %vm2269 = vcmp.gt.f32.partialorder %v2254, 0.0
        %vm2270 = vcmp.gt.f32.partialorder %v2258, 0.0
        %vm2271 = vcmp.gt.f32.partialorder %v2260, 0.0
        %vm2272 = vcmp.gt.f32.partialorder %v2262, 0.0
        %vm2273 = vcmp.gt.f32.partialorder %v2264, 0.0
        %v2274 = vmin.f32 %v2248, 0.0
        %v2275 = vmin.f32 %v2250, 0.0
        %v2276 = vmin.f32 %v2252, 0.0
        %v2277 = vmin.f32 %v2254, 0.0
        %v2278 = vmin.f32 %v2258, 0.0
        %v2279 = vmin.f32 %v2260, 0.0
        %v2280 = vmin.f32 %v2262, 0.0
        %v2281 = vmin.f32 %v2264, 0.0
        %v2282 = vmul.f32 %v2274, 1.442695
        %v2283 = vpow.pop %v2282
        %v2284 = vmul.f32 %v2275, 1.442695
        %v2285 = vpow.pop %v2284
        %v2286 = vmul.f32 %v2276, 1.442695
        %v2287 = vpow.pop %v2286
        %v2288 = vmul.f32 %v2277, 1.442695
        %v2289 = vpow.pop %v2288
        %v2290 = vmul.f32 %v2278, 1.442695
        %v2291 = vpow.pop %v2290
        %v2292 = vmul.f32 %v2279, 1.442695
        %v2293 = vpow.pop %v2292
        %v2294 = vmul.f32 %v2280, 1.442695
        %v2295 = vpow.pop %v2294
        %v2296 = vmul.f32 %v2281, 1.442695
        %v2297 = vpow.pop %v2296
        %v2298 = vsub.f32 %v2283, 1.0
        %v2299 = vsub.f32 %v2285, 1.0
        %v2300 = vsub.f32 %v2287, 1.0
        %v2301 = vsub.f32 %v2289, 1.0
        %v2302 = vsub.f32 %v2291, 1.0
        %v2303 = vsub.f32 %v2293, 1.0
        %v2304 = vsub.f32 %v2295, 1.0
        %v2305 = vsub.f32 %v2297, 1.0
        %v2306 = vsel %vm2266, %v2248, %v2298
        %v2307 = vsel %vm2267, %v2250, %v2299
        %v2308 = vsel %vm2268, %v2252, %v2300
        %v2309 = vsel %vm2269, %v2254, %v2301
        %v2310 = vsel %vm2270, %v2258, %v2302
        %v2311 = vsel %vm2271, %v2260, %v2303
        %v2312 = vsel %vm2272, %v2262, %v2304
        %v2313 = vsel %vm2273, %v2264, %v2305
        %v2314 = vpack.c.bf16 %v2308, %v2306
        %v2315 = vpack.c.bf16 %v2309, %v2307
        %v2316 = vpack.c.bf16 %v2312, %v2310
        %v2317 = vpack.c.bf16 %v2313, %v2311
        %2318 = vst [vmem:[#allocation2 + $0xc0] sm:$0xff] %v2314
        %2319 = vst [vmem:[#allocation2 + $0xc8] sm:$0xff] %v2315
        %2320 = vst [vmem:[#allocation2 + $0xd0] sm:$0xff] %v2316
        %2321 = vst [vmem:[#allocation2 + $0xd8] sm:$0xff] %v2317
        %v2322 = vld [vmem:[%s334 + $0x8] sm:$0xff]
        %v2323 = vld [vmem:[%s334 + $0x20] sm:$0xff]
        %v2324 = vld [vmem:[%s334 + $0x38] sm:$0xff]
        %v2325 = vld [vmem:[%s334 + $0x50] sm:$0xff]
        %v2326 = vld [vmem:[%s334 + $0x68] sm:$0xff]
        %v2327 = vld [vmem:[%s334 + $0x80] sm:$0xff]
        %v2328 = vld [vmem:[%s334 + $0x98] sm:$0xff]
        %v2329 = vld [vmem:[%s334 + $0xb0] sm:$0xff]
        %v2330 = vld [vmem:[%s334 + $0xc8] sm:$0xff]
        %v2331 = vld [vmem:[%s334 + $0xe0] sm:$0xff]
        %v2332 = vld [vmem:[%s334 + $0xf8] sm:$0xff]
        %v2333 = vld [vmem:[%s334 + $0x110] sm:$0xff]
        %v2334 = vld [vmem:[%s334 + $0x128] sm:$0xff]
        %v2335 = vld [vmem:[%s334 + $0x140] sm:$0xff]
        %v2336 = vld [vmem:[%s334 + $0x158] sm:$0xff]
        %v2337 = vld [vmem:[%s334 + $0x170] sm:$0xff]
        %v2338 = vld [vmem:[%s334 + $0x188] sm:$0xff]
        %v2339 = vld [vmem:[%s334 + $0x1a0] sm:$0xff]
        %v2340 = vld [vmem:[%s334 + $0x1b8] sm:$0xff]
        %v2341 = vld [vmem:[%s334 + $0x1d0] sm:$0xff]
        %v2342 = vld [vmem:[%s334 + $0x1e8] sm:$0xff]
        %v2343 = vld [vmem:[%s334 + $0x200] sm:$0xff]
        %v2344 = vld [vmem:[%s334 + $0x218] sm:$0xff]
        %v2345 = vld [vmem:[%s334 + $0x230] sm:$0xff]
        %v2346 = vld [vmem:[%s334 + $0x248] sm:$0xff]
        %v2347 = vld [vmem:[%s334 + $0x260] sm:$0xff]
        %v2348 = vld [vmem:[%s334 + $0x278] sm:$0xff]
        %v2349 = vld [vmem:[%s334 + $0x290] sm:$0xff]
        %v2350 = vld [vmem:[%s334 + $0x2a8] sm:$0xff]
        %v2351 = vld [vmem:[%s334 + $0x2c0] sm:$0xff]
        %v2352 = vld [vmem:[%s334 + $0x2d8] sm:$0xff]
        %v2353 = vld [vmem:[%s334 + $0x2f0] sm:$0xff]
        %v2354 = vpack.c.bf16 %v2323, %v2322
        %v2355 = vpack.c.bf16 %v2325, %v2324
        %v2356 = vpack.c.bf16 %v2327, %v2326
        %v2357 = vpack.c.bf16 %v2329, %v2328
        %v2358 = vpack.c.bf16 %v2331, %v2330
        %v2359 = vpack.c.bf16 %v2333, %v2332
        %v2360 = vpack.c.bf16 %v2335, %v2334
        %v2361 = vpack.c.bf16 %v2337, %v2336
        %v2362 = vpack.c.bf16 %v2339, %v2338
        %v2363 = vpack.c.bf16 %v2341, %v2340
        %v2364 = vpack.c.bf16 %v2343, %v2342
        %v2365 = vpack.c.bf16 %v2345, %v2344
        %v2366 = vpack.c.bf16 %v2347, %v2346
        %v2367 = vpack.c.bf16 %v2349, %v2348
        %v2368 = vpack.c.bf16 %v2351, %v2350
        %v2369 = vpack.c.bf16 %v2353, %v2352
        %v2370 = vld [vmem:[%s1] sm:$0xf]
        %v2371 = vld [vmem:[%s1 + $0x4] sm:$0xf]
        %v2372 = vld [vmem:[%s1 + $0x8] sm:$0xf]
        %v2373 = vld [vmem:[%s1 + $0xc] sm:$0xf]
        %v2374 = vld [vmem:[%s2] sm:$0xff]
        %v2375 = vld [vmem:[%s2 + $0x8] sm:$0xff]
        %v2376 = vld [vmem:[%s2 + $0x10] sm:$0xff]
        %v2377 = vld [vmem:[%s2 + $0x18] sm:$0xff]
        %2379 = vset.pattern.permute.xlu0 0
        %2380 = vperm.xlu0 %2379, %v2374
        %v2381 = vpop.permute.xlu0 %2380
        %2384 = vset.pattern.permute.xlu0 0
        %2385 = vperm.xlu0 %2384, %v2375
        %v2386 = vpop.permute.xlu0 %2385
        %2389 = vset.pattern.permute.xlu0 0
        %2390 = vperm.xlu0 %2389, %v2376
        %v2391 = vpop.permute.xlu0 %2390
        %2394 = vset.pattern.permute.xlu0 0
        %2395 = vperm.xlu0 %2394, %v2377
        %v2396 = vpop.permute.xlu0 %2395
        %v2402 = vunpack.c.l.b16 %v2370
        %v2403 = vunpack.c.l.b16 %v2371
        %v2404 = vunpack.c.l.b16 %v2372
        %v2405 = vunpack.c.l.b16 %v2373
        %v2406 = vpack.c.b16 %v2403, %v2402
        %v2407 = vpack.c.b16 %v2405, %v2404
        %2424 = vrot.lane.b32.xlu0 %v2354, 32
        %v2425 = vpop.permute.xlu0 %2424
        %2426 = vrot.lane.b32.xlu0 %v2355, 32
        %v2427 = vpop.permute.xlu0 %2426
        %2428 = vrot.lane.b32.xlu0 %v2356, 32
        %v2429 = vpop.permute.xlu0 %2428
        %2430 = vrot.lane.b32.xlu0 %v2357, 32
        %v2431 = vpop.permute.xlu0 %2430
        %2432 = vrot.lane.b32.xlu0 %v2358, 32
        %v2433 = vpop.permute.xlu0 %2432
        %2434 = vrot.lane.b32.xlu0 %v2359, 32
        %v2435 = vpop.permute.xlu0 %2434
        %2436 = vrot.lane.b32.xlu0 %v2360, 32
        %v2437 = vpop.permute.xlu0 %2436
        %2438 = vrot.lane.b32.xlu0 %v2361, 32
        %v2439 = vpop.permute.xlu0 %2438
        %2440 = vrot.lane.b32.xlu0 %v2362, 32
        %v2441 = vpop.permute.xlu0 %2440
        %2442 = vrot.lane.b32.xlu0 %v2363, 32
        %v2443 = vpop.permute.xlu0 %2442
        %2444 = vrot.lane.b32.xlu0 %v2364, 32
        %v2445 = vpop.permute.xlu0 %2444
        %2446 = vrot.lane.b32.xlu0 %v2365, 32
        %v2447 = vpop.permute.xlu0 %2446
        %2448 = vrot.lane.b32.xlu0 %v2366, 32
        %v2449 = vpop.permute.xlu0 %2448
        %2450 = vrot.lane.b32.xlu0 %v2367, 32
        %v2451 = vpop.permute.xlu0 %2450
        %2452 = vrot.lane.b32.xlu0 %v2368, 32
        %v2453 = vpop.permute.xlu0 %2452
        %2454 = vrot.lane.b32.xlu0 %v2369, 32
        %v2455 = vpop.permute.xlu0 %2454
        %v2457 = vsel %vm424, %v2406, 0
        %v2460 = vsel %vm424, %v2407, 0
        %v2463 = vsel %vm424, %v2425, 0
        %v2466 = vsel %vm424, %v2427, 0
        %v2469 = vsel %vm424, %v2429, 0
        %v2472 = vsel %vm424, %v2431, 0
        %v2475 = vsel %vm424, %v2433, 0
        %v2478 = vsel %vm424, %v2435, 0
        %v2481 = vsel %vm424, %v2437, 0
        %v2484 = vsel %vm424, %v2439, 0
        %v2487 = vsel %vm424, %v2441, 0
        %v2490 = vsel %vm424, %v2443, 0
        %v2493 = vsel %vm424, %v2445, 0
        %v2496 = vsel %vm424, %v2447, 0
        %v2499 = vsel %vm424, %v2449, 0
        %v2502 = vsel %vm424, %v2451, 0
        %v2505 = vsel %vm424, %v2453, 0
        %v2508 = vsel %vm424, %v2455, 0
        %2510 = vmatprep.subr.bf16.mxu0 0
        %2511 = vmatpush1.bf16.xpose.msra.mxu0 %v2463
        %2512 = vmatprep.subr.bf16.mxu0 0
        %2513 = vmatpush1.bf16.xpose.msra.mxu0 %v2466
        %2514 = vmatprep.subr.bf16.mxu0 0
        %2515 = vmatpush1.bf16.xpose.msra.mxu0 %v2469
        %2516 = vmatprep.subr.bf16.mxu0 0
        %2517 = vmatpush1.bf16.xpose.msra.mxu0 %v2472
        %2518 = vmatprep.subr.bf16.mxu0 0
        %2519 = vmatpush1.bf16.xpose.msra.mxu0 %v2475
        %2520 = vmatprep.subr.bf16.mxu0 0
        %2521 = vmatpush1.bf16.xpose.msra.mxu0 %v2478
        %2522 = vmatprep.subr.bf16.mxu0 0
        %2523 = vmatpush1.bf16.xpose.msra.mxu0 %v2481
        %2524 = vmatprep.subr.bf16.mxu0 0
        %2525 = vmatpush1.bf16.xpose.msra.mxu0 %v2484
        %2526 = vmatprep.subr.bf16.mxu0 0
        %2527 = vmatpush1.bf16.xpose.msra.mxu0 %v2487
        %2528 = vmatprep.subr.bf16.mxu0 0
        %2529 = vmatpush1.bf16.xpose.msra.mxu0 %v2490
        %2530 = vmatprep.subr.bf16.mxu0 0
        %2531 = vmatpush1.bf16.xpose.msra.mxu0 %v2493
        %2532 = vmatprep.subr.bf16.mxu0 0
        %2533 = vmatpush1.bf16.xpose.msra.mxu0 %v2496
        %2534 = vmatprep.subr.bf16.mxu0 0
        %2535 = vmatpush1.bf16.xpose.msra.mxu0 %v2499
        %2536 = vmatprep.subr.bf16.mxu0 0
        %2537 = vmatpush1.bf16.xpose.msra.mxu0 %v2502
        %2538 = vmatprep.subr.bf16.mxu0 0
        %2539 = vmatpush1.bf16.xpose.msra.mxu0 %v2505
        %2540 = vmatprep.subr.bf16.mxu0 0
        %2541 = vmatpush1.bf16.xpose.msra.mxu0 %v2508
        %2542 = vmatprep.mubr.bf16.mxu0 0
        %2543 = vmatmul.mubr.bf16.gmra.mrb[0].mxu0 %v2457
        %v2544 = vpop.f32.mrb[0].mxu0
        %v2545 = vadd.f32 %v2381, %v2544
        %v2546 = vpop.f32.mrb[0].mxu0
        %v2547 = vadd.f32 %v2381, %v2546
        %v2548 = vpop.f32.mrb[0].mxu0
        %v2549 = vadd.f32 %v2386, %v2548
        %v2550 = vpop.f32.mrb[0].mxu0
        %v2551 = vadd.f32 %v2386, %v2550
        %2552 = vmatprep.mubr.bf16.mxu0 0
        %2553 = vmatmul.mubr.bf16.gmra.mrb[0].mxu0 %v2460
        %v2554 = vpop.f32.mrb[0].mxu0
        %v2555 = vadd.f32 %v2391, %v2554
        %v2556 = vpop.f32.mrb[0].mxu0
        %v2557 = vadd.f32 %v2391, %v2556
        %v2558 = vpop.f32.mrb[0].mxu0
        %v2559 = vadd.f32 %v2396, %v2558
        %v2560 = vpop.f32.mrb[0].mxu0
        %v2561 = vadd.f32 %v2396, %v2560
        %2562 = vdwg.mxu0
        %vm2563 = vcmp.gt.f32.partialorder %v2545, 0.0
        %vm2564 = vcmp.gt.f32.partialorder %v2547, 0.0
        %vm2565 = vcmp.gt.f32.partialorder %v2549, 0.0
        %vm2566 = vcmp.gt.f32.partialorder %v2551, 0.0
        %vm2567 = vcmp.gt.f32.partialorder %v2555, 0.0
        %vm2568 = vcmp.gt.f32.partialorder %v2557, 0.0
        %vm2569 = vcmp.gt.f32.partialorder %v2559, 0.0
        %vm2570 = vcmp.gt.f32.partialorder %v2561, 0.0
        %v2571 = vmin.f32 %v2545, 0.0
        %v2572 = vmin.f32 %v2547, 0.0
        %v2573 = vmin.f32 %v2549, 0.0
        %v2574 = vmin.f32 %v2551, 0.0
        %v2575 = vmin.f32 %v2555, 0.0
        %v2576 = vmin.f32 %v2557, 0.0
        %v2577 = vmin.f32 %v2559, 0.0
        %v2578 = vmin.f32 %v2561, 0.0
        %v2579 = vmul.f32 %v2571, 1.442695
        %v2580 = vpow.pop %v2579
        %v2581 = vmul.f32 %v2572, 1.442695
        %v2582 = vpow.pop %v2581
        %v2583 = vmul.f32 %v2573, 1.442695
        %v2584 = vpow.pop %v2583
        %v2585 = vmul.f32 %v2574, 1.442695
        %v2586 = vpow.pop %v2585
        %v2587 = vmul.f32 %v2575, 1.442695
        %v2588 = vpow.pop %v2587
        %v2589 = vmul.f32 %v2576, 1.442695
        %v2590 = vpow.pop %v2589
        %v2591 = vmul.f32 %v2577, 1.442695
        %v2592 = vpow.pop %v2591
        %v2593 = vmul.f32 %v2578, 1.442695
        %v2594 = vpow.pop %v2593
        %v2595 = vsub.f32 %v2580, 1.0
        %v2596 = vsub.f32 %v2582, 1.0
        %v2597 = vsub.f32 %v2584, 1.0
        %v2598 = vsub.f32 %v2586, 1.0
        %v2599 = vsub.f32 %v2588, 1.0
        %v2600 = vsub.f32 %v2590, 1.0
        %v2601 = vsub.f32 %v2592, 1.0
        %v2602 = vsub.f32 %v2594, 1.0
        %v2603 = vsel %vm2563, %v2545, %v2595
        %v2604 = vsel %vm2564, %v2547, %v2596
        %v2605 = vsel %vm2565, %v2549, %v2597
        %v2606 = vsel %vm2566, %v2551, %v2598
        %v2607 = vsel %vm2567, %v2555, %v2599
        %v2608 = vsel %vm2568, %v2557, %v2600
        %v2609 = vsel %vm2569, %v2559, %v2601
        %v2610 = vsel %vm2570, %v2561, %v2602
        %v2611 = vpack.c.bf16 %v2605, %v2603
        %v2612 = vpack.c.bf16 %v2606, %v2604
        %v2613 = vpack.c.bf16 %v2609, %v2607
        %v2614 = vpack.c.bf16 %v2610, %v2608
        %2615 = vst [vmem:[#allocation2 + $0xe0] sm:$0xff] %v2611
        %2616 = vst [vmem:[#allocation2 + $0xe8] sm:$0xff] %v2612
        %2617 = vst [vmem:[#allocation2 + $0xf0] sm:$0xff] %v2613
        %2618 = vst [vmem:[#allocation2 + $0xf8] sm:$0xff] %v2614
        %v2619 = vld [vmem:[%s334 + $0x10] sm:$0xff]
        %v2620 = vld [vmem:[%s334 + $0x28] sm:$0xff]
        %v2621 = vld [vmem:[%s334 + $0x40] sm:$0xff]
        %v2622 = vld [vmem:[%s334 + $0x58] sm:$0xff]
        %v2623 = vld [vmem:[%s334 + $0x70] sm:$0xff]
        %v2624 = vld [vmem:[%s334 + $0x88] sm:$0xff]
        %v2625 = vld [vmem:[%s334 + $0xa0] sm:$0xff]
        %v2626 = vld [vmem:[%s334 + $0xb8] sm:$0xff]
        %v2627 = vld [vmem:[%s334 + $0xd0] sm:$0xff]
        %v2628 = vld [vmem:[%s334 + $0xe8] sm:$0xff]
        %v2629 = vld [vmem:[%s334 + $0x100] sm:$0xff]
        %v2630 = vld [vmem:[%s334 + $0x118] sm:$0xff]
        %v2631 = vld [vmem:[%s334 + $0x130] sm:$0xff]
        %v2632 = vld [vmem:[%s334 + $0x148] sm:$0xff]
        %v2633 = vld [vmem:[%s334 + $0x160] sm:$0xff]
        %v2634 = vld [vmem:[%s334 + $0x178] sm:$0xff]
        %v2635 = vld [vmem:[%s334 + $0x190] sm:$0xff]
        %v2636 = vld [vmem:[%s334 + $0x1a8] sm:$0xff]
        %v2637 = vld [vmem:[%s334 + $0x1c0] sm:$0xff]
        %v2638 = vld [vmem:[%s334 + $0x1d8] sm:$0xff]
        %v2639 = vld [vmem:[%s334 + $0x1f0] sm:$0xff]
        %v2640 = vld [vmem:[%s334 + $0x208] sm:$0xff]
        %v2641 = vld [vmem:[%s334 + $0x220] sm:$0xff]
        %v2642 = vld [vmem:[%s334 + $0x238] sm:$0xff]
        %v2643 = vld [vmem:[%s334 + $0x250] sm:$0xff]
        %v2644 = vld [vmem:[%s334 + $0x268] sm:$0xff]
        %v2645 = vld [vmem:[%s334 + $0x280] sm:$0xff]
        %v2646 = vld [vmem:[%s334 + $0x298] sm:$0xff]
        %v2647 = vld [vmem:[%s334 + $0x2b0] sm:$0xff]
        %v2648 = vld [vmem:[%s334 + $0x2c8] sm:$0xff]
        %v2649 = vld [vmem:[%s334 + $0x2e0] sm:$0xff]
        %v2650 = vld [vmem:[%s334 + $0x2f8] sm:$0xff]
        %v2651 = vpack.c.bf16 %v2620, %v2619
        %v2652 = vpack.c.bf16 %v2622, %v2621
        %v2653 = vpack.c.bf16 %v2624, %v2623
        %v2654 = vpack.c.bf16 %v2626, %v2625
        %v2655 = vpack.c.bf16 %v2628, %v2627
        %v2656 = vpack.c.bf16 %v2630, %v2629
        %v2657 = vpack.c.bf16 %v2632, %v2631
        %v2658 = vpack.c.bf16 %v2634, %v2633
        %v2659 = vpack.c.bf16 %v2636, %v2635
        %v2660 = vpack.c.bf16 %v2638, %v2637
        %v2661 = vpack.c.bf16 %v2640, %v2639
        %v2662 = vpack.c.bf16 %v2642, %v2641
        %v2663 = vpack.c.bf16 %v2644, %v2643
        %v2664 = vpack.c.bf16 %v2646, %v2645
        %v2665 = vpack.c.bf16 %v2648, %v2647
        %v2666 = vpack.c.bf16 %v2650, %v2649
        %v2667 = vld [vmem:[%s1] sm:$0xf]
        %v2668 = vld [vmem:[%s1 + $0x4] sm:$0xf]
        %v2669 = vld [vmem:[%s1 + $0x8] sm:$0xf]
        %v2670 = vld [vmem:[%s1 + $0xc] sm:$0xf]
        %v2671 = vld [vmem:[%s2] sm:$0xff]
        %v2672 = vld [vmem:[%s2 + $0x8] sm:$0xff]
        %v2673 = vld [vmem:[%s2 + $0x10] sm:$0xff]
        %v2674 = vld [vmem:[%s2 + $0x18] sm:$0xff]
        %2676 = vset.pattern.permute.xlu0 0
        %2677 = vperm.xlu0 %2676, %v2671
        %v2678 = vpop.permute.xlu0 %2677
        %2681 = vset.pattern.permute.xlu0 0
        %2682 = vperm.xlu0 %2681, %v2672
        %v2683 = vpop.permute.xlu0 %2682
        %2686 = vset.pattern.permute.xlu0 0
        %2687 = vperm.xlu0 %2686, %v2673
        %v2688 = vpop.permute.xlu0 %2687
        %2691 = vset.pattern.permute.xlu0 0
        %2692 = vperm.xlu0 %2691, %v2674
        %v2693 = vpop.permute.xlu0 %2692
        %v2699 = vunpack.c.l.b16 %v2667
        %v2700 = vunpack.c.l.b16 %v2668
        %v2701 = vunpack.c.l.b16 %v2669
        %v2702 = vunpack.c.l.b16 %v2670
        %v2703 = vpack.c.b16 %v2700, %v2699
        %v2704 = vpack.c.b16 %v2702, %v2701
        %v2706 = vsel %vm424, %v2703, 0
        %v2709 = vsel %vm424, %v2704, 0
        %v2712 = vsel %vm424, %v2651, 0
        %v2715 = vsel %vm424, %v2652, 0
        %v2718 = vsel %vm424, %v2653, 0
        %v2721 = vsel %vm424, %v2654, 0
        %v2724 = vsel %vm424, %v2655, 0
        %v2727 = vsel %vm424, %v2656, 0
        %v2730 = vsel %vm424, %v2657, 0
        %v2733 = vsel %vm424, %v2658, 0
        %v2736 = vsel %vm424, %v2659, 0
        %v2739 = vsel %vm424, %v2660, 0
        %v2742 = vsel %vm424, %v2661, 0
        %v2745 = vsel %vm424, %v2662, 0
        %v2748 = vsel %vm424, %v2663, 0
        %v2751 = vsel %vm424, %v2664, 0
        %v2754 = vsel %vm424, %v2665, 0
        %v2757 = vsel %vm424, %v2666, 0
        %2759 = vmatprep.subr.bf16.mxu0 0
        %2760 = vmatpush1.bf16.xpose.msra.mxu0 %v2712
        %2761 = vmatprep.subr.bf16.mxu0 0
        %2762 = vmatpush1.bf16.xpose.msra.mxu0 %v2715
        %2763 = vmatprep.subr.bf16.mxu0 0
        %2764 = vmatpush1.bf16.xpose.msra.mxu0 %v2718
        %2765 = vmatprep.subr.bf16.mxu0 0
        %2766 = vmatpush1.bf16.xpose.msra.mxu0 %v2721
        %2767 = vmatprep.subr.bf16.mxu0 0
        %2768 = vmatpush1.bf16.xpose.msra.mxu0 %v2724
        %2769 = vmatprep.subr.bf16.mxu0 0
        %2770 = vmatpush1.bf16.xpose.msra.mxu0 %v2727
        %2771 = vmatprep.subr.bf16.mxu0 0
        %2772 = vmatpush1.bf16.xpose.msra.mxu0 %v2730
        %2773 = vmatprep.subr.bf16.mxu0 0
        %2774 = vmatpush1.bf16.xpose.msra.mxu0 %v2733
        %2775 = vmatprep.subr.bf16.mxu0 0
        %2776 = vmatpush1.bf16.xpose.msra.mxu0 %v2736
        %2777 = vmatprep.subr.bf16.mxu0 0
        %2778 = vmatpush1.bf16.xpose.msra.mxu0 %v2739
        %2779 = vmatprep.subr.bf16.mxu0 0
        %2780 = vmatpush1.bf16.xpose.msra.mxu0 %v2742
        %2781 = vmatprep.subr.bf16.mxu0 0
        %2782 = vmatpush1.bf16.xpose.msra.mxu0 %v2745
        %2783 = vmatprep.subr.bf16.mxu0 0
        %2784 = vmatpush1.bf16.xpose.msra.mxu0 %v2748
        %2785 = vmatprep.subr.bf16.mxu0 0
        %2786 = vmatpush1.bf16.xpose.msra.mxu0 %v2751
        %2787 = vmatprep.subr.bf16.mxu0 0
        %2788 = vmatpush1.bf16.xpose.msra.mxu0 %v2754
        %2789 = vmatprep.subr.bf16.mxu0 0
        %2790 = vmatpush1.bf16.xpose.msra.mxu0 %v2757
        %2791 = vmatprep.mubr.bf16.mxu0 0
        %2792 = vmatmul.mubr.bf16.gmra.mrb[0].mxu0 %v2706
        %v2793 = vpop.f32.mrb[0].mxu0
        %v2794 = vadd.f32 %v2678, %v2793
        %v2795 = vpop.f32.mrb[0].mxu0
        %v2796 = vadd.f32 %v2678, %v2795
        %v2797 = vpop.f32.mrb[0].mxu0
        %v2798 = vadd.f32 %v2683, %v2797
        %v2799 = vpop.f32.mrb[0].mxu0
        %v2800 = vadd.f32 %v2683, %v2799
        %2801 = vmatprep.mubr.bf16.mxu0 0
        %2802 = vmatmul.mubr.bf16.gmra.mrb[0].mxu0 %v2709
        %v2803 = vpop.f32.mrb[0].mxu0
        %v2804 = vadd.f32 %v2688, %v2803
        %v2805 = vpop.f32.mrb[0].mxu0
        %v2806 = vadd.f32 %v2688, %v2805
        %v2807 = vpop.f32.mrb[0].mxu0
        %v2808 = vadd.f32 %v2693, %v2807
        %v2809 = vpop.f32.mrb[0].mxu0
        %v2810 = vadd.f32 %v2693, %v2809
        %2811 = vdwg.mxu0
        %vm2812 = vcmp.gt.f32.partialorder %v2794, 0.0
        %vm2813 = vcmp.gt.f32.partialorder %v2796, 0.0
        %vm2814 = vcmp.gt.f32.partialorder %v2798, 0.0
        %vm2815 = vcmp.gt.f32.partialorder %v2800, 0.0
        %vm2816 = vcmp.gt.f32.partialorder %v2804, 0.0
        %vm2817 = vcmp.gt.f32.partialorder %v2806, 0.0
        %vm2818 = vcmp.gt.f32.partialorder %v2808, 0.0
        %vm2819 = vcmp.gt.f32.partialorder %v2810, 0.0
        %v2820 = vmin.f32 %v2794, 0.0
        %v2821 = vmin.f32 %v2796, 0.0
        %v2822 = vmin.f32 %v2798, 0.0
        %v2823 = vmin.f32 %v2800, 0.0
        %v2824 = vmin.f32 %v2804, 0.0
        %v2825 = vmin.f32 %v2806, 0.0
        %v2826 = vmin.f32 %v2808, 0.0
        %v2827 = vmin.f32 %v2810, 0.0
        %v2828 = vmul.f32 %v2820, 1.442695
        %v2829 = vpow.pop %v2828
        %v2830 = vmul.f32 %v2821, 1.442695
        %v2831 = vpow.pop %v2830
        %v2832 = vmul.f32 %v2822, 1.442695
        %v2833 = vpow.pop %v2832
        %v2834 = vmul.f32 %v2823, 1.442695
        %v2835 = vpow.pop %v2834
        %v2836 = vmul.f32 %v2824, 1.442695
        %v2837 = vpow.pop %v2836
        %v2838 = vmul.f32 %v2825, 1.442695
        %v2839 = vpow.pop %v2838
        %v2840 = vmul.f32 %v2826, 1.442695
        %v2841 = vpow.pop %v2840
        %v2842 = vmul.f32 %v2827, 1.442695
        %v2843 = vpow.pop %v2842
        %v2844 = vsub.f32 %v2829, 1.0
        %v2845 = vsub.f32 %v2831, 1.0
        %v2846 = vsub.f32 %v2833, 1.0
        %v2847 = vsub.f32 %v2835, 1.0
        %v2848 = vsub.f32 %v2837, 1.0
        %v2849 = vsub.f32 %v2839, 1.0
        %v2850 = vsub.f32 %v2841, 1.0
        %v2851 = vsub.f32 %v2843, 1.0
        %v2852 = vsel %vm2812, %v2794, %v2844
        %v2853 = vsel %vm2813, %v2796, %v2845
        %v2854 = vsel %vm2814, %v2798, %v2846
        %v2855 = vsel %vm2815, %v2800, %v2847
        %v2856 = vsel %vm2816, %v2804, %v2848
        %v2857 = vsel %vm2817, %v2806, %v2849
        %v2858 = vsel %vm2818, %v2808, %v2850
        %v2859 = vsel %vm2819, %v2810, %v2851
        %v2860 = vpack.c.bf16 %v2854, %v2852
        %v2861 = vpack.c.bf16 %v2855, %v2853
        %v2862 = vpack.c.bf16 %v2858, %v2856
        %v2863 = vpack.c.bf16 %v2859, %v2857
        %2864 = vst [vmem:[#allocation2 + $0x100] sm:$0xff] %v2860
        %2865 = vst [vmem:[#allocation2 + $0x108] sm:$0xff] %v2861
        %2866 = vst [vmem:[#allocation2 + $0x110] sm:$0xff] %v2862
        %2867 = vst [vmem:[#allocation2 + $0x118] sm:$0xff] %v2863
        %v2868 = vld [vmem:[%s334 + $0x10] sm:$0xff]
        %v2869 = vld [vmem:[%s334 + $0x28] sm:$0xff]
        %v2870 = vld [vmem:[%s334 + $0x40] sm:$0xff]
        %v2871 = vld [vmem:[%s334 + $0x58] sm:$0xff]
        %v2872 = vld [vmem:[%s334 + $0x70] sm:$0xff]
        %v2873 = vld [vmem:[%s334 + $0x88] sm:$0xff]
        %v2874 = vld [vmem:[%s334 + $0xa0] sm:$0xff]
        %v2875 = vld [vmem:[%s334 + $0xb8] sm:$0xff]
        %v2876 = vld [vmem:[%s334 + $0xd0] sm:$0xff]
        %v2877 = vld [vmem:[%s334 + $0xe8] sm:$0xff]
        %v2878 = vld [vmem:[%s334 + $0x100] sm:$0xff]
        %v2879 = vld [vmem:[%s334 + $0x118] sm:$0xff]
        %v2880 = vld [vmem:[%s334 + $0x130] sm:$0xff]
        %v2881 = vld [vmem:[%s334 + $0x148] sm:$0xff]
        %v2882 = vld [vmem:[%s334 + $0x160] sm:$0xff]
        %v2883 = vld [vmem:[%s334 + $0x178] sm:$0xff]
        %v2884 = vld [vmem:[%s334 + $0x190] sm:$0xff]
        %v2885 = vld [vmem:[%s334 + $0x1a8] sm:$0xff]
        %v2886 = vld [vmem:[%s334 + $0x1c0] sm:$0xff]
        %v2887 = vld [vmem:[%s334 + $0x1d8] sm:$0xff]
        %v2888 = vld [vmem:[%s334 + $0x1f0] sm:$0xff]
        %v2889 = vld [vmem:[%s334 + $0x208] sm:$0xff]
        %v2890 = vld [vmem:[%s334 + $0x220] sm:$0xff]
        %v2891 = vld [vmem:[%s334 + $0x238] sm:$0xff]
        %v2892 = vld [vmem:[%s334 + $0x250] sm:$0xff]
        %v2893 = vld [vmem:[%s334 + $0x268] sm:$0xff]
        %v2894 = vld [vmem:[%s334 + $0x280] sm:$0xff]
        %v2895 = vld [vmem:[%s334 + $0x298] sm:$0xff]
        %v2896 = vld [vmem:[%s334 + $0x2b0] sm:$0xff]
        %v2897 = vld [vmem:[%s334 + $0x2c8] sm:$0xff]
        %v2898 = vld [vmem:[%s334 + $0x2e0] sm:$0xff]
        %v2899 = vld [vmem:[%s334 + $0x2f8] sm:$0xff]
        %v2900 = vpack.c.bf16 %v2869, %v2868
        %v2901 = vpack.c.bf16 %v2871, %v2870
        %v2902 = vpack.c.bf16 %v2873, %v2872
        %v2903 = vpack.c.bf16 %v2875, %v2874
        %v2904 = vpack.c.bf16 %v2877, %v2876
        %v2905 = vpack.c.bf16 %v2879, %v2878
        %v2906 = vpack.c.bf16 %v2881, %v2880
        %v2907 = vpack.c.bf16 %v2883, %v2882
        %v2908 = vpack.c.bf16 %v2885, %v2884
        %v2909 = vpack.c.bf16 %v2887, %v2886
        %v2910 = vpack.c.bf16 %v2889, %v2888
        %v2911 = vpack.c.bf16 %v2891, %v2890
        %v2912 = vpack.c.bf16 %v2893, %v2892
        %v2913 = vpack.c.bf16 %v2895, %v2894
        %v2914 = vpack.c.bf16 %v2897, %v2896
        %v2915 = vpack.c.bf16 %v2899, %v2898
        %v2916 = vld [vmem:[%s1] sm:$0xf]
        %v2917 = vld [vmem:[%s1 + $0x4] sm:$0xf]
        %v2918 = vld [vmem:[%s1 + $0x8] sm:$0xf]
        %v2919 = vld [vmem:[%s1 + $0xc] sm:$0xf]
        %v2920 = vld [vmem:[%s2] sm:$0xff]
        %v2921 = vld [vmem:[%s2 + $0x8] sm:$0xff]
        %v2922 = vld [vmem:[%s2 + $0x10] sm:$0xff]
        %v2923 = vld [vmem:[%s2 + $0x18] sm:$0xff]
        %2925 = vset.pattern.permute.xlu0 0
        %2926 = vperm.xlu0 %2925, %v2920
        %v2927 = vpop.permute.xlu0 %2926
        %2930 = vset.pattern.permute.xlu0 0
        %2931 = vperm.xlu0 %2930, %v2921
        %v2932 = vpop.permute.xlu0 %2931
        %2935 = vset.pattern.permute.xlu0 0
        %2936 = vperm.xlu0 %2935, %v2922
        %v2937 = vpop.permute.xlu0 %2936
        %2940 = vset.pattern.permute.xlu0 0
        %2941 = vperm.xlu0 %2940, %v2923
        %v2942 = vpop.permute.xlu0 %2941
        %v2948 = vunpack.c.l.b16 %v2916
        %v2949 = vunpack.c.l.b16 %v2917
        %v2950 = vunpack.c.l.b16 %v2918
        %v2951 = vunpack.c.l.b16 %v2919
        %v2952 = vpack.c.b16 %v2949, %v2948
        %v2953 = vpack.c.b16 %v2951, %v2950
        %2970 = vrot.lane.b32.xlu0 %v2900, 96
        %v2971 = vpop.permute.xlu0 %2970
        %2972 = vrot.lane.b32.xlu0 %v2901, 96
        %v2973 = vpop.permute.xlu0 %2972
        %2974 = vrot.lane.b32.xlu0 %v2902, 96
        %v2975 = vpop.permute.xlu0 %2974
        %2976 = vrot.lane.b32.xlu0 %v2903, 96
        %v2977 = vpop.permute.xlu0 %2976
        %2978 = vrot.lane.b32.xlu0 %v2904, 96
        %v2979 = vpop.permute.xlu0 %2978
        %2980 = vrot.lane.b32.xlu0 %v2905, 96
        %v2981 = vpop.permute.xlu0 %2980
        %2982 = vrot.lane.b32.xlu0 %v2906, 96
        %v2983 = vpop.permute.xlu0 %2982
        %2984 = vrot.lane.b32.xlu0 %v2907, 96
        %v2985 = vpop.permute.xlu0 %2984
        %2986 = vrot.lane.b32.xlu0 %v2908, 96
        %v2987 = vpop.permute.xlu0 %2986
        %2988 = vrot.lane.b32.xlu0 %v2909, 96
        %v2989 = vpop.permute.xlu0 %2988
        %2990 = vrot.lane.b32.xlu0 %v2910, 96
        %v2991 = vpop.permute.xlu0 %2990
        %2992 = vrot.lane.b32.xlu0 %v2911, 96
        %v2993 = vpop.permute.xlu0 %2992
        %2994 = vrot.lane.b32.xlu0 %v2912, 96
        %v2995 = vpop.permute.xlu0 %2994
        %2996 = vrot.lane.b32.xlu0 %v2913, 96
        %v2997 = vpop.permute.xlu0 %2996
        %2998 = vrot.lane.b32.xlu0 %v2914, 96
        %v2999 = vpop.permute.xlu0 %2998
        %3000 = vrot.lane.b32.xlu0 %v2915, 96
        %v3001 = vpop.permute.xlu0 %3000
        %v3003 = vsel %vm424, %v2952, 0
        %v3006 = vsel %vm424, %v2953, 0
        %v3009 = vsel %vm424, %v2971, 0
        %v3012 = vsel %vm424, %v2973, 0
        %v3015 = vsel %vm424, %v2975, 0
        %v3018 = vsel %vm424, %v2977, 0
        %v3021 = vsel %vm424, %v2979, 0
        %v3024 = vsel %vm424, %v2981, 0
        %v3027 = vsel %vm424, %v2983, 0
        %v3030 = vsel %vm424, %v2985, 0
        %v3033 = vsel %vm424, %v2987, 0
        %v3036 = vsel %vm424, %v2989, 0
        %v3039 = vsel %vm424, %v2991, 0
        %v3042 = vsel %vm424, %v2993, 0
        %v3045 = vsel %vm424, %v2995, 0
        %v3048 = vsel %vm424, %v2997, 0
        %v3051 = vsel %vm424, %v2999, 0
        %v3054 = vsel %vm424, %v3001, 0
        %3056 = vmatprep.subr.bf16.mxu0 0
        %3057 = vmatpush1.bf16.xpose.msra.mxu0 %v3009
        %3058 = vmatprep.subr.bf16.mxu0 0
        %3059 = vmatpush1.bf16.xpose.msra.mxu0 %v3012
        %3060 = vmatprep.subr.bf16.mxu0 0
        %3061 = vmatpush1.bf16.xpose.msra.mxu0 %v3015
        %3062 = vmatprep.subr.bf16.mxu0 0
        %3063 = vmatpush1.bf16.xpose.msra.mxu0 %v3018
        %3064 = vmatprep.subr.bf16.mxu0 0
        %3065 = vmatpush1.bf16.xpose.msra.mxu0 %v3021
        %3066 = vmatprep.subr.bf16.mxu0 0
        %3067 = vmatpush1.bf16.xpose.msra.mxu0 %v3024
        %3068 = vmatprep.subr.bf16.mxu0 0
        %3069 = vmatpush1.bf16.xpose.msra.mxu0 %v3027
        %3070 = vmatprep.subr.bf16.mxu0 0
        %3071 = vmatpush1.bf16.xpose.msra.mxu0 %v3030
        %3072 = vmatprep.subr.bf16.mxu0 0
        %3073 = vmatpush1.bf16.xpose.msra.mxu0 %v3033
        %3074 = vmatprep.subr.bf16.mxu0 0
        %3075 = vmatpush1.bf16.xpose.msra.mxu0 %v3036
        %3076 = vmatprep.subr.bf16.mxu0 0
        %3077 = vmatpush1.bf16.xpose.msra.mxu0 %v3039
        %3078 = vmatprep.subr.bf16.mxu0 0
        %3079 = vmatpush1.bf16.xpose.msra.mxu0 %v3042
        %3080 = vmatprep.subr.bf16.mxu0 0
        %3081 = vmatpush1.bf16.xpose.msra.mxu0 %v3045
        %3082 = vmatprep.subr.bf16.mxu0 0
        %3083 = vmatpush1.bf16.xpose.msra.mxu0 %v3048
        %3084 = vmatprep.subr.bf16.mxu0 0
        %3085 = vmatpush1.bf16.xpose.msra.mxu0 %v3051
        %3086 = vmatprep.subr.bf16.mxu0 0
        %3087 = vmatpush1.bf16.xpose.msra.mxu0 %v3054
        %3088 = vmatprep.mubr.bf16.mxu0 0
        %3089 = vmatmul.mubr.bf16.gmra.mrb[0].mxu0 %v3003
        %v3090 = vpop.f32.mrb[0].mxu0
        %v3091 = vadd.f32 %v2927, %v3090
        %v3092 = vpop.f32.mrb[0].mxu0
        %v3093 = vadd.f32 %v2927, %v3092
        %v3094 = vpop.f32.mrb[0].mxu0
        %v3095 = vadd.f32 %v2932, %v3094
        %v3096 = vpop.f32.mrb[0].mxu0
        %v3097 = vadd.f32 %v2932, %v3096
        %3098 = vmatprep.mubr.bf16.mxu0 0
        %3099 = vmatmul.mubr.bf16.gmra.mrb[0].mxu0 %v3006
        %v3100 = vpop.f32.mrb[0].mxu0
        %v3101 = vadd.f32 %v2937, %v3100
        %v3102 = vpop.f32.mrb[0].mxu0
        %v3103 = vadd.f32 %v2937, %v3102
        %v3104 = vpop.f32.mrb[0].mxu0
        %v3105 = vadd.f32 %v2942, %v3104
        %v3106 = vpop.f32.mrb[0].mxu0
        %v3107 = vadd.f32 %v2942, %v3106
        %3108 = vdwg.mxu0
        %vm3109 = vcmp.gt.f32.partialorder %v3091, 0.0
        %vm3110 = vcmp.gt.f32.partialorder %v3093, 0.0
        %vm3111 = vcmp.gt.f32.partialorder %v3095, 0.0
        %vm3112 = vcmp.gt.f32.partialorder %v3097, 0.0
        %vm3113 = vcmp.gt.f32.partialorder %v3101, 0.0
        %vm3114 = vcmp.gt.f32.partialorder %v3103, 0.0
        %vm3115 = vcmp.gt.f32.partialorder %v3105, 0.0
        %vm3116 = vcmp.gt.f32.partialorder %v3107, 0.0
        %v3117 = vmin.f32 %v3091, 0.0
        %v3118 = vmin.f32 %v3093, 0.0
        %v3119 = vmin.f32 %v3095, 0.0
        %v3120 = vmin.f32 %v3097, 0.0
        %v3121 = vmin.f32 %v3101, 0.0
        %v3122 = vmin.f32 %v3103, 0.0
        %v3123 = vmin.f32 %v3105, 0.0
        %v3124 = vmin.f32 %v3107, 0.0
        %v3125 = vmul.f32 %v3117, 1.442695
        %v3126 = vpow.pop %v3125
        %v3127 = vmul.f32 %v3118, 1.442695
        %v3128 = vpow.pop %v3127
        %v3129 = vmul.f32 %v3119, 1.442695
        %v3130 = vpow.pop %v3129
        %v3131 = vmul.f32 %v3120, 1.442695
        %v3132 = vpow.pop %v3131
        %v3133 = vmul.f32 %v3121, 1.442695
        %v3134 = vpow.pop %v3133
        %v3135 = vmul.f32 %v3122, 1.442695
        %v3136 = vpow.pop %v3135
        %v3137 = vmul.f32 %v3123, 1.442695
        %v3138 = vpow.pop %v3137
        %v3139 = vmul.f32 %v3124, 1.442695
        %v3140 = vpow.pop %v3139
        %v3141 = vsub.f32 %v3126, 1.0
        %v3142 = vsub.f32 %v3128, 1.0
        %v3143 = vsub.f32 %v3130, 1.0
        %v3144 = vsub.f32 %v3132, 1.0
        %v3145 = vsub.f32 %v3134, 1.0
        %v3146 = vsub.f32 %v3136, 1.0
        %v3147 = vsub.f32 %v3138, 1.0
        %v3148 = vsub.f32 %v3140, 1.0
        %v3149 = vsel %vm3109, %v3091, %v3141
        %v3150 = vsel %vm3110, %v3093, %v3142
        %v3151 = vsel %vm3111, %v3095, %v3143
        %v3152 = vsel %vm3112, %v3097, %v3144
        %v3153 = vsel %vm3113, %v3101, %v3145
        %v3154 = vsel %vm3114, %v3103, %v3146
        %v3155 = vsel %vm3115, %v3105, %v3147
        %v3156 = vsel %vm3116, %v3107, %v3148
        %v3157 = vpack.c.bf16 %v3151, %v3149
        %v3158 = vpack.c.bf16 %v3152, %v3150
        %v3159 = vpack.c.bf16 %v3155, %v3153
        %v3160 = vpack.c.bf16 %v3156, %v3154
        %3161 = vst [vmem:[#allocation2 + $0x120] sm:$0xff] %v3157
        %3162 = vst [vmem:[#allocation2 + $0x128] sm:$0xff] %v3158
        %3163 = vst [vmem:[#allocation2 + $0x130] sm:$0xff] %v3159
        %3164 = vst [vmem:[#allocation2 + $0x138] sm:$0xff] %v3160
        %v3165 = vld [vmem:[#allocation2] sm:$0xff]
        %v3166 = vld [vmem:[#allocation2 + $0x8] sm:$0xff]
        %v3167 = vld [vmem:[#allocation2 + $0x10] sm:$0xff]
        %v3168 = vld [vmem:[#allocation2 + $0x18] sm:$0xff]
        %v3169 = vld [vmem:[#allocation2 + $0x20] sm:$0xff]
        %v3170 = vld [vmem:[#allocation2 + $0x28] sm:$0xff]
        %v3171 = vld [vmem:[#allocation2 + $0x30] sm:$0xff]
        %v3172 = vld [vmem:[#allocation2 + $0x38] sm:$0xff]
        %v3173 = vld [vmem:[#allocation2 + $0x40] sm:$0xff]
        %v3174 = vld [vmem:[#allocation2 + $0x48] sm:$0xff]
        %v3175 = vld [vmem:[#allocation2 + $0x50] sm:$0xff]
        %v3176 = vld [vmem:[#allocation2 + $0x58] sm:$0xff]
        %v3177 = vld [vmem:[#allocation2 + $0x60] sm:$0xff]
        %v3178 = vld [vmem:[#allocation2 + $0x68] sm:$0xff]
        %v3179 = vld [vmem:[#allocation2 + $0x70] sm:$0xff]
        %v3180 = vld [vmem:[#allocation2 + $0x78] sm:$0xff]
        %v3181 = vld [vmem:[%s3] sm:$0xf]
        %v3182 = vld [vmem:[%s3 + $0x4] sm:$0xf]
        %v3183 = vld [vmem:[%s3 + $0x8] sm:$0xf]
        %v3184 = vld [vmem:[%s3 + $0xc] sm:$0xf]
        %v3185 = vld [vmem:[%s4] sm:$0xff]
        %v3186 = vld [vmem:[%s4 + $0x8] sm:$0xff]
        %v3187 = vld [vmem:[%s4 + $0x10] sm:$0xff]
        %v3188 = vld [vmem:[%s4 + $0x18] sm:$0xff]
        %3190 = vset.pattern.permute.xlu0 0
        %3191 = vperm.xlu0 %3190, %v3185
        %v3192 = vpop.permute.xlu0 %3191
        %3195 = vset.pattern.permute.xlu0 0
        %3196 = vperm.xlu0 %3195, %v3186
        %v3197 = vpop.permute.xlu0 %3196
        %3200 = vset.pattern.permute.xlu0 0
        %3201 = vperm.xlu0 %3200, %v3187
        %v3202 = vpop.permute.xlu0 %3201
        %3205 = vset.pattern.permute.xlu0 0
        %3206 = vperm.xlu0 %3205, %v3188
        %v3207 = vpop.permute.xlu0 %3206
        %v3213 = vunpack.c.l.b16 %v3181
        %v3214 = vunpack.c.l.b16 %v3182
        %v3215 = vunpack.c.l.b16 %v3183
        %v3216 = vunpack.c.l.b16 %v3184
        %v3217 = vpack.c.b16 %v3214, %v3213
        %v3218 = vpack.c.b16 %v3216, %v3215
        %3221 = vmatprep.subr.bf16.mxu0 %v3166
        %3222 = vmatpush1.bf16.msra.mxu0 %v3165
        %3223 = vmatprep.subr.bf16.mxu0 %v3168
        %3224 = vmatpush1.bf16.msra.mxu0 %v3167
        %3225 = vmatprep.subr.bf16.mxu0 %v3170
        %3226 = vmatpush1.bf16.msra.mxu0 %v3169
        %3227 = vmatprep.subr.bf16.mxu0 %v3172
        %3228 = vmatpush1.bf16.msra.mxu0 %v3171
        %3229 = vmatprep.subr.bf16.mxu0 %v3174
        %3230 = vmatpush1.bf16.msra.mxu0 %v3173
        %3231 = vmatprep.subr.bf16.mxu0 %v3176
        %3232 = vmatpush1.bf16.msra.mxu0 %v3175
        %3233 = vmatprep.subr.bf16.mxu0 %v3178
        %3234 = vmatpush1.bf16.msra.mxu0 %v3177
        %3235 = vmatprep.subr.bf16.mxu0 %v3180
        %3236 = vmatpush1.bf16.msra.mxu0 %v3179
        %3237 = vmatprep.subr.bf16.mxu0 0
        %3238 = vmatpush1.bf16.msra.mxu0 0
        %3239 = vmatprep.subr.bf16.mxu0 0
        %3240 = vmatpush1.bf16.msra.mxu0 0
        %3241 = vmatprep.subr.bf16.mxu0 0
        %3242 = vmatpush1.bf16.msra.mxu0 0
        %3243 = vmatprep.subr.bf16.mxu0 0
        %3244 = vmatpush1.bf16.msra.mxu0 0
        %3245 = vmatprep.subr.bf16.mxu0 0
        %3246 = vmatpush1.bf16.msra.mxu0 0
        %3247 = vmatprep.subr.bf16.mxu0 0
        %3248 = vmatpush1.bf16.msra.mxu0 0
        %3249 = vmatprep.subr.bf16.mxu0 0
        %3250 = vmatpush1.bf16.msra.mxu0 0
        %3251 = vmatprep.subr.bf16.mxu0 0
        %3252 = vmatpush1.bf16.msra.mxu0 0
        %3253 = vmatprep.mubr.bf16.mxu0 0
        %3254 = vmatmul.mubr.bf16.gmra.mrb[0].mxu0 %v3217
        %v3255 = vpop.f32.mrb[0].mxu0
        %v3256 = vadd.f32 %v3192, %v3255
        %v3257 = vpop.f32.mrb[0].mxu0
        %v3258 = vadd.f32 %v3192, %v3257
        %v3259 = vpop.f32.mrb[0].mxu0
        %v3260 = vadd.f32 %v3197, %v3259
        %v3261 = vpop.f32.mrb[0].mxu0
        %v3262 = vadd.f32 %v3197, %v3261
        %3263 = vmatprep.mubr.bf16.mxu0 0
        %3264 = vmatmul.mubr.bf16.gmra.mrb[0].mxu0 %v3218
        %v3265 = vpop.f32.mrb[0].mxu0
        %v3266 = vadd.f32 %v3202, %v3265
        %v3267 = vpop.f32.mrb[0].mxu0
        %v3268 = vadd.f32 %v3202, %v3267
        %v3269 = vpop.f32.mrb[0].mxu0
        %v3270 = vadd.f32 %v3207, %v3269
        %v3271 = vpop.f32.mrb[0].mxu0
        %v3272 = vadd.f32 %v3207, %v3271
        %3273 = vdwg.mxu0
        %vm3274 = vcmp.gt.f32.partialorder %v3256, 0.0
        %vm3275 = vcmp.gt.f32.partialorder %v3258, 0.0
        %vm3276 = vcmp.gt.f32.partialorder %v3260, 0.0
        %vm3277 = vcmp.gt.f32.partialorder %v3262, 0.0
        %vm3278 = vcmp.gt.f32.partialorder %v3266, 0.0
        %vm3279 = vcmp.gt.f32.partialorder %v3268, 0.0
        %vm3280 = vcmp.gt.f32.partialorder %v3270, 0.0
        %vm3281 = vcmp.gt.f32.partialorder %v3272, 0.0
        %v3282 = vmin.f32 %v3256, 0.0
        %v3283 = vmin.f32 %v3258, 0.0
        %v3284 = vmin.f32 %v3260, 0.0
        %v3285 = vmin.f32 %v3262, 0.0
        %v3286 = vmin.f32 %v3266, 0.0
        %v3287 = vmin.f32 %v3268, 0.0
        %v3288 = vmin.f32 %v3270, 0.0
        %v3289 = vmin.f32 %v3272, 0.0
        %v3290 = vmul.f32 %v3282, 1.442695
        %v3291 = vpow.pop %v3290
        %v3292 = vmul.f32 %v3283, 1.442695
        %v3293 = vpow.pop %v3292
        %v3294 = vmul.f32 %v3284, 1.442695
        %v3295 = vpow.pop %v3294
        %v3296 = vmul.f32 %v3285, 1.442695
        %v3297 = vpow.pop %v3296
        %v3298 = vmul.f32 %v3286, 1.442695
        %v3299 = vpow.pop %v3298
        %v3300 = vmul.f32 %v3287, 1.442695
        %v3301 = vpow.pop %v3300
        %v3302 = vmul.f32 %v3288, 1.442695
        %v3303 = vpow.pop %v3302
        %v3304 = vmul.f32 %v3289, 1.442695
        %v3305 = vpow.pop %v3304
        %v3306 = vsub.f32 %v3291, 1.0
        %v3307 = vsub.f32 %v3293, 1.0
        %v3308 = vsub.f32 %v3295, 1.0
        %v3309 = vsub.f32 %v3297, 1.0
        %v3310 = vsub.f32 %v3299, 1.0
        %v3311 = vsub.f32 %v3301, 1.0
        %v3312 = vsub.f32 %v3303, 1.0
        %v3313 = vsub.f32 %v3305, 1.0
        %v3314 = vsel %vm3274, %v3256, %v3306
        %v3315 = vsel %vm3275, %v3258, %v3307
        %v3316 = vsel %vm3276, %v3260, %v3308
        %v3317 = vsel %vm3277, %v3262, %v3309
        %v3318 = vsel %vm3278, %v3266, %v3310
        %v3319 = vsel %vm3279, %v3268, %v3311
        %v3320 = vsel %vm3280, %v3270, %v3312
        %v3321 = vsel %vm3281, %v3272, %v3313
        %v3322 = vpack.c.bf16 %v3316, %v3314
        %v3323 = vpack.c.bf16 %v3317, %v3315
        %v3324 = vpack.c.bf16 %v3320, %v3318
        %v3325 = vpack.c.bf16 %v3321, %v3319
        %3326 = vst [vmem:[#allocation3] sm:$0xff] %v3322
        %3327 = vst [vmem:[#allocation3 + $0x8] sm:$0xff] %v3323
        %3328 = vst [vmem:[#allocation3 + $0x10] sm:$0xff] %v3324
        %3329 = vst [vmem:[#allocation3 + $0x18] sm:$0xff] %v3325
        %v3330 = vld [vmem:[#allocation2 + $0x40] sm:$0xff]
        %v3331 = vld [vmem:[#allocation2 + $0x48] sm:$0xff]
        %v3332 = vld [vmem:[#allocation2 + $0x50] sm:$0xff]
        %v3333 = vld [vmem:[#allocation2 + $0x58] sm:$0xff]
        %v3334 = vld [vmem:[#allocation2 + $0x60] sm:$0xff]
        %v3335 = vld [vmem:[#allocation2 + $0x68] sm:$0xff]
        %v3336 = vld [vmem:[#allocation2 + $0x70] sm:$0xff]
        %v3337 = vld [vmem:[#allocation2 + $0x78] sm:$0xff]
        %v3338 = vld [vmem:[#allocation2 + $0x80] sm:$0xff]
        %v3339 = vld [vmem:[#allocation2 + $0x88] sm:$0xff]
        %v3340 = vld [vmem:[#allocation2 + $0x90] sm:$0xff]
        %v3341 = vld [vmem:[#allocation2 + $0x98] sm:$0xff]
        %v3342 = vld [vmem:[#allocation2 + $0xa0] sm:$0xff]
        %v3343 = vld [vmem:[#allocation2 + $0xa8] sm:$0xff]
        %v3344 = vld [vmem:[#allocation2 + $0xb0] sm:$0xff]
        %v3345 = vld [vmem:[#allocation2 + $0xb8] sm:$0xff]
        %v3346 = vld [vmem:[%s3] sm:$0xf]
        %v3347 = vld [vmem:[%s3 + $0x4] sm:$0xf]
        %v3348 = vld [vmem:[%s3 + $0x8] sm:$0xf]
        %v3349 = vld [vmem:[%s3 + $0xc] sm:$0xf]
        %v3350 = vld [vmem:[%s4] sm:$0xff]
        %v3351 = vld [vmem:[%s4 + $0x8] sm:$0xff]
        %v3352 = vld [vmem:[%s4 + $0x10] sm:$0xff]
        %v3353 = vld [vmem:[%s4 + $0x18] sm:$0xff]
        %3355 = vset.pattern.permute.xlu0 0
        %3356 = vperm.xlu0 %3355, %v3350
        %v3357 = vpop.permute.xlu0 %3356
        %3360 = vset.pattern.permute.xlu0 0
        %3361 = vperm.xlu0 %3360, %v3351
        %v3362 = vpop.permute.xlu0 %3361
        %3365 = vset.pattern.permute.xlu0 0
        %3366 = vperm.xlu0 %3365, %v3352
        %v3367 = vpop.permute.xlu0 %3366
        %3370 = vset.pattern.permute.xlu0 0
        %3371 = vperm.xlu0 %3370, %v3353
        %v3372 = vpop.permute.xlu0 %3371
        %v3378 = vunpack.c.l.b16 %v3346
        %v3379 = vunpack.c.l.b16 %v3347
        %v3380 = vunpack.c.l.b16 %v3348
        %v3381 = vunpack.c.l.b16 %v3349
        %v3382 = vpack.c.b16 %v3379, %v3378
        %v3383 = vpack.c.b16 %v3381, %v3380
        %3386 = vmatprep.subr.bf16.mxu0 %v3331
        %3387 = vmatpush1.bf16.msra.mxu0 %v3330
        %3388 = vmatprep.subr.bf16.mxu0 %v3333
        %3389 = vmatpush1.bf16.msra.mxu0 %v3332
        %3390 = vmatprep.subr.bf16.mxu0 %v3335
        %3391 = vmatpush1.bf16.msra.mxu0 %v3334
        %3392 = vmatprep.subr.bf16.mxu0 %v3337
        %3393 = vmatpush1.bf16.msra.mxu0 %v3336
        %3394 = vmatprep.subr.bf16.mxu0 %v3339
        %3395 = vmatpush1.bf16.msra.mxu0 %v3338
        %3396 = vmatprep.subr.bf16.mxu0 %v3341
        %3397 = vmatpush1.bf16.msra.mxu0 %v3340
        %3398 = vmatprep.subr.bf16.mxu0 %v3343
        %3399 = vmatpush1.bf16.msra.mxu0 %v3342
        %3400 = vmatprep.subr.bf16.mxu0 %v3345
        %3401 = vmatpush1.bf16.msra.mxu0 %v3344
        %3402 = vmatprep.subr.bf16.mxu0 0
        %3403 = vmatpush1.bf16.msra.mxu0 0
        %3404 = vmatprep.subr.bf16.mxu0 0
        %3405 = vmatpush1.bf16.msra.mxu0 0
        %3406 = vmatprep.subr.bf16.mxu0 0
        %3407 = vmatpush1.bf16.msra.mxu0 0
        %3408 = vmatprep.subr.bf16.mxu0 0
        %3409 = vmatpush1.bf16.msra.mxu0 0
        %3410 = vmatprep.subr.bf16.mxu0 0
        %3411 = vmatpush1.bf16.msra.mxu0 0
        %3412 = vmatprep.subr.bf16.mxu0 0
        %3413 = vmatpush1.bf16.msra.mxu0 0
        %3414 = vmatprep.subr.bf16.mxu0 0
        %3415 = vmatpush1.bf16.msra.mxu0 0
        %3416 = vmatprep.subr.bf16.mxu0 0
        %3417 = vmatpush1.bf16.msra.mxu0 0
        %3418 = vmatprep.mubr.bf16.mxu0 0
        %3419 = vmatmul.mubr.bf16.gmra.mrb[0].mxu0 %v3382
        %v3420 = vpop.f32.mrb[0].mxu0
        %v3421 = vadd.f32 %v3357, %v3420
        %v3422 = vpop.f32.mrb[0].mxu0
        %v3423 = vadd.f32 %v3357, %v3422
        %v3424 = vpop.f32.mrb[0].mxu0
        %v3425 = vadd.f32 %v3362, %v3424
        %v3426 = vpop.f32.mrb[0].mxu0
        %v3427 = vadd.f32 %v3362, %v3426
        %3428 = vmatprep.mubr.bf16.mxu0 0
        %3429 = vmatmul.mubr.bf16.gmra.mrb[0].mxu0 %v3383
        %v3430 = vpop.f32.mrb[0].mxu0
        %v3431 = vadd.f32 %v3367, %v3430
        %v3432 = vpop.f32.mrb[0].mxu0
        %v3433 = vadd.f32 %v3367, %v3432
        %v3434 = vpop.f32.mrb[0].mxu0
        %v3435 = vadd.f32 %v3372, %v3434
        %v3436 = vpop.f32.mrb[0].mxu0
        %v3437 = vadd.f32 %v3372, %v3436
        %3438 = vdwg.mxu0
        %vm3439 = vcmp.gt.f32.partialorder %v3421, 0.0
        %vm3440 = vcmp.gt.f32.partialorder %v3423, 0.0
        %vm3441 = vcmp.gt.f32.partialorder %v3425, 0.0
        %vm3442 = vcmp.gt.f32.partialorder %v3427, 0.0
        %vm3443 = vcmp.gt.f32.partialorder %v3431, 0.0
        %vm3444 = vcmp.gt.f32.partialorder %v3433, 0.0
        %vm3445 = vcmp.gt.f32.partialorder %v3435, 0.0
        %vm3446 = vcmp.gt.f32.partialorder %v3437, 0.0
        %v3447 = vmin.f32 %v3421, 0.0
        %v3448 = vmin.f32 %v3423, 0.0
        %v3449 = vmin.f32 %v3425, 0.0
        %v3450 = vmin.f32 %v3427, 0.0
        %v3451 = vmin.f32 %v3431, 0.0
        %v3452 = vmin.f32 %v3433, 0.0
        %v3453 = vmin.f32 %v3435, 0.0
        %v3454 = vmin.f32 %v3437, 0.0
        %v3455 = vmul.f32 %v3447, 1.442695
        %v3456 = vpow.pop %v3455
        %v3457 = vmul.f32 %v3448, 1.442695
        %v3458 = vpow.pop %v3457
        %v3459 = vmul.f32 %v3449, 1.442695
        %v3460 = vpow.pop %v3459
        %v3461 = vmul.f32 %v3450, 1.442695
        %v3462 = vpow.pop %v3461
        %v3463 = vmul.f32 %v3451, 1.442695
        %v3464 = vpow.pop %v3463
        %v3465 = vmul.f32 %v3452, 1.442695
        %v3466 = vpow.pop %v3465
        %v3467 = vmul.f32 %v3453, 1.442695
        %v3468 = vpow.pop %v3467
        %v3469 = vmul.f32 %v3454, 1.442695
        %v3470 = vpow.pop %v3469
        %v3471 = vsub.f32 %v3456, 1.0
        %v3472 = vsub.f32 %v3458, 1.0
        %v3473 = vsub.f32 %v3460, 1.0
        %v3474 = vsub.f32 %v3462, 1.0
        %v3475 = vsub.f32 %v3464, 1.0
        %v3476 = vsub.f32 %v3466, 1.0
        %v3477 = vsub.f32 %v3468, 1.0
        %v3478 = vsub.f32 %v3470, 1.0
        %v3479 = vsel %vm3439, %v3421, %v3471
        %v3480 = vsel %vm3440, %v3423, %v3472
        %v3481 = vsel %vm3441, %v3425, %v3473
        %v3482 = vsel %vm3442, %v3427, %v3474
        %v3483 = vsel %vm3443, %v3431, %v3475
        %v3484 = vsel %vm3444, %v3433, %v3476
        %v3485 = vsel %vm3445, %v3435, %v3477
        %v3486 = vsel %vm3446, %v3437, %v3478
        %v3487 = vpack.c.bf16 %v3481, %v3479
        %v3488 = vpack.c.bf16 %v3482, %v3480
        %v3489 = vpack.c.bf16 %v3485, %v3483
        %v3490 = vpack.c.bf16 %v3486, %v3484
        %3491 = vst [vmem:[#allocation3 + $0x20] sm:$0xff] %v3487
        %3492 = vst [vmem:[#allocation3 + $0x28] sm:$0xff] %v3488
        %3493 = vst [vmem:[#allocation3 + $0x30] sm:$0xff] %v3489
        %3494 = vst [vmem:[#allocation3 + $0x38] sm:$0xff] %v3490
        %v3495 = vld [vmem:[#allocation2 + $0x80] sm:$0xff]
        %v3496 = vld [vmem:[#allocation2 + $0x88] sm:$0xff]
        %v3497 = vld [vmem:[#allocation2 + $0x90] sm:$0xff]
        %v3498 = vld [vmem:[#allocation2 + $0x98] sm:$0xff]
        %v3499 = vld [vmem:[#allocation2 + $0xa0] sm:$0xff]
        %v3500 = vld [vmem:[#allocation2 + $0xa8] sm:$0xff]
        %v3501 = vld [vmem:[#allocation2 + $0xb0] sm:$0xff]
        %v3502 = vld [vmem:[#allocation2 + $0xb8] sm:$0xff]
        %v3503 = vld [vmem:[#allocation2 + $0xc0] sm:$0xff]
        %v3504 = vld [vmem:[#allocation2 + $0xc8] sm:$0xff]
        %v3505 = vld [vmem:[#allocation2 + $0xd0] sm:$0xff]
        %v3506 = vld [vmem:[#allocation2 + $0xd8] sm:$0xff]
        %v3507 = vld [vmem:[#allocation2 + $0xe0] sm:$0xff]
        %v3508 = vld [vmem:[#allocation2 + $0xe8] sm:$0xff]
        %v3509 = vld [vmem:[#allocation2 + $0xf0] sm:$0xff]
        %v3510 = vld [vmem:[#allocation2 + $0xf8] sm:$0xff]
        %v3511 = vld [vmem:[%s3] sm:$0xf]
        %v3512 = vld [vmem:[%s3 + $0x4] sm:$0xf]
        %v3513 = vld [vmem:[%s3 + $0x8] sm:$0xf]
        %v3514 = vld [vmem:[%s3 + $0xc] sm:$0xf]
        %v3515 = vld [vmem:[%s4] sm:$0xff]
        %v3516 = vld [vmem:[%s4 + $0x8] sm:$0xff]
        %v3517 = vld [vmem:[%s4 + $0x10] sm:$0xff]
        %v3518 = vld [vmem:[%s4 + $0x18] sm:$0xff]
        %3520 = vset.pattern.permute.xlu0 0
        %3521 = vperm.xlu0 %3520, %v3515
        %v3522 = vpop.permute.xlu0 %3521
        %3525 = vset.pattern.permute.xlu0 0
        %3526 = vperm.xlu0 %3525, %v3516
        %v3527 = vpop.permute.xlu0 %3526
        %3530 = vset.pattern.permute.xlu0 0
        %3531 = vperm.xlu0 %3530, %v3517
        %v3532 = vpop.permute.xlu0 %3531
        %3535 = vset.pattern.permute.xlu0 0
        %3536 = vperm.xlu0 %3535, %v3518
        %v3537 = vpop.permute.xlu0 %3536
        %v3543 = vunpack.c.l.b16 %v3511
        %v3544 = vunpack.c.l.b16 %v3512
        %v3545 = vunpack.c.l.b16 %v3513
        %v3546 = vunpack.c.l.b16 %v3514
        %v3547 = vpack.c.b16 %v3544, %v3543
        %v3548 = vpack.c.b16 %v3546, %v3545
        %3551 = vmatprep.subr.bf16.mxu0 %v3496
        %3552 = vmatpush1.bf16.msra.mxu0 %v3495
        %3553 = vmatprep.subr.bf16.mxu0 %v3498
        %3554 = vmatpush1.bf16.msra.mxu0 %v3497
        %3555 = vmatprep.subr.bf16.mxu0 %v3500
        %3556 = vmatpush1.bf16.msra.mxu0 %v3499
        %3557 = vmatprep.subr.bf16.mxu0 %v3502
        %3558 = vmatpush1.bf16.msra.mxu0 %v3501
        %3559 = vmatprep.subr.bf16.mxu0 %v3504
        %3560 = vmatpush1.bf16.msra.mxu0 %v3503
        %3561 = vmatprep.subr.bf16.mxu0 %v3506
        %3562 = vmatpush1.bf16.msra.mxu0 %v3505
        %3563 = vmatprep.subr.bf16.mxu0 %v3508
        %3564 = vmatpush1.bf16.msra.mxu0 %v3507
        %3565 = vmatprep.subr.bf16.mxu0 %v3510
        %3566 = vmatpush1.bf16.msra.mxu0 %v3509
        %3567 = vmatprep.subr.bf16.mxu0 0
        %3568 = vmatpush1.bf16.msra.mxu0 0
        %3569 = vmatprep.subr.bf16.mxu0 0
        %3570 = vmatpush1.bf16.msra.mxu0 0
        %3571 = vmatprep.subr.bf16.mxu0 0
        %3572 = vmatpush1.bf16.msra.mxu0 0
        %3573 = vmatprep.subr.bf16.mxu0 0
        %3574 = vmatpush1.bf16.msra.mxu0 0
        %3575 = vmatprep.subr.bf16.mxu0 0
        %3576 = vmatpush1.bf16.msra.mxu0 0
        %3577 = vmatprep.subr.bf16.mxu0 0
        %3578 = vmatpush1.bf16.msra.mxu0 0
        %3579 = vmatprep.subr.bf16.mxu0 0
        %3580 = vmatpush1.bf16.msra.mxu0 0
        %3581 = vmatprep.subr.bf16.mxu0 0
        %3582 = vmatpush1.bf16.msra.mxu0 0
        %3583 = vmatprep.mubr.bf16.mxu0 0
        %3584 = vmatmul.mubr.bf16.gmra.mrb[0].mxu0 %v3547
        %v3585 = vpop.f32.mrb[0].mxu0
        %v3586 = vadd.f32 %v3522, %v3585
        %v3587 = vpop.f32.mrb[0].mxu0
        %v3588 = vadd.f32 %v3522, %v3587
        %v3589 = vpop.f32.mrb[0].mxu0
        %v3590 = vadd.f32 %v3527, %v3589
        %v3591 = vpop.f32.mrb[0].mxu0
        %v3592 = vadd.f32 %v3527, %v3591
        %3593 = vmatprep.mubr.bf16.mxu0 0
        %3594 = vmatmul.mubr.bf16.gmra.mrb[0].mxu0 %v3548
        %v3595 = vpop.f32.mrb[0].mxu0
        %v3596 = vadd.f32 %v3532, %v3595
        %v3597 = vpop.f32.mrb[0].mxu0
        %v3598 = vadd.f32 %v3532, %v3597
        %v3599 = vpop.f32.mrb[0].mxu0
        %v3600 = vadd.f32 %v3537, %v3599
        %v3601 = vpop.f32.mrb[0].mxu0
        %v3602 = vadd.f32 %v3537, %v3601
        %3603 = vdwg.mxu0
        %vm3604 = vcmp.gt.f32.partialorder %v3586, 0.0
        %vm3605 = vcmp.gt.f32.partialorder %v3588, 0.0
        %vm3606 = vcmp.gt.f32.partialorder %v3590, 0.0
        %vm3607 = vcmp.gt.f32.partialorder %v3592, 0.0
        %vm3608 = vcmp.gt.f32.partialorder %v3596, 0.0
        %vm3609 = vcmp.gt.f32.partialorder %v3598, 0.0
        %vm3610 = vcmp.gt.f32.partialorder %v3600, 0.0
        %vm3611 = vcmp.gt.f32.partialorder %v3602, 0.0
        %v3612 = vmin.f32 %v3586, 0.0
        %v3613 = vmin.f32 %v3588, 0.0
        %v3614 = vmin.f32 %v3590, 0.0
        %v3615 = vmin.f32 %v3592, 0.0
        %v3616 = vmin.f32 %v3596, 0.0
        %v3617 = vmin.f32 %v3598, 0.0
        %v3618 = vmin.f32 %v3600, 0.0
        %v3619 = vmin.f32 %v3602, 0.0
        %v3620 = vmul.f32 %v3612, 1.442695
        %v3621 = vpow.pop %v3620
        %v3622 = vmul.f32 %v3613, 1.442695
        %v3623 = vpow.pop %v3622
        %v3624 = vmul.f32 %v3614, 1.442695
        %v3625 = vpow.pop %v3624
        %v3626 = vmul.f32 %v3615, 1.442695
        %v3627 = vpow.pop %v3626
        %v3628 = vmul.f32 %v3616, 1.442695
        %v3629 = vpow.pop %v3628
        %v3630 = vmul.f32 %v3617, 1.442695
        %v3631 = vpow.pop %v3630
        %v3632 = vmul.f32 %v3618, 1.442695
        %v3633 = vpow.pop %v3632
        %v3634 = vmul.f32 %v3619, 1.442695
        %v3635 = vpow.pop %v3634
        %v3636 = vsub.f32 %v3621, 1.0
        %v3637 = vsub.f32 %v3623, 1.0
        %v3638 = vsub.f32 %v3625, 1.0
        %v3639 = vsub.f32 %v3627, 1.0
        %v3640 = vsub.f32 %v3629, 1.0
        %v3641 = vsub.f32 %v3631, 1.0
        %v3642 = vsub.f32 %v3633, 1.0
        %v3643 = vsub.f32 %v3635, 1.0
        %v3644 = vsel %vm3604, %v3586, %v3636
        %v3645 = vsel %vm3605, %v3588, %v3637
        %v3646 = vsel %vm3606, %v3590, %v3638
        %v3647 = vsel %vm3607, %v3592, %v3639
        %v3648 = vsel %vm3608, %v3596, %v3640
        %v3649 = vsel %vm3609, %v3598, %v3641
        %v3650 = vsel %vm3610, %v3600, %v3642
        %v3651 = vsel %vm3611, %v3602, %v3643
        %v3652 = vpack.c.bf16 %v3646, %v3644
        %v3653 = vpack.c.bf16 %v3647, %v3645
        %v3654 = vpack.c.bf16 %v3650, %v3648
        %v3655 = vpack.c.bf16 %v3651, %v3649
        %3656 = vst [vmem:[#allocation3 + $0x40] sm:$0xff] %v3652
        %3657 = vst [vmem:[#allocation3 + $0x48] sm:$0xff] %v3653
        %3658 = vst [vmem:[#allocation3 + $0x50] sm:$0xff] %v3654
        %3659 = vst [vmem:[#allocation3 + $0x58] sm:$0xff] %v3655
        %v3660 = vld [vmem:[#allocation2 + $0xc0] sm:$0xff]
        %v3661 = vld [vmem:[#allocation2 + $0xc8] sm:$0xff]
        %v3662 = vld [vmem:[#allocation2 + $0xd0] sm:$0xff]
        %v3663 = vld [vmem:[#allocation2 + $0xd8] sm:$0xff]
        %v3664 = vld [vmem:[#allocation2 + $0xe0] sm:$0xff]
        %v3665 = vld [vmem:[#allocation2 + $0xe8] sm:$0xff]
        %v3666 = vld [vmem:[#allocation2 + $0xf0] sm:$0xff]
        %v3667 = vld [vmem:[#allocation2 + $0xf8] sm:$0xff]
        %v3668 = vld [vmem:[#allocation2 + $0x100] sm:$0xff]
        %v3669 = vld [vmem:[#allocation2 + $0x108] sm:$0xff]
        %v3670 = vld [vmem:[#allocation2 + $0x110] sm:$0xff]
        %v3671 = vld [vmem:[#allocation2 + $0x118] sm:$0xff]
        %v3672 = vld [vmem:[#allocation2 + $0x120] sm:$0xff]
        %v3673 = vld [vmem:[#allocation2 + $0x128] sm:$0xff]
        %v3674 = vld [vmem:[#allocation2 + $0x130] sm:$0xff]
        %v3675 = vld [vmem:[#allocation2 + $0x138] sm:$0xff]
        %v3676 = vld [vmem:[%s3] sm:$0xf]
        %v3677 = vld [vmem:[%s3 + $0x4] sm:$0xf]
        %v3678 = vld [vmem:[%s3 + $0x8] sm:$0xf]
        %v3679 = vld [vmem:[%s3 + $0xc] sm:$0xf]
        %v3680 = vld [vmem:[%s4] sm:$0xff]
        %v3681 = vld [vmem:[%s4 + $0x8] sm:$0xff]
        %v3682 = vld [vmem:[%s4 + $0x10] sm:$0xff]
        %v3683 = vld [vmem:[%s4 + $0x18] sm:$0xff]
        %3685 = vset.pattern.permute.xlu0 0
        %3686 = vperm.xlu0 %3685, %v3680
        %v3687 = vpop.permute.xlu0 %3686
        %3690 = vset.pattern.permute.xlu0 0
        %3691 = vperm.xlu0 %3690, %v3681
        %v3692 = vpop.permute.xlu0 %3691
        %3695 = vset.pattern.permute.xlu0 0
        %3696 = vperm.xlu0 %3695, %v3682
        %v3697 = vpop.permute.xlu0 %3696
        %3700 = vset.pattern.permute.xlu0 0
        %3701 = vperm.xlu0 %3700, %v3683
        %v3702 = vpop.permute.xlu0 %3701
        %v3708 = vunpack.c.l.b16 %v3676
        %v3709 = vunpack.c.l.b16 %v3677
        %v3710 = vunpack.c.l.b16 %v3678
        %v3711 = vunpack.c.l.b16 %v3679
        %v3712 = vpack.c.b16 %v3709, %v3708
        %v3713 = vpack.c.b16 %v3711, %v3710
        %3716 = vmatprep.subr.bf16.mxu0 %v3661
        %3717 = vmatpush1.bf16.msra.mxu0 %v3660
        %3718 = vmatprep.subr.bf16.mxu0 %v3663
        %3719 = vmatpush1.bf16.msra.mxu0 %v3662
        %3720 = vmatprep.subr.bf16.mxu0 %v3665
        %3721 = vmatpush1.bf16.msra.mxu0 %v3664
        %3722 = vmatprep.subr.bf16.mxu0 %v3667
        %3723 = vmatpush1.bf16.msra.mxu0 %v3666
        %3724 = vmatprep.subr.bf16.mxu0 %v3669
        %3725 = vmatpush1.bf16.msra.mxu0 %v3668
        %3726 = vmatprep.subr.bf16.mxu0 %v3671
        %3727 = vmatpush1.bf16.msra.mxu0 %v3670
        %3728 = vmatprep.subr.bf16.mxu0 %v3673
        %3729 = vmatpush1.bf16.msra.mxu0 %v3672
        %3730 = vmatprep.subr.bf16.mxu0 %v3675
        %3731 = vmatpush1.bf16.msra.mxu0 %v3674
        %3732 = vmatprep.subr.bf16.mxu0 0
        %3733 = vmatpush1.bf16.msra.mxu0 0
        %3734 = vmatprep.subr.bf16.mxu0 0
        %3735 = vmatpush1.bf16.msra.mxu0 0
        %3736 = vmatprep.subr.bf16.mxu0 0
        %3737 = vmatpush1.bf16.msra.mxu0 0
        %3738 = vmatprep.subr.bf16.mxu0 0
        %3739 = vmatpush1.bf16.msra.mxu0 0
        %3740 = vmatprep.subr.bf16.mxu0 0
        %3741 = vmatpush1.bf16.msra.mxu0 0
        %3742 = vmatprep.subr.bf16.mxu0 0
        %3743 = vmatpush1.bf16.msra.mxu0 0
        %3744 = vmatprep.subr.bf16.mxu0 0
        %3745 = vmatpush1.bf16.msra.mxu0 0
        %3746 = vmatprep.subr.bf16.mxu0 0
        %3747 = vmatpush1.bf16.msra.mxu0 0
        %3748 = vmatprep.mubr.bf16.mxu0 0
        %3749 = vmatmul.mubr.bf16.gmra.mrb[0].mxu0 %v3712
        %v3750 = vpop.f32.mrb[0].mxu0
        %v3751 = vadd.f32 %v3687, %v3750
        %v3752 = vpop.f32.mrb[0].mxu0
        %v3753 = vadd.f32 %v3687, %v3752
        %v3754 = vpop.f32.mrb[0].mxu0
        %v3755 = vadd.f32 %v3692, %v3754
        %v3756 = vpop.f32.mrb[0].mxu0
        %v3757 = vadd.f32 %v3692, %v3756
        %3758 = vmatprep.mubr.bf16.mxu0 0
        %3759 = vmatmul.mubr.bf16.gmra.mrb[0].mxu0 %v3713
        %v3760 = vpop.f32.mrb[0].mxu0
        %v3761 = vadd.f32 %v3697, %v3760
        %v3762 = vpop.f32.mrb[0].mxu0
        %v3763 = vadd.f32 %v3697, %v3762
        %v3764 = vpop.f32.mrb[0].mxu0
        %v3765 = vadd.f32 %v3702, %v3764
        %v3766 = vpop.f32.mrb[0].mxu0
        %v3767 = vadd.f32 %v3702, %v3766
        %3768 = vdwg.mxu0
        %vm3769 = vcmp.gt.f32.partialorder %v3751, 0.0
        %vm3770 = vcmp.gt.f32.partialorder %v3753, 0.0
        %vm3771 = vcmp.gt.f32.partialorder %v3755, 0.0
        %vm3772 = vcmp.gt.f32.partialorder %v3757, 0.0
        %vm3773 = vcmp.gt.f32.partialorder %v3761, 0.0
        %vm3774 = vcmp.gt.f32.partialorder %v3763, 0.0
        %vm3775 = vcmp.gt.f32.partialorder %v3765, 0.0
        %vm3776 = vcmp.gt.f32.partialorder %v3767, 0.0
        %v3777 = vmin.f32 %v3751, 0.0
        %v3778 = vmin.f32 %v3753, 0.0
        %v3779 = vmin.f32 %v3755, 0.0
        %v3780 = vmin.f32 %v3757, 0.0
        %v3781 = vmin.f32 %v3761, 0.0
        %v3782 = vmin.f32 %v3763, 0.0
        %v3783 = vmin.f32 %v3765, 0.0
        %v3784 = vmin.f32 %v3767, 0.0
        %v3785 = vmul.f32 %v3777, 1.442695
        %v3786 = vpow.pop %v3785
        %v3787 = vmul.f32 %v3778, 1.442695
        %v3788 = vpow.pop %v3787
        %v3789 = vmul.f32 %v3779, 1.442695
        %v3790 = vpow.pop %v3789
        %v3791 = vmul.f32 %v3780, 1.442695
        %v3792 = vpow.pop %v3791
        %v3793 = vmul.f32 %v3781, 1.442695
        %v3794 = vpow.pop %v3793
        %v3795 = vmul.f32 %v3782, 1.442695
        %v3796 = vpow.pop %v3795
        %v3797 = vmul.f32 %v3783, 1.442695
        %v3798 = vpow.pop %v3797
        %v3799 = vmul.f32 %v3784, 1.442695
        %v3800 = vpow.pop %v3799
        %v3801 = vsub.f32 %v3786, 1.0
        %v3802 = vsub.f32 %v3788, 1.0
        %v3803 = vsub.f32 %v3790, 1.0
        %v3804 = vsub.f32 %v3792, 1.0
        %v3805 = vsub.f32 %v3794, 1.0
        %v3806 = vsub.f32 %v3796, 1.0
        %v3807 = vsub.f32 %v3798, 1.0
        %v3808 = vsub.f32 %v3800, 1.0
        %v3809 = vsel %vm3769, %v3751, %v3801
        %v3810 = vsel %vm3770, %v3753, %v3802
        %v3811 = vsel %vm3771, %v3755, %v3803
        %v3812 = vsel %vm3772, %v3757, %v3804
        %v3813 = vsel %vm3773, %v3761, %v3805
        %v3814 = vsel %vm3774, %v3763, %v3806
        %v3815 = vsel %vm3775, %v3765, %v3807
        %v3816 = vsel %vm3776, %v3767, %v3808
        %v3817 = vpack.c.bf16 %v3811, %v3809
        %v3818 = vpack.c.bf16 %v3812, %v3810
        %v3819 = vpack.c.bf16 %v3815, %v3813
        %v3820 = vpack.c.bf16 %v3816, %v3814
        %3821 = vst [vmem:[#allocation3 + $0x60] sm:$0xff] %v3817
        %3822 = vst [vmem:[#allocation3 + $0x68] sm:$0xff] %v3818
        %3823 = vst [vmem:[#allocation3 + $0x70] sm:$0xff] %v3819
        %3824 = vst [vmem:[#allocation3 + $0x78] sm:$0xff] %v3820
        %v3825 = vld [vmem:[%s8] sm:$0xff]
        %v3826 = vld [vmem:[%s8 + $0x8] sm:$0xff]
        %v3827 = vld [vmem:[%s8 + $0x10] sm:$0xf]
        %v3828 = vld [vmem:[#allocation3] sm:$0xff]
        %v3829 = vld [vmem:[#allocation3 + $0x8] sm:$0xff]
        %v3830 = vld [vmem:[#allocation3 + $0x10] sm:$0xff]
        %v3831 = vld [vmem:[#allocation3 + $0x18] sm:$0xff]
        %v3832 = vld [vmem:[#allocation3 + $0x20] sm:$0xff]
        %v3833 = vld [vmem:[#allocation3 + $0x28] sm:$0xff]
        %v3834 = vld [vmem:[#allocation3 + $0x30] sm:$0xff]
        %v3835 = vld [vmem:[#allocation3 + $0x38] sm:$0xff]
        %v3836 = vld [vmem:[%s5] sm:$0xf]
        %v3837 = vld [vmem:[%s5 + $0x4] sm:$0x1]
        %v3838 = vld [vmem:[%s6] sm:$0xff]
        %v3839 = vld [vmem:[%s6 + $0x8] sm:$0x3]
        %3841 = vset.pattern.permute.xlu0 0
        %3842 = vperm.xlu0 %3841, %v3838
        %v3843 = vpop.permute.xlu0 %3842
        %3846 = vset.pattern.permute.xlu0 0
        %3847 = vperm.xlu0 %3846, %v3839
        %v3848 = vpop.permute.xlu0 %3847
        %v3852 = vunpack.c.l.b16 %v3836
        %v3853 = vunpack.c.l.b16 %v3837
        %v3854 = vpack.c.b16 %v3853, %v3852
        %vm3855 = vcmask 523264
        %v3857 = vsel %vm3855, %v3854, 0
        %3859 = vmatprep.subr.bf16.mxu0 %v3829
        %3860 = vmatpush1.bf16.msra.mxu0 %v3828
        %3861 = vmatprep.subr.bf16.mxu0 %v3831
        %3862 = vmatpush1.bf16.msra.mxu0 %v3830
        %3863 = vmatprep.subr.bf16.mxu0 %v3833
        %3864 = vmatpush1.bf16.msra.mxu0 %v3832
        %3865 = vmatprep.subr.bf16.mxu0 %v3835
        %3866 = vmatpush1.bf16.msra.mxu0 %v3834
        %3867 = vmatprep.subr.bf16.mxu0 0
        %3868 = vmatpush1.bf16.msra.mxu0 0
        %3869 = vmatprep.subr.bf16.mxu0 0
        %3870 = vmatpush1.bf16.msra.mxu0 0
        %3871 = vmatprep.subr.bf16.mxu0 0
        %3872 = vmatpush1.bf16.msra.mxu0 0
        %3873 = vmatprep.subr.bf16.mxu0 0
        %3874 = vmatpush1.bf16.msra.mxu0 0
        %3875 = vmatprep.subr.bf16.mxu0 0
        %3876 = vmatpush1.bf16.msra.mxu0 0
        %3877 = vmatprep.subr.bf16.mxu0 0
        %3878 = vmatpush1.bf16.msra.mxu0 0
        %3879 = vmatprep.subr.bf16.mxu0 0
        %3880 = vmatpush1.bf16.msra.mxu0 0
        %3881 = vmatprep.subr.bf16.mxu0 0
        %3882 = vmatpush1.bf16.msra.mxu0 0
        %3883 = vmatprep.subr.bf16.mxu0 0
        %3884 = vmatpush1.bf16.msra.mxu0 0
        %3885 = vmatprep.subr.bf16.mxu0 0
        %3886 = vmatpush1.bf16.msra.mxu0 0
        %3887 = vmatprep.subr.bf16.mxu0 0
        %3888 = vmatpush1.bf16.msra.mxu0 0
        %3889 = vmatprep.subr.bf16.mxu0 0
        %3890 = vmatpush1.bf16.msra.mxu0 0
        %3891 = vmatprep.mubr.bf16.mxu0 0
        %3892 = vmatmul.mubr.bf16.gmra.mrb[0].mxu0 %v3857
        %v3893 = vpop.f32.mrb[0].mxu0
        %v3894 = vadd.f32 %v3843, %v3893
        %v3895 = vpop.f32.mrb[0].mxu0
        %v3896 = vadd.f32 %v3843, %v3895
        %v3897 = vpop.f32.mrb[0].mxu0
        %v3898 = vadd.f32 %v3848, %v3897
        %v3899 = vpop.f32.mrb[0].mxu0
        %v3900 = vadd.f32 %v3848, %v3899
        %3901 = vdwg.mxu0
        %vm3902 = vcmp.gt.f32.partialorder %v3894, 0.0
        %vm3903 = vcmp.gt.f32.partialorder %v3896, 0.0
        %vm3904 = vcmp.gt.f32.partialorder %v3898, 0.0
        %vm3905 = vcmp.gt.f32.partialorder %v3900, 0.0
        %v3906 = vmin.f32 %v3894, 0.0
        %v3907 = vmin.f32 %v3896, 0.0
        %v3908 = vmin.f32 %v3898, 0.0
        %v3909 = vmin.f32 %v3900, 0.0
        %v3910 = vmul.f32 %v3906, 1.442695
        %v3911 = vpow.pop %v3910
        %v3912 = vmul.f32 %v3907, 1.442695
        %v3913 = vpow.pop %v3912
        %v3914 = vmul.f32 %v3908, 1.442695
        %v3915 = vpow.pop %v3914
        %v3916 = vmul.f32 %v3909, 1.442695
        %v3917 = vpow.pop %v3916
        %v3918 = vsub.f32 %v3911, 1.0
        %v3919 = vsub.f32 %v3913, 1.0
        %v3920 = vsub.f32 %v3915, 1.0
        %v3921 = vsub.f32 %v3917, 1.0
        %v3922 = vsel %vm3902, %v3894, %v3918
        %v3923 = vsel %vm3903, %v3896, %v3919
        %v3924 = vsel %vm3904, %v3898, %v3920
        %v3925 = vsel %vm3905, %v3900, %v3921
        %v3926 = vld [vmem:[%s7] sm:$0xf]
        %v3927 = vld [vmem:[%s7 + $0x4] sm:$0xf]
        %v3928 = vld [vmem:[%s7 + $0x8] sm:$0x3]
        %v3929 = vpack.c.bf16 %v3924, %v3922
        %v3930 = vpack.c.bf16 %v3925, %v3923
        %v3934 = vunpack.c.l.b16 %v3926
        %v3935 = vunpack.c.l.b16 %v3927
        %v3936 = vunpack.c.l.b16 %v3928
        %v3937 = vpack.c.b16 %v3935, %v3934
        %v3938 = vpack.c.b16 %v3936, %v3936
        %vm3939 = vcmask 80896
        %v3941 = vsel %vm3939, %v3937, 0
        %v3944 = vsel %vm3939, %v3938, 0
        %vm3946 = vcmask 1044480
        %v3948 = vsel %vm3946, %v3929, 0
        %v3951 = vsel %vm3946, %v3930, 0
        %3953 = vmatprep.subr.bf16.mxu0 %v3951
        %3954 = vmatpush1.bf16.msra.mxu0 %v3948
        %3955 = vmatprep.subr.bf16.mxu0 0
        %3956 = vmatpush1.bf16.msra.mxu0 0
        %3957 = vmatprep.subr.bf16.mxu0 0
        %3958 = vmatpush1.bf16.msra.mxu0 0
        %3959 = vmatprep.subr.bf16.mxu0 0
        %3960 = vmatpush1.bf16.msra.mxu0 0
        %3961 = vmatprep.subr.bf16.mxu0 0
        %3962 = vmatpush1.bf16.msra.mxu0 0
        %3963 = vmatprep.subr.bf16.mxu0 0
        %3964 = vmatpush1.bf16.msra.mxu0 0
        %3965 = vmatprep.subr.bf16.mxu0 0
        %3966 = vmatpush1.bf16.msra.mxu0 0
        %3967 = vmatprep.subr.bf16.mxu0 0
        %3968 = vmatpush1.bf16.msra.mxu0 0
        %3969 = vmatprep.subr.bf16.mxu0 0
        %3970 = vmatpush1.bf16.msra.mxu0 0
        %3971 = vmatprep.subr.bf16.mxu0 0
        %3972 = vmatpush1.bf16.msra.mxu0 0
        %3973 = vmatprep.subr.bf16.mxu0 0
        %3974 = vmatpush1.bf16.msra.mxu0 0
        %3975 = vmatprep.subr.bf16.mxu0 0
        %3976 = vmatpush1.bf16.msra.mxu0 0
        %3977 = vmatprep.subr.bf16.mxu0 0
        %3978 = vmatpush1.bf16.msra.mxu0 0
        %3979 = vmatprep.subr.bf16.mxu0 0
        %3980 = vmatpush1.bf16.msra.mxu0 0
        %3981 = vmatprep.subr.bf16.mxu0 0
        %3982 = vmatpush1.bf16.msra.mxu0 0
        %3983 = vmatprep.subr.bf16.mxu0 0
        %3984 = vmatpush1.bf16.msra.mxu0 0
        %3985 = vmatprep.mubr.bf16.mxu0 0
        %3986 = vmatmul.mubr.bf16.gmra.mrb[0].mxu0 %v3941
        %v3987 = vpop.f32.mrb[0].mxu0
        %v3988 = vadd.f32 0.0, %v3987
        %v3989 = vpop.f32.mrb[0].mxu0
        %v3990 = vadd.f32 0.0, %v3989
        %v3991 = vpop.f32.mrb[0].mxu0
        %v3992 = vadd.f32 0.0, %v3991
        %v3993 = vpop.f32.mrb[0].mxu0
        %v3994 = vadd.f32 0.0, %v3993
        %3995 = vmatprep.mubr.bf16.mxu0 0
        %3996 = vmatmul.mubr.bf16.gmra.mrb[0].mxu0 %v3944
        %v3997 = vpop.f32.mrb[0].mxu0
        %v3998 = vadd.f32 0.0, %v3997
        %v3999 = vpop.f32.mrb[0].mxu0
        %v4000 = vadd.f32 0.0, %v3999
        %v4001 = vpop.f32.mrb[0].mxu0
        %v4002 = vpop.f32.mrb[0].mxu0
        %4003 = vdwg.mxu0
        %4005 = vset.pattern.permute.xlu0 0
        %4006 = vperm.xlu0 %4005, %v3825
        %v4007 = vpop.permute.xlu0 %4006
        %4010 = vset.pattern.permute.xlu0 0
        %4011 = vperm.xlu0 %4010, %v3826
        %v4012 = vpop.permute.xlu0 %4011
        %4015 = vset.pattern.permute.xlu0 0
        %4016 = vperm.xlu0 %4015, %v3827
        %v4017 = vpop.permute.xlu0 %4016
        %v4019 = vadd.f32 %v4007, %v3988
        %v4020 = vadd.f32 %v4007, %v3990
        %v4021 = vadd.f32 %v4012, %v3992
        %v4022 = vadd.f32 %v4012, %v3994
        %v4023 = vadd.f32 %v4017, %v3998
        %v4024 = vadd.f32 %v4017, %v4000
        %v4025 = vld [vmem:[#allocation3 + $0x20] sm:$0xff]
        %v4026 = vld [vmem:[#allocation3 + $0x28] sm:$0xff]
        %v4027 = vld [vmem:[#allocation3 + $0x30] sm:$0xff]
        %v4028 = vld [vmem:[#allocation3 + $0x38] sm:$0xff]
        %v4029 = vld [vmem:[#allocation3 + $0x40] sm:$0xff]
        %v4030 = vld [vmem:[#allocation3 + $0x48] sm:$0xff]
        %v4031 = vld [vmem:[#allocation3 + $0x50] sm:$0xff]
        %v4032 = vld [vmem:[#allocation3 + $0x58] sm:$0xff]
        %4033 = vmatprep.subr.bf16.mxu0 %v4026
        %4034 = vmatpush1.bf16.msra.mxu0 %v4025
        %4035 = vmatprep.subr.bf16.mxu0 %v4028
        %4036 = vmatpush1.bf16.msra.mxu0 %v4027
        %4037 = vmatprep.subr.bf16.mxu0 %v4030
        %4038 = vmatpush1.bf16.msra.mxu0 %v4029
        %4039 = vmatprep.subr.bf16.mxu0 %v4032
        %4040 = vmatpush1.bf16.msra.mxu0 %v4031
        %4041 = vmatprep.subr.bf16.mxu0 0
        %4042 = vmatpush1.bf16.msra.mxu0 0
        %4043 = vmatprep.subr.bf16.mxu0 0
        %4044 = vmatpush1.bf16.msra.mxu0 0
        %4045 = vmatprep.subr.bf16.mxu0 0
        %4046 = vmatpush1.bf16.msra.mxu0 0
        %4047 = vmatprep.subr.bf16.mxu0 0
        %4048 = vmatpush1.bf16.msra.mxu0 0
        %4049 = vmatprep.subr.bf16.mxu0 0
        %4050 = vmatpush1.bf16.msra.mxu0 0
        %4051 = vmatprep.subr.bf16.mxu0 0
        %4052 = vmatpush1.bf16.msra.mxu0 0
        %4053 = vmatprep.subr.bf16.mxu0 0
        %4054 = vmatpush1.bf16.msra.mxu0 0
        %4055 = vmatprep.subr.bf16.mxu0 0
        %4056 = vmatpush1.bf16.msra.mxu0 0
        %4057 = vmatprep.subr.bf16.mxu0 0
        %4058 = vmatpush1.bf16.msra.mxu0 0
        %4059 = vmatprep.subr.bf16.mxu0 0
        %4060 = vmatpush1.bf16.msra.mxu0 0
        %4061 = vmatprep.subr.bf16.mxu0 0
        %4062 = vmatpush1.bf16.msra.mxu0 0
        %4063 = vmatprep.subr.bf16.mxu0 0
        %4064 = vmatpush1.bf16.msra.mxu0 0
        %4065 = vmatprep.mubr.bf16.mxu0 0
        %4066 = vmatmul.mubr.bf16.gmra.mrb[0].mxu0 %v3857
        %v4067 = vpop.f32.mrb[0].mxu0
        %v4068 = vadd.f32 %v3843, %v4067
        %v4069 = vpop.f32.mrb[0].mxu0
        %v4070 = vadd.f32 %v3843, %v4069
        %v4071 = vpop.f32.mrb[0].mxu0
        %v4072 = vadd.f32 %v3848, %v4071
        %v4073 = vpop.f32.mrb[0].mxu0
        %v4074 = vadd.f32 %v3848, %v4073
        %4075 = vdwg.mxu0
        %vm4076 = vcmp.gt.f32.partialorder %v4068, 0.0
        %vm4077 = vcmp.gt.f32.partialorder %v4070, 0.0
        %vm4078 = vcmp.gt.f32.partialorder %v4072, 0.0
        %vm4079 = vcmp.gt.f32.partialorder %v4074, 0.0
        %v4080 = vmin.f32 %v4068, 0.0
        %v4081 = vmin.f32 %v4070, 0.0
        %v4082 = vmin.f32 %v4072, 0.0
        %v4083 = vmin.f32 %v4074, 0.0
        %v4084 = vmul.f32 %v4080, 1.442695
        %v4085 = vpow.pop %v4084
        %v4086 = vmul.f32 %v4081, 1.442695
        %v4087 = vpow.pop %v4086
        %v4088 = vmul.f32 %v4082, 1.442695
        %v4089 = vpow.pop %v4088
        %v4090 = vmul.f32 %v4083, 1.442695
        %v4091 = vpow.pop %v4090
        %v4092 = vsub.f32 %v4085, 1.0
        %v4093 = vsub.f32 %v4087, 1.0
        %v4094 = vsub.f32 %v4089, 1.0
        %v4095 = vsub.f32 %v4091, 1.0
        %v4096 = vsel %vm4076, %v4068, %v4092
        %v4097 = vsel %vm4077, %v4070, %v4093
        %v4098 = vsel %vm4078, %v4072, %v4094
        %v4099 = vsel %vm4079, %v4074, %v4095
        %s4100 = scalar_lea.vmem %s7, 12
        %v4101 = vld [vmem:[%s4100] sm:$0xf]
        %v4102 = vld [vmem:[%s4100 + $0x4] sm:$0xf]
        %v4103 = vld [vmem:[%s4100 + $0x8] sm:$0x3]
        %v4104 = vpack.c.bf16 %v4098, %v4096
        %v4105 = vpack.c.bf16 %v4099, %v4097
        %v4109 = vunpack.c.l.b16 %v4101
        %v4110 = vunpack.c.l.b16 %v4102
        %v4111 = vunpack.c.l.b16 %v4103
        %v4112 = vpack.c.b16 %v4110, %v4109
        %v4113 = vpack.c.b16 %v4111, %v4111
        %v4115 = vsel %vm3939, %v4112, 0
        %v4118 = vsel %vm3939, %v4113, 0
        %v4121 = vsel %vm3946, %v4104, 0
        %v4124 = vsel %vm3946, %v4105, 0
        %4126 = vmatprep.subr.bf16.mxu0 %v4124
        %4127 = vmatpush1.bf16.msra.mxu0 %v4121
        %4128 = vmatprep.subr.bf16.mxu0 0
        %4129 = vmatpush1.bf16.msra.mxu0 0
        %4130 = vmatprep.subr.bf16.mxu0 0
        %4131 = vmatpush1.bf16.msra.mxu0 0
        %4132 = vmatprep.subr.bf16.mxu0 0
        %4133 = vmatpush1.bf16.msra.mxu0 0
        %4134 = vmatprep.subr.bf16.mxu0 0
        %4135 = vmatpush1.bf16.msra.mxu0 0
        %4136 = vmatprep.subr.bf16.mxu0 0
        %4137 = vmatpush1.bf16.msra.mxu0 0
        %4138 = vmatprep.subr.bf16.mxu0 0
        %4139 = vmatpush1.bf16.msra.mxu0 0
        %4140 = vmatprep.subr.bf16.mxu0 0
        %4141 = vmatpush1.bf16.msra.mxu0 0
        %4142 = vmatprep.subr.bf16.mxu0 0
        %4143 = vmatpush1.bf16.msra.mxu0 0
        %4144 = vmatprep.subr.bf16.mxu0 0
        %4145 = vmatpush1.bf16.msra.mxu0 0
        %4146 = vmatprep.subr.bf16.mxu0 0
        %4147 = vmatpush1.bf16.msra.mxu0 0
        %4148 = vmatprep.subr.bf16.mxu0 0
        %4149 = vmatpush1.bf16.msra.mxu0 0
        %4150 = vmatprep.subr.bf16.mxu0 0
        %4151 = vmatpush1.bf16.msra.mxu0 0
        %4152 = vmatprep.subr.bf16.mxu0 0
        %4153 = vmatpush1.bf16.msra.mxu0 0
        %4154 = vmatprep.subr.bf16.mxu0 0
        %4155 = vmatpush1.bf16.msra.mxu0 0
        %4156 = vmatprep.subr.bf16.mxu0 0
        %4157 = vmatpush1.bf16.msra.mxu0 0
        %4158 = vmatprep.mubr.bf16.mxu0 0
        %4159 = vmatmul.mubr.bf16.gmra.mrb[0].mxu0 %v4115
        %v4160 = vpop.f32.mrb[0].mxu0
        %v4161 = vadd.f32 0.0, %v4160
        %v4162 = vpop.f32.mrb[0].mxu0
        %v4163 = vadd.f32 0.0, %v4162
        %v4164 = vpop.f32.mrb[0].mxu0
        %v4165 = vadd.f32 0.0, %v4164
        %v4166 = vpop.f32.mrb[0].mxu0
        %v4167 = vadd.f32 0.0, %v4166
        %4168 = vmatprep.mubr.bf16.mxu0 0
        %4169 = vmatmul.mubr.bf16.gmra.mrb[0].mxu0 %v4118
        %v4170 = vpop.f32.mrb[0].mxu0
        %v4171 = vadd.f32 0.0, %v4170
        %v4172 = vpop.f32.mrb[0].mxu0
        %v4173 = vadd.f32 0.0, %v4172
        %v4174 = vpop.f32.mrb[0].mxu0
        %v4175 = vpop.f32.mrb[0].mxu0
        %4176 = vdwg.mxu0
        %v4177 = vadd.f32 %v4019, %v4161
        %v4178 = vadd.f32 %v4020, %v4163
        %v4179 = vadd.f32 %v4021, %v4165
        %v4180 = vadd.f32 %v4022, %v4167
        %v4181 = vadd.f32 %v4023, %v4171
        %v4182 = vadd.f32 %v4024, %v4173
        %v4183 = vld [vmem:[#allocation3 + $0x40] sm:$0xff]
        %v4184 = vld [vmem:[#allocation3 + $0x48] sm:$0xff]
        %v4185 = vld [vmem:[#allocation3 + $0x50] sm:$0xff]
        %v4186 = vld [vmem:[#allocation3 + $0x58] sm:$0xff]
        %v4187 = vld [vmem:[#allocation3 + $0x60] sm:$0xff]
        %v4188 = vld [vmem:[#allocation3 + $0x68] sm:$0xff]
        %v4189 = vld [vmem:[#allocation3 + $0x70] sm:$0xff]
        %v4190 = vld [vmem:[#allocation3 + $0x78] sm:$0xff]
        %4191 = vmatprep.subr.bf16.mxu0 %v4184
        %4192 = vmatpush1.bf16.msra.mxu0 %v4183
        %4193 = vmatprep.subr.bf16.mxu0 %v4186
        %4194 = vmatpush1.bf16.msra.mxu0 %v4185
        %4195 = vmatprep.subr.bf16.mxu0 %v4188
        %4196 = vmatpush1.bf16.msra.mxu0 %v4187
        %4197 = vmatprep.subr.bf16.mxu0 %v4190
        %4198 = vmatpush1.bf16.msra.mxu0 %v4189
        %4199 = vmatprep.subr.bf16.mxu0 0
        %4200 = vmatpush1.bf16.msra.mxu0 0
        %4201 = vmatprep.subr.bf16.mxu0 0
        %4202 = vmatpush1.bf16.msra.mxu0 0
        %4203 = vmatprep.subr.bf16.mxu0 0
        %4204 = vmatpush1.bf16.msra.mxu0 0
        %4205 = vmatprep.subr.bf16.mxu0 0
        %4206 = vmatpush1.bf16.msra.mxu0 0
        %4207 = vmatprep.subr.bf16.mxu0 0
        %4208 = vmatpush1.bf16.msra.mxu0 0
        %4209 = vmatprep.subr.bf16.mxu0 0
        %4210 = vmatpush1.bf16.msra.mxu0 0
        %4211 = vmatprep.subr.bf16.mxu0 0
        %4212 = vmatpush1.bf16.msra.mxu0 0
        %4213 = vmatprep.subr.bf16.mxu0 0
        %4214 = vmatpush1.bf16.msra.mxu0 0
        %4215 = vmatprep.subr.bf16.mxu0 0
        %4216 = vmatpush1.bf16.msra.mxu0 0
        %4217 = vmatprep.subr.bf16.mxu0 0
        %4218 = vmatpush1.bf16.msra.mxu0 0
        %4219 = vmatprep.subr.bf16.mxu0 0
        %4220 = vmatpush1.bf16.msra.mxu0 0
        %4221 = vmatprep.subr.bf16.mxu0 0
        %4222 = vmatpush1.bf16.msra.mxu0 0
        %4223 = vmatprep.mubr.bf16.mxu0 0
        %4224 = vmatmul.mubr.bf16.gmra.mrb[0].mxu0 %v3857
        %v4225 = vpop.f32.mrb[0].mxu0
        %v4226 = vadd.f32 %v3843, %v4225
        %v4227 = vpop.f32.mrb[0].mxu0
        %v4228 = vadd.f32 %v3843, %v4227
        %v4229 = vpop.f32.mrb[0].mxu0
        %v4230 = vadd.f32 %v3848, %v4229
        %v4231 = vpop.f32.mrb[0].mxu0
        %v4232 = vadd.f32 %v3848, %v4231
        %4233 = vdwg.mxu0
        %vm4234 = vcmp.gt.f32.partialorder %v4226, 0.0
        %vm4235 = vcmp.gt.f32.partialorder %v4228, 0.0
        %vm4236 = vcmp.gt.f32.partialorder %v4230, 0.0
        %vm4237 = vcmp.gt.f32.partialorder %v4232, 0.0
        %v4238 = vmin.f32 %v4226, 0.0
        %v4239 = vmin.f32 %v4228, 0.0
        %v4240 = vmin.f32 %v4230, 0.0
        %v4241 = vmin.f32 %v4232, 0.0
        %v4242 = vmul.f32 %v4238, 1.442695
        %v4243 = vpow.pop %v4242
        %v4244 = vmul.f32 %v4239, 1.442695
        %v4245 = vpow.pop %v4244
        %v4246 = vmul.f32 %v4240, 1.442695
        %v4247 = vpow.pop %v4246
        %v4248 = vmul.f32 %v4241, 1.442695
        %v4249 = vpow.pop %v4248
        %v4250 = vsub.f32 %v4243, 1.0
        %v4251 = vsub.f32 %v4245, 1.0
        %v4252 = vsub.f32 %v4247, 1.0
        %v4253 = vsub.f32 %v4249, 1.0
        %v4254 = vsel %vm4234, %v4226, %v4250
        %v4255 = vsel %vm4235, %v4228, %v4251
        %v4256 = vsel %vm4236, %v4230, %v4252
        %v4257 = vsel %vm4237, %v4232, %v4253
        %s4258 = scalar_lea.vmem %s7, 24
        %v4259 = vld [vmem:[%s4258] sm:$0xf]
        %v4260 = vld [vmem:[%s4258 + $0x4] sm:$0xf]
        %v4261 = vld [vmem:[%s4258 + $0x8] sm:$0x3]
        %v4262 = vpack.c.bf16 %v4256, %v4254
        %v4263 = vpack.c.bf16 %v4257, %v4255
        %v4267 = vunpack.c.l.b16 %v4259
        %v4268 = vunpack.c.l.b16 %v4260
        %v4269 = vunpack.c.l.b16 %v4261
        %v4270 = vpack.c.b16 %v4268, %v4267
        %v4271 = vpack.c.b16 %v4269, %v4269
        %v4273 = vsel %vm3939, %v4270, 0
        %v4276 = vsel %vm3939, %v4271, 0
        %v4279 = vsel %vm3946, %v4262, 0
        %v4282 = vsel %vm3946, %v4263, 0
        %4284 = vmatprep.subr.bf16.mxu0 %v4282
        %4285 = vmatpush1.bf16.msra.mxu0 %v4279
        %4286 = vmatprep.subr.bf16.mxu0 0
        %4287 = vmatpush1.bf16.msra.mxu0 0
        %4288 = vmatprep.subr.bf16.mxu0 0
        %4289 = vmatpush1.bf16.msra.mxu0 0
        %4290 = vmatprep.subr.bf16.mxu0 0
        %4291 = vmatpush1.bf16.msra.mxu0 0
        %4292 = vmatprep.subr.bf16.mxu0 0
        %4293 = vmatpush1.bf16.msra.mxu0 0
        %4294 = vmatprep.subr.bf16.mxu0 0
        %4295 = vmatpush1.bf16.msra.mxu0 0
        %4296 = vmatprep.subr.bf16.mxu0 0
        %4297 = vmatpush1.bf16.msra.mxu0 0
        %4298 = vmatprep.subr.bf16.mxu0 0
        %4299 = vmatpush1.bf16.msra.mxu0 0
        %4300 = vmatprep.subr.bf16.mxu0 0
        %4301 = vmatpush1.bf16.msra.mxu0 0
        %4302 = vmatprep.subr.bf16.mxu0 0
        %4303 = vmatpush1.bf16.msra.mxu0 0
        %4304 = vmatprep.subr.bf16.mxu0 0
        %4305 = vmatpush1.bf16.msra.mxu0 0
        %4306 = vmatprep.subr.bf16.mxu0 0
        %4307 = vmatpush1.bf16.msra.mxu0 0
        %4308 = vmatprep.subr.bf16.mxu0 0
        %4309 = vmatpush1.bf16.msra.mxu0 0
        %4310 = vmatprep.subr.bf16.mxu0 0
        %4311 = vmatpush1.bf16.msra.mxu0 0
        %4312 = vmatprep.subr.bf16.mxu0 0
        %4313 = vmatpush1.bf16.msra.mxu0 0
        %4314 = vmatprep.subr.bf16.mxu0 0
        %4315 = vmatpush1.bf16.msra.mxu0 0
        %4316 = vmatprep.mubr.bf16.mxu0 0
        %4317 = vmatmul.mubr.bf16.gmra.mrb[0].mxu0 %v4273
        %v4318 = vpop.f32.mrb[0].mxu0
        %v4319 = vadd.f32 0.0, %v4318
        %v4320 = vpop.f32.mrb[0].mxu0
        %v4321 = vadd.f32 0.0, %v4320
        %v4322 = vpop.f32.mrb[0].mxu0
        %v4323 = vadd.f32 0.0, %v4322
        %v4324 = vpop.f32.mrb[0].mxu0
        %v4325 = vadd.f32 0.0, %v4324
        %4326 = vmatprep.mubr.bf16.mxu0 0
        %4327 = vmatmul.mubr.bf16.gmra.mrb[0].mxu0 %v4276
        %v4328 = vpop.f32.mrb[0].mxu0
        %v4329 = vadd.f32 0.0, %v4328
        %v4330 = vpop.f32.mrb[0].mxu0
        %v4331 = vadd.f32 0.0, %v4330
        %v4332 = vpop.f32.mrb[0].mxu0
        %v4333 = vpop.f32.mrb[0].mxu0
        %4334 = vdwg.mxu0
        %v4335 = vadd.f32 %v4177, %v4319
        %v4336 = vadd.f32 %v4178, %v4321
        %v4337 = vadd.f32 %v4179, %v4323
        %v4338 = vadd.f32 %v4180, %v4325
        %v4339 = vadd.f32 %v4181, %v4329
        %v4340 = vadd.f32 %v4182, %v4331
        %vm4341 = vcmp.gt.f32.partialorder %v4335, 0.0
        %vm4342 = vcmp.gt.f32.partialorder %v4336, 0.0
        %vm4343 = vcmp.gt.f32.partialorder %v4337, 0.0
        %vm4344 = vcmp.gt.f32.partialorder %v4338, 0.0
        %vm4345 = vcmp.gt.f32.partialorder %v4339, 0.0
        %vm4346 = vcmp.gt.f32.partialorder %v4340, 0.0
        %v4347 = vmin.f32 %v4335, 0.0
        %v4348 = vmin.f32 %v4336, 0.0
        %v4349 = vmin.f32 %v4337, 0.0
        %v4350 = vmin.f32 %v4338, 0.0
        %v4351 = vmin.f32 %v4339, 0.0
        %v4352 = vmin.f32 %v4340, 0.0
        %v4353 = vmul.f32 %v4347, 1.442695
        %v4354 = vpow.pop %v4353
        %v4355 = vmul.f32 %v4348, 1.442695
        %v4356 = vpow.pop %v4355
        %v4357 = vmul.f32 %v4349, 1.442695
        %v4358 = vpow.pop %v4357
        %v4359 = vmul.f32 %v4350, 1.442695
        %v4360 = vpow.pop %v4359
        %v4361 = vmul.f32 %v4351, 1.442695
        %v4362 = vpow.pop %v4361
        %v4363 = vmul.f32 %v4352, 1.442695
        %v4364 = vpow.pop %v4363
        %v4365 = vsub.f32 %v4354, 1.0
        %v4366 = vsub.f32 %v4356, 1.0
        %v4367 = vsub.f32 %v4358, 1.0
        %v4368 = vsub.f32 %v4360, 1.0
        %v4369 = vsub.f32 %v4362, 1.0
        %v4370 = vsub.f32 %v4364, 1.0
        %v4371 = vsel %vm4341, %v4335, %v4365
        %v4372 = vsel %vm4342, %v4336, %v4366
        %v4373 = vsel %vm4343, %v4337, %v4367
        %v4374 = vsel %vm4344, %v4338, %v4368
        %v4375 = vsel %vm4345, %v4339, %v4369
        %v4376 = vsel %vm4346, %v4340, %v4370
        %4377 = vst [vmem:[%s328] sm:$0xff] %v4371
        %4378 = vst [vmem:[%s328 + $0x8] sm:$0xff] %v4372
        %4379 = vst [vmem:[%s328 + $0x10] sm:$0xff] %v4373
        %4380 = vst [vmem:[%s328 + $0x18] sm:$0xff] %v4374
        %4381 = vst [vmem:[%s328 + $0x20] sm:$0xf] %v4375
        %4382 = vst [vmem:[%s328 + $0x28] sm:$0xf] %v4376
        %s4383 = sand.u32 %s225, 1
        %s4384 = scalar_lea.sflag [#allocation5], %s4383
        %s4385 = sand.u32 %s225, 1
        %s4386 = smul.addr %s4385, 48
        %s4387 = scalar_lea.vmem [#allocation4], %s4386
        // Predicated region
        $region57: #{state_history_encoder.1} parent=55 // pred_check
          %p4388 = pneg %p235
        $region58: #{state_history_encoder.1} parent=55 // pred_check_branch
          %4390 = sbr.rel (%p4388) target = $region60
        $region59: #{state_history_encoder.1} parent=55 // pred_region
          %s4391 = smul.u32 2, %s23
          %s4393 = ssub.s32 768, 768
          %4394 = vsyncadd %s4384, %s4393
          %s4395 = smul.addr %s4391, 128
          %s4396 = scalar_lea.hbm %s9, %s4395
          %s4397 = sshll.u32 %s4387, 4
          %s4398 = int_to_ptr.vmem [resolvable:$true] %s4397
          %4403 = dma.vmem_to_hbm [thread:$0]  %s4398, 768, %s4396, %s4384, 256, 512, 16
        $region60: #{state_history_encoder.1} parent=55 // pred_fallthru
          _
      $region56: #{state_history_encoder.1} parent=5 // pred_fallthru
        _
      %p4404 = scmp.le.s32.totalorder 2, %s18
      // Predicated region
      $region61: #{state_history_encoder.1} parent=5 // pred_check
        %p4405 = pneg %p4404
      $region62: #{state_history_encoder.1} parent=5 // pred_check_branch
        %4407 = sbr.rel (%p4405) target = $region64
      $region63: #{state_history_encoder.1} parent=5 // pred_region
        %s4408 = ssub.s32 %s18, 2
        // Predicated region
        $region65: #{state_history_encoder.1} parent=63 // pred_check
          %p4409 = pneg %p241
        $region66: #{state_history_encoder.1} parent=63 // pred_check_branch
          %4411 = sbr.rel (%p4409) target = $region68
        $region67: #{state_history_encoder.1} parent=63 // pred_region
          %s4412 = sand.u32 %s226, 1
          %s4413 = scalar_lea.sflag [#allocation5], %s4412
          %s4414 = sand.u32 %s226, 1
          %s4415 = smul.addr %s4414, 48
          %s4416 = scalar_lea.vmem [#allocation4], %s4415
          %4417 = dma.done %s4413, 768
        $region68: #{state_history_encoder.1} parent=63 // pred_fallthru
          _
      $region64: #{state_history_encoder.1} parent=5 // pred_fallthru
        _
    $region6: #{state_history_encoder.1} parent=1 // loop_footer
      %s22 = sadd.s32 1, %s18
    $region7: #{state_history_encoder.1} parent=1 // loop_footer_branch
      %17 = sbr.rel target = $region3
    $region8: #{state_history_encoder.1} parent=1 // loop_exit
      _
    %4418 = vsyncpa [#allocation5], 1
    %s4419 = scalar_lea.sflag [#allocation5], 1
    %4420 = vsyncpa %s4419, 1

</llo_original>
